<compile_context>
chip_gen: v5e
topology: v5e:2x2
jax: 0.10.0
libtpu: 0.0.40
codegen_flags: <defaults>
</compile_context>

<pallas_src>
import functools
import math

import jax
import jax.numpy as jnp
from jax import lax
from jax.experimental import pallas as pl
from jax.experimental.pallas import tpu as pltpu

LANE = 128


# ----------------------------------------------------------------------------
# Fused decoder-layer kernel (single invocation, whole layer, batch folded)
# ----------------------------------------------------------------------------

def _ssn_decoder_layer_kernel(
    qact_ref,     # (3*B*n_q, d): [tgt ; query_pos ; query_sine_embed]
    sact_ref,     # (2*B*S, d):   [src ; pos]
    sa_mask_ref,  # (B*n_q, B*n_q) additive: 0 same batch, -1e30 otherwise
    ca_mask_ref,  # (B*n_q, B*S)   additive: 0 same batch & valid key, else -1e30
    w_in_ref,     # (d, 14*128): weight i in columns [i*128 : i*128+width_i]
    w2_ref,       # (d_ffn, d)
    p_ref,        # (21, 128): rows 0..13 biases, 14 = b2, 15..17 LN gamma, 18..20 LN beta
    o_ref,        # (B*n_q, d)
    *, n_heads, is_first, eps):
  m_q, d = o_ref.shape
  m_s = sact_ref.shape[0] // 2
  d_ffn = w2_ref.shape[0]
  hd = d // n_heads
  f32 = jnp.float32

  def wcol(i, width):
    return w_in_ref[:, i * LANE:i * LANE + width]

  def brow(i, width):
    return p_ref[i:i + 1, 0:width]

  def lin(x, i, width=d):
    return jnp.dot(x, wcol(i, width), preferred_element_type=f32) + brow(i, width)

  def layernorm(y, j):  # j: 0=norm2, 1=norm1, 2=norm3
    g = p_ref[15 + j:16 + j, 0:d]
    b = p_ref[18 + j:19 + j, 0:d]
    mu = jnp.mean(y, axis=-1, keepdims=True)
    var = jnp.mean(jnp.square(y - mu), axis=-1, keepdims=True)
    return (y - mu) * lax.rsqrt(var + eps) * g + b

  def softmax(s):
    m = jnp.max(s, axis=-1, keepdims=True)
    e = jnp.exp(s - m)
    return e / jnp.sum(e, axis=-1, keepdims=True)

  tgt = qact_ref[0:m_q, :]
  qpos = qact_ref[m_q:2 * m_q, :]
  qsine = qact_ref[2 * m_q:3 * m_q, :]
  src = sact_ref[0:m_s, :]
  pos = sact_ref[m_s:2 * m_s, :]

  # ---------------- self attention (scale folded into q-side projections) ----
  q = lin(tgt, 0) + lin(qpos, 1)
  k = lin(tgt, 2) + lin(qpos, 3)
  v = lin(tgt, 4)
  qT, kT, vT = q.T, k.T, v.T                     # (d, m_q); head slices => sublanes
  sa_mask = sa_mask_ref[...]
  parts = []
  for h in range(n_heads):
    r = slice(h * hd, (h + 1) * hd)
    s = jnp.dot(qT[r, :].T, kT[r, :], preferred_element_type=f32) + sa_mask
    p = softmax(s)
    parts.append(jnp.dot(vT[r, :], p.T, preferred_element_type=f32))   # (hd, m_q)
  attnT = jnp.concatenate(parts, axis=0)         # (d, m_q), sublane concat
  tgt = layernorm(tgt + lin(attnT.T, 5), 0)      # out_proj + norm2

  # ---------------- cross attention -------------------------------------------
  qc = lin(tgt, 6)                               # pre-scaled by 1/sqrt(2*hd)
  kc = lin(src, 8)
  v2 = lin(src, 10)
  kp = lin(pos, 9)
  qse = lin(qsine, 11)                           # pre-scaled
  if is_first:
    qc = qc + lin(qpos, 7)                       # pre-scaled
    kc = kc + kp
  qcT, qseT, kcT, kpT, v2T = qc.T, qse.T, kc.T, kp.T, v2.T
  ca_mask = ca_mask_ref[...]
  parts = []
  for h in range(n_heads):
    r = slice(h * hd, (h + 1) * hd)
    # per-head score of the concatenated [content || positional] head, never
    # materializing the concat
    s = (jnp.dot(qcT[r, :].T, kcT[r, :], preferred_element_type=f32)
         + jnp.dot(qseT[r, :].T, kpT[r, :], preferred_element_type=f32)
         + ca_mask)
    p = softmax(s)
    parts.append(jnp.dot(v2T[r, :], p.T, preferred_element_type=f32))  # (hd, m_q)
  attnT = jnp.concatenate(parts, axis=0)
  tgt = layernorm(tgt + lin(attnT.T, 12), 1)     # out_proj + norm1

  # ---------------- FFN --------------------------------------------------------
  h1 = jnp.maximum(lin(tgt, 13, width=d_ffn), 0.0)
  ff = jnp.dot(h1, w2_ref[...], preferred_element_type=f32) + brow(14, d)
  o_ref[...] = layernorm(tgt + ff, 2)            # norm3


# ----------------------------------------------------------------------------
# Wrapper: parameter packing + single pallas_call
# ----------------------------------------------------------------------------

def ssn_decoder_layer_forward(params, tgt, query_pos, src, pos, mask,
                              query_sine_embed, is_first=False, n_heads=4):
  B, n_q, d = tgt.shape
  S = src.shape[1]
  m_q, m_s = B * n_q, B * S
  hd = d // n_heads
  sa_scale = 1.0 / math.sqrt(hd)
  ca_scale = 1.0 / math.sqrt(2 * hd)

  def sc(p, s):
    w, b = p
    return w * s, b * s

  # weight block i lives in W_in columns [i*128 : i*128 + width_i]
  blocks = [
      sc(params["sa_qcontent_proj"], sa_scale),   # 0
      sc(params["sa_qpos_proj"], sa_scale),       # 1
      params["sa_kcontent_proj"],                 # 2
      params["sa_kpos_proj"],                     # 3
      params["sa_v_proj"],                        # 4
      params["self_attn_out_proj"],               # 5
      sc(params["ca_qcontent_proj"], ca_scale),   # 6
      sc(params["ca_qpos_proj"], ca_scale),       # 7
      params["ca_kcontent_proj"],                 # 8
      params["ca_kpos_proj"],                     # 9
      params["ca_v_proj"],                        # 10
      sc(params["ca_qpos_sine_proj"], ca_scale),  # 11
      params["cross_attn_out_proj"],              # 12
      params["linear1"],                          # 13
  ]
  w_in = jnp.concatenate(
      [jnp.pad(w, ((0, 0), (0, LANE - w.shape[1]))) for w, _ in blocks],
      axis=1).astype(jnp.float32)                 # (d, 14*128)
  w2, b2 = params["linear2"]

  def padb(b):
    return jnp.pad(b, (0, LANE - b.shape[0]))

  p_rows = ([padb(b) for _, b in blocks] + [padb(b2)]
            + [padb(params[n][0]) for n in ("norm2", "norm1", "norm3")]
            + [padb(params[n][1]) for n in ("norm2", "norm1", "norm3")])
  p_slab = jnp.stack(p_rows).astype(jnp.float32)  # (21, 128)

  # stacked activations: 2 activation DMAs instead of 5
  qact = jnp.concatenate([tgt.reshape(m_q, d), query_pos.reshape(m_q, d),
                          query_sine_embed.reshape(m_q, d)], axis=0)
  sact = jnp.concatenate([src.reshape(m_s, d), pos.reshape(m_s, d)], axis=0)

  # additive masks: block-diagonal over batch (keeps batches independent after
  # folding) + key-padding bias for cross-attention, precomputed full-shape.
  bq = jnp.repeat(jnp.arange(B), n_q)
  bs = jnp.repeat(jnp.arange(B), S)
  neg = jnp.float32(-1e30)
  sa_mask = jnp.where(bq[:, None] == bq[None, :], 0.0, neg).astype(jnp.float32)
  ca_mask = jnp.where((bq[:, None] == bs[None, :]) & mask.reshape(-1)[None, :],
                      0.0, neg).astype(jnp.float32)

  kernel = functools.partial(_ssn_decoder_layer_kernel, n_heads=n_heads,
                             is_first=is_first, eps=1e-5)
  inputs = (qact.astype(jnp.float32), sact.astype(jnp.float32),
            sa_mask, ca_mask, w_in, w2.astype(jnp.float32), p_slab)
  in_specs = [pl.BlockSpec(x.shape, lambda i: (0, 0)) for x in inputs]

  out = pl.pallas_call(
      kernel,
      out_shape=jax.ShapeDtypeStruct((m_q, d), jnp.float32),
      grid=(1,),
      in_specs=in_specs,
      out_specs=pl.BlockSpec((m_q, d), lambda i: (0, 0)),
      compiler_params=pltpu.CompilerParams(dimension_semantics=("arbitrary",)),
  )(*inputs)
  return out.reshape(B, n_q, d)


# ----------------------------------------------------------------------------
# Pure-JAX reference (for sanity check); matmuls at HIGHEST precision
# ----------------------------------------------------------------------------

def reference_forward(params, tgt, query_pos, src, pos, mask,
                      query_sine_embed, is_first, n_heads):
  HI = jax.lax.Precision.HIGHEST

  def lin(x, p):
    w, b = p
    return jnp.dot(x, w, precision=HI) + b

  def ln(x, p):
    g, bt = p
    mu = x.mean(-1, keepdims=True)
    var = ((x - mu) ** 2).mean(-1, keepdims=True)
    return (x - mu) / jnp.sqrt(var + 1e-5) * g + bt

  def attn(q, k, v, bias, h):
    B, Lq, E = q.shape
    Lk, Dv = k.shape[1], v.shape[2]
    hd = E // h
    vhd = Dv // h
    scale = 1.0 / math.sqrt(hd)
    qh = (q * scale).reshape(B, Lq, h, hd).transpose(0, 2, 1, 3)
    kh = k.reshape(B, Lk, h, hd).transpose(0, 2, 1, 3)
    vh = v.reshape(B, Lk, h, vhd).transpose(0, 2, 1, 3)
    s = jnp.einsum("bhqd,bhkd->bhqk", qh, kh, precision=HI) + bias[:, None, None, :]
    p = jax.nn.softmax(s, axis=-1)
    o = jnp.einsum("bhqk,bhkd->bhqd", p, vh, precision=HI)
    return o.transpose(0, 2, 1, 3).reshape(B, Lq, Dv)

  B, n_q, d = tgt.shape
  S = src.shape[1]
  hd = d // n_heads

  q = lin(tgt, params["sa_qcontent_proj"]) + lin(query_pos, params["sa_qpos_proj"])
  k = lin(tgt, params["sa_kcontent_proj"]) + lin(query_pos, params["sa_kpos_proj"])
  v = lin(tgt, params["sa_v_proj"])
  zero_bias = jnp.zeros((B, n_q), jnp.float32)
  tgt2 = lin(attn(q, k, v, zero_bias, n_heads), params["self_attn_out_proj"])
  tgt = ln(tgt + tgt2, params["norm2"])

  q_content = lin(tgt, params["ca_qcontent_proj"])
  k_content = lin(src, params["ca_kcontent_proj"])
  v = lin(src, params["ca_v_proj"])
  k_pos = lin(pos, params["ca_kpos_proj"])
  if is_first:
    q = q_content + lin(query_pos, params["ca_qpos_proj"])
    k = k_content + k_pos
  else:
    q = q_content
    k = k_content
  qse = lin(query_sine_embed, params["ca_qpos_sine_proj"])
  q = jnp.concatenate([q.reshape(B, n_q, n_heads, hd),
                       qse.reshape(B, n_q, n_heads, hd)], 3).reshape(B, n_q, 2 * d)
  k = jnp.concatenate([k.reshape(B, S, n_heads, hd),
                       k_pos.reshape(B, S, n_heads, hd)], 3).reshape(B, S, 2 * d)
  key_bias = jnp.where(mask, 0.0, -1e30).astype(jnp.float32)
  tgt2 = lin(attn(q, k, v, key_bias, n_heads), params["cross_attn_out_proj"])
  tgt = ln(tgt + tgt2, params["norm1"])

  h = jnp.maximum(lin(tgt, params["linear1"]), 0.0)
  tgt2 = lin(h, params["linear2"])
  tgt = ln(tgt + tgt2, params["norm3"])
  return tgt


# ----------------------------------------------------------------------------
# Parameter init + main
# ----------------------------------------------------------------------------

def init_params(key, d_model, d_ffn):
  keys = iter(jax.random.split(key, 64))

  def lin_p(din, dout):
    w = 0.05 * jax.random.normal(next(keys), (din, dout), jnp.float32)
    b = 0.05 * jax.random.normal(next(keys), (dout,), jnp.float32)
    return (w, b)

  def ln_p(d):
    g = 1.0 + 0.1 * jax.random.normal(next(keys), (d,), jnp.float32)
    bt = 0.1 * jax.random.normal(next(keys), (d,), jnp.float32)
    return (g, bt)

  p = {}
  for name in ["sa_qcontent_proj", "sa_qpos_proj", "sa_kcontent_proj",
               "sa_kpos_proj", "sa_v_proj", "self_attn_out_proj",
               "ca_qcontent_proj", "ca_qpos_proj", "ca_kcontent_proj",
               "ca_kpos_proj", "ca_v_proj", "ca_qpos_sine_proj",
               "cross_attn_out_proj"]:
    p[name] = lin_p(d_model, d_model)
  p["norm1"] = ln_p(d_model)
  p["norm2"] = ln_p(d_model)
  p["norm3"] = ln_p(d_model)
  p["linear1"] = lin_p(d_model, d_ffn)
  p["linear2"] = lin_p(d_ffn, d_model)
  return p


if __name__ == "__main__":
  d_model, d_ffn, n_heads = 32, 64, 4
  B, n_q, S = 2, 8, 16

  key = jax.random.PRNGKey(0)
  kp, k1, k2, k3, k4, k5 = jax.random.split(key, 6)
  params = init_params(kp, d_model, d_ffn)

  tgt = jax.random.normal(k1, (B, n_q, d_model), jnp.float32)
  query_pos = jax.random.normal(k2, (B, n_q, d_model), jnp.float32)
  src = jax.random.normal(k3, (B, S, d_model), jnp.float32)
  pos = jax.random.normal(k4, (B, S, d_model), jnp.float32)
  query_sine_embed = jax.random.normal(k5, (B, n_q, d_model), jnp.float32)
  lengths = jnp.array([S, S - 4])
  mask = jnp.arange(S)[None, :] < lengths[:, None]     # True = valid key

  out = ssn_decoder_layer_forward(params, tgt, query_pos, src, pos, mask,
                                  query_sine_embed, is_first=True,
                                  n_heads=n_heads)
  out = jax.block_until_ready(out)

  ref = reference_forward(params, tgt, query_pos, src, pos, mask,
                          query_sine_embed, True, n_heads)
  ref = jax.block_until_ready(ref)

  assert out.shape == (B, n_q, d_model)
  assert jnp.all(jnp.isfinite(out))
  # NOTE: tolerance kept loose only to absorb a possible XLA-vs-Mosaic f32
  # matmul pass-count difference; order-of-operations drift itself is ~1e-5.
  assert jnp.allclose(out, ref, rtol=2e-2, atol=2e-2), \
      f"max diff {float(jnp.max(jnp.abs(out - ref)))}"

  print("KERNEL_OK")
</pallas_src>

<mosaic_0001>
module attributes {stable_mosaic.version = 11 : i64} {
  func.func @_ssn_decoder_layer_kernel(%arg0: i32, %arg1: memref<48x32xf32, #tpu.memory_space<vmem>>, %arg2: memref<64x32xf32, #tpu.memory_space<vmem>>, %arg3: memref<16x16xf32, #tpu.memory_space<vmem>>, %arg4: memref<16x32xf32, #tpu.memory_space<vmem>>, %arg5: memref<32x1792xf32, #tpu.memory_space<vmem>>, %arg6: memref<64x32xf32, #tpu.memory_space<vmem>>, %arg7: memref<21x128xf32, #tpu.memory_space<vmem>>, %arg8: memref<16x32xf32, #tpu.memory_space<vmem>>) attributes {dimension_semantics = [#tpu.dimension_semantics<arbitrary>], iteration_bounds = array<i64: 1>, scalar_prefetch = 0 : i64, scratch_operands = 0 : i64, tpu.core_type = #tpu.core_type<tc>, window_params = [{pipeline_mode = #tpu.pipeline_mode<synchronous>, transform_indices = @transform_0, window_bounds = array<i64: 48, 32>}, {pipeline_mode = #tpu.pipeline_mode<synchronous>, transform_indices = @transform_1, window_bounds = array<i64: 64, 32>}, {pipeline_mode = #tpu.pipeline_mode<synchronous>, transform_indices = @transform_2, window_bounds = array<i64: 16, 16>}, {pipeline_mode = #tpu.pipeline_mode<synchronous>, transform_indices = @transform_3, window_bounds = array<i64: 16, 32>}, {pipeline_mode = #tpu.pipeline_mode<synchronous>, transform_indices = @transform_4, window_bounds = array<i64: 32, 1792>}, {pipeline_mode = #tpu.pipeline_mode<synchronous>, transform_indices = @transform_5, window_bounds = array<i64: 64, 32>}, {pipeline_mode = #tpu.pipeline_mode<synchronous>, transform_indices = @transform_6, window_bounds = array<i64: 21, 128>}, {pipeline_mode = #tpu.pipeline_mode<synchronous>, transform_indices = @transform_7, window_bounds = array<i64: 16, 32>}]} {
    %c0 = arith.constant 0 : index
    %c0_0 = arith.constant 0 : index
    %0 = vector.load %arg1[%c0, %c0_0] : memref<48x32xf32, #tpu.memory_space<vmem>>, vector<16x32xf32>
    %c16 = arith.constant 16 : index
    %c0_1 = arith.constant 0 : index
    %1 = vector.load %arg1[%c16, %c0_1] : memref<48x32xf32, #tpu.memory_space<vmem>>, vector<16x32xf32>
    %c32 = arith.constant 32 : index
    %c0_2 = arith.constant 0 : index
    %2 = vector.load %arg1[%c32, %c0_2] : memref<48x32xf32, #tpu.memory_space<vmem>>, vector<16x32xf32>
    %c0_3 = arith.constant 0 : index
    %c0_4 = arith.constant 0 : index
    %3 = vector.load %arg2[%c0_3, %c0_4] : memref<64x32xf32, #tpu.memory_space<vmem>>, vector<32x32xf32>
    %c32_5 = arith.constant 32 : index
    %c0_6 = arith.constant 0 : index
    %4 = vector.load %arg2[%c32_5, %c0_6] : memref<64x32xf32, #tpu.memory_space<vmem>>, vector<32x32xf32>
    %c0_7 = arith.constant 0 : index
    %c0_8 = arith.constant 0 : index
    %5 = vector.load %arg5[%c0_7, %c0_8] : memref<32x1792xf32, #tpu.memory_space<vmem>>, vector<32x32xf32>
    %cst = arith.constant dense<0.000000e+00> : vector<16x32xf32>
    %6 = tpu.matmul %0, %5, %cst {dimension_numbers = #tpu.dot_dimension_numbers<[1], [0], [0], [1], [0, 0, 1, 1], [], []>} : vector<16x32xf32>, vector<32x32xf32>, vector<16x32xf32> -> vector<16x32xf32>
    %c0_9 = arith.constant 0 : index
    %c0_10 = arith.constant 0 : index
    %7 = vector.load %arg7[%c0_9, %c0_10] : memref<21x128xf32, #tpu.memory_space<vmem>>, vector<1x32xf32>
    %8 = vector.broadcast %7 : vector<1x32xf32> to vector<16x32xf32>
    %9 = arith.addf %6, %8 : vector<16x32xf32>
    %c0_11 = arith.constant 0 : index
    %c128 = arith.constant 128 : index
    %10 = vector.load %arg5[%c0_11, %c128] : memref<32x1792xf32, #tpu.memory_space<vmem>>, vector<32x32xf32>
    %cst_12 = arith.constant dense<0.000000e+00> : vector<16x32xf32>
    %11 = tpu.matmul %1, %10, %cst_12 {dimension_numbers = #tpu.dot_dimension_numbers<[1], [0], [0], [1], [0, 0, 1, 1], [], []>} : vector<16x32xf32>, vector<32x32xf32>, vector<16x32xf32> -> vector<16x32xf32>
    %c1 = arith.constant 1 : index
    %c0_13 = arith.constant 0 : index
    %12 = vector.load %arg7[%c1, %c0_13] : memref<21x128xf32, #tpu.memory_space<vmem>>, vector<1x32xf32>
    %13 = vector.broadcast %12 : vector<1x32xf32> to vector<16x32xf32>
    %14 = arith.addf %11, %13 : vector<16x32xf32>
    %15 = arith.addf %9, %14 : vector<16x32xf32>
    %c0_14 = arith.constant 0 : index
    %c256 = arith.constant 256 : index
    %16 = vector.load %arg5[%c0_14, %c256] : memref<32x1792xf32, #tpu.memory_space<vmem>>, vector<32x32xf32>
    %cst_15 = arith.constant dense<0.000000e+00> : vector<16x32xf32>
    %17 = tpu.matmul %0, %16, %cst_15 {dimension_numbers = #tpu.dot_dimension_numbers<[1], [0], [0], [1], [0, 0, 1, 1], [], []>} : vector<16x32xf32>, vector<32x32xf32>, vector<16x32xf32> -> vector<16x32xf32>
    %c2 = arith.constant 2 : index
    %c0_16 = arith.constant 0 : index
    %18 = vector.load %arg7[%c2, %c0_16] : memref<21x128xf32, #tpu.memory_space<vmem>>, vector<1x32xf32>
    %19 = vector.broadcast %18 : vector<1x32xf32> to vector<16x32xf32>
    %20 = arith.addf %17, %19 : vector<16x32xf32>
    %c0_17 = arith.constant 0 : index
    %c384 = arith.constant 384 : index
    %21 = vector.load %arg5[%c0_17, %c384] : memref<32x1792xf32, #tpu.memory_space<vmem>>, vector<32x32xf32>
    %cst_18 = arith.constant dense<0.000000e+00> : vector<16x32xf32>
    %22 = tpu.matmul %1, %21, %cst_18 {dimension_numbers = #tpu.dot_dimension_numbers<[1], [0], [0], [1], [0, 0, 1, 1], [], []>} : vector<16x32xf32>, vector<32x32xf32>, vector<16x32xf32> -> vector<16x32xf32>
    %c3 = arith.constant 3 : index
    %c0_19 = arith.constant 0 : index
    %23 = vector.load %arg7[%c3, %c0_19] : memref<21x128xf32, #tpu.memory_space<vmem>>, vector<1x32xf32>
    %24 = vector.broadcast %23 : vector<1x32xf32> to vector<16x32xf32>
    %25 = arith.addf %22, %24 : vector<16x32xf32>
    %26 = arith.addf %20, %25 : vector<16x32xf32>
    %c0_20 = arith.constant 0 : index
    %c512 = arith.constant 512 : index
    %27 = vector.load %arg5[%c0_20, %c512] : memref<32x1792xf32, #tpu.memory_space<vmem>>, vector<32x32xf32>
    %cst_21 = arith.constant dense<0.000000e+00> : vector<16x32xf32>
    %28 = tpu.matmul %0, %27, %cst_21 {dimension_numbers = #tpu.dot_dimension_numbers<[1], [0], [0], [1], [0, 0, 1, 1], [], []>} : vector<16x32xf32>, vector<32x32xf32>, vector<16x32xf32> -> vector<16x32xf32>
    %c4 = arith.constant 4 : index
    %c0_22 = arith.constant 0 : index
    %29 = vector.load %arg7[%c4, %c0_22] : memref<21x128xf32, #tpu.memory_space<vmem>>, vector<1x32xf32>
    %30 = vector.broadcast %29 : vector<1x32xf32> to vector<16x32xf32>
    %31 = arith.addf %28, %30 : vector<16x32xf32>
    %32 = tpu.transpose %15, [1, 0] : vector<16x32xf32> -> vector<32x16xf32>
    %33 = tpu.transpose %26, [1, 0] : vector<16x32xf32> -> vector<32x16xf32>
    %34 = tpu.transpose %31, [1, 0] : vector<16x32xf32> -> vector<32x16xf32>
    %c0_23 = arith.constant 0 : index
    %c0_24 = arith.constant 0 : index
    %35 = vector.load %arg3[%c0_23, %c0_24] : memref<16x16xf32, #tpu.memory_space<vmem>>, vector<16x16xf32>
    %36 = vector.extract_strided_slice %32 {offsets = [0, 0], sizes = [8, 16], strides = [1, 1]} : vector<32x16xf32> to vector<8x16xf32>
    %37 = tpu.transpose %36, [1, 0] : vector<8x16xf32> -> vector<16x8xf32>
    %38 = vector.extract_strided_slice %33 {offsets = [0, 0], sizes = [8, 16], strides = [1, 1]} : vector<32x16xf32> to vector<8x16xf32>
    %cst_25 = arith.constant dense<0.000000e+00> : vector<16x16xf32>
    %39 = tpu.matmul %37, %38, %cst_25 {dimension_numbers = #tpu.dot_dimension_numbers<[1], [0], [0], [1], [0, 0, 1, 1], [], []>} : vector<16x8xf32>, vector<8x16xf32>, vector<16x16xf32> -> vector<16x16xf32>
    %40 = arith.addf %39, %35 : vector<16x16xf32>
    %cst_26 = arith.constant dense<0xFF800000> : vector<16xf32>
    %41 = vector.multi_reduction <maximumf>, %40, %cst_26 [1] : vector<16x16xf32> to vector<16xf32>
    %42 = vector.shape_cast %41 : vector<16xf32> to vector<16x1xf32>
    %43 = vector.broadcast %42 : vector<16x1xf32> to vector<16x16xf32>
    %44 = arith.subf %40, %43 : vector<16x16xf32>
    %45 = math.exp %44 : vector<16x16xf32>
    %cst_27 = arith.constant dense<0.000000e+00> : vector<16xf32>
    %46 = vector.multi_reduction <add>, %45, %cst_27 [1] : vector<16x16xf32> to vector<16xf32>
    %47 = vector.shape_cast %46 : vector<16xf32> to vector<16x1xf32>
    %48 = vector.broadcast %47 : vector<16x1xf32> to vector<16x16xf32>
    %49 = arith.divf %45, %48 : vector<16x16xf32>
    %50 = vector.extract_strided_slice %34 {offsets = [0, 0], sizes = [8, 16], strides = [1, 1]} : vector<32x16xf32> to vector<8x16xf32>
    %51 = tpu.transpose %49, [1, 0] : vector<16x16xf32> -> vector<16x16xf32>
    %cst_28 = arith.constant dense<0.000000e+00> : vector<8x16xf32>
    %52 = tpu.matmul %50, %51, %cst_28 {dimension_numbers = #tpu.dot_dimension_numbers<[1], [0], [0], [1], [0, 0, 1, 1], [], []>} : vector<8x16xf32>, vector<16x16xf32>, vector<8x16xf32> -> vector<8x16xf32>
    %53 = vector.extract_strided_slice %32 {offsets = [8, 0], sizes = [8, 16], strides = [1, 1]} : vector<32x16xf32> to vector<8x16xf32>
    %54 = tpu.transpose %53, [1, 0] : vector<8x16xf32> -> vector<16x8xf32>
    %55 = vector.extract_strided_slice %33 {offsets = [8, 0], sizes = [8, 16], strides = [1, 1]} : vector<32x16xf32> to vector<8x16xf32>
    %cst_29 = arith.constant dense<0.000000e+00> : vector<16x16xf32>
    %56 = tpu.matmul %54, %55, %cst_29 {dimension_numbers = #tpu.dot_dimension_numbers<[1], [0], [0], [1], [0, 0, 1, 1], [], []>} : vector<16x8xf32>, vector<8x16xf32>, vector<16x16xf32> -> vector<16x16xf32>
    %57 = arith.addf %56, %35 : vector<16x16xf32>
    %cst_30 = arith.constant dense<0xFF800000> : vector<16xf32>
    %58 = vector.multi_reduction <maximumf>, %57, %cst_30 [1] : vector<16x16xf32> to vector<16xf32>
    %59 = vector.shape_cast %58 : vector<16xf32> to vector<16x1xf32>
    %60 = vector.broadcast %59 : vector<16x1xf32> to vector<16x16xf32>
    %61 = arith.subf %57, %60 : vector<16x16xf32>
    %62 = math.exp %61 : vector<16x16xf32>
    %cst_31 = arith.constant dense<0.000000e+00> : vector<16xf32>
    %63 = vector.multi_reduction <add>, %62, %cst_31 [1] : vector<16x16xf32> to vector<16xf32>
    %64 = vector.shape_cast %63 : vector<16xf32> to vector<16x1xf32>
    %65 = vector.broadcast %64 : vector<16x1xf32> to vector<16x16xf32>
    %66 = arith.divf %62, %65 : vector<16x16xf32>
    %67 = vector.extract_strided_slice %34 {offsets = [8, 0], sizes = [8, 16], strides = [1, 1]} : vector<32x16xf32> to vector<8x16xf32>
    %68 = tpu.transpose %66, [1, 0] : vector<16x16xf32> -> vector<16x16xf32>
    %cst_32 = arith.constant dense<0.000000e+00> : vector<8x16xf32>
    %69 = tpu.matmul %67, %68, %cst_32 {dimension_numbers = #tpu.dot_dimension_numbers<[1], [0], [0], [1], [0, 0, 1, 1], [], []>} : vector<8x16xf32>, vector<16x16xf32>, vector<8x16xf32> -> vector<8x16xf32>
    %70 = vector.extract_strided_slice %32 {offsets = [16, 0], sizes = [8, 16], strides = [1, 1]} : vector<32x16xf32> to vector<8x16xf32>
    %71 = tpu.transpose %70, [1, 0] : vector<8x16xf32> -> vector<16x8xf32>
    %72 = vector.extract_strided_slice %33 {offsets = [16, 0], sizes = [8, 16], strides = [1, 1]} : vector<32x16xf32> to vector<8x16xf32>
    %cst_33 = arith.constant dense<0.000000e+00> : vector<16x16xf32>
    %73 = tpu.matmul %71, %72, %cst_33 {dimension_numbers = #tpu.dot_dimension_numbers<[1], [0], [0], [1], [0, 0, 1, 1], [], []>} : vector<16x8xf32>, vector<8x16xf32>, vector<16x16xf32> -> vector<16x16xf32>
    %74 = arith.addf %73, %35 : vector<16x16xf32>
    %cst_34 = arith.constant dense<0xFF800000> : vector<16xf32>
    %75 = vector.multi_reduction <maximumf>, %74, %cst_34 [1] : vector<16x16xf32> to vector<16xf32>
    %76 = vector.shape_cast %75 : vector<16xf32> to vector<16x1xf32>
    %77 = vector.broadcast %76 : vector<16x1xf32> to vector<16x16xf32>
    %78 = arith.subf %74, %77 : vector<16x16xf32>
    %79 = math.exp %78 : vector<16x16xf32>
    %cst_35 = arith.constant dense<0.000000e+00> : vector<16xf32>
    %80 = vector.multi_reduction <add>, %79, %cst_35 [1] : vector<16x16xf32> to vector<16xf32>
    %81 = vector.shape_cast %80 : vector<16xf32> to vector<16x1xf32>
    %82 = vector.broadcast %81 : vector<16x1xf32> to vector<16x16xf32>
    %83 = arith.divf %79, %82 : vector<16x16xf32>
    %84 = vector.extract_strided_slice %34 {offsets = [16, 0], sizes = [8, 16], strides = [1, 1]} : vector<32x16xf32> to vector<8x16xf32>
    %85 = tpu.transpose %83, [1, 0] : vector<16x16xf32> -> vector<16x16xf32>
    %cst_36 = arith.constant dense<0.000000e+00> : vector<8x16xf32>
    %86 = tpu.matmul %84, %85, %cst_36 {dimension_numbers = #tpu.dot_dimension_numbers<[1], [0], [0], [1], [0, 0, 1, 1], [], []>} : vector<8x16xf32>, vector<16x16xf32>, vector<8x16xf32> -> vector<8x16xf32>
    %87 = vector.extract_strided_slice %32 {offsets = [24, 0], sizes = [8, 16], strides = [1, 1]} : vector<32x16xf32> to vector<8x16xf32>
    %88 = tpu.transpose %87, [1, 0] : vector<8x16xf32> -> vector<16x8xf32>
    %89 = vector.extract_strided_slice %33 {offsets = [24, 0], sizes = [8, 16], strides = [1, 1]} : vector<32x16xf32> to vector<8x16xf32>
    %cst_37 = arith.constant dense<0.000000e+00> : vector<16x16xf32>
    %90 = tpu.matmul %88, %89, %cst_37 {dimension_numbers = #tpu.dot_dimension_numbers<[1], [0], [0], [1], [0, 0, 1, 1], [], []>} : vector<16x8xf32>, vector<8x16xf32>, vector<16x16xf32> -> vector<16x16xf32>
    %91 = arith.addf %90, %35 : vector<16x16xf32>
    %cst_38 = arith.constant dense<0xFF800000> : vector<16xf32>
    %92 = vector.multi_reduction <maximumf>, %91, %cst_38 [1] : vector<16x16xf32> to vector<16xf32>
    %93 = vector.shape_cast %92 : vector<16xf32> to vector<16x1xf32>
    %94 = vector.broadcast %93 : vector<16x1xf32> to vector<16x16xf32>
    %95 = arith.subf %91, %94 : vector<16x16xf32>
    %96 = math.exp %95 : vector<16x16xf32>
    %cst_39 = arith.constant dense<0.000000e+00> : vector<16xf32>
    %97 = vector.multi_reduction <add>, %96, %cst_39 [1] : vector<16x16xf32> to vector<16xf32>
    %98 = vector.shape_cast %97 : vector<16xf32> to vector<16x1xf32>
    %99 = vector.broadcast %98 : vector<16x1xf32> to vector<16x16xf32>
    %100 = arith.divf %96, %99 : vector<16x16xf32>
    %101 = vector.extract_strided_slice %34 {offsets = [24, 0], sizes = [8, 16], strides = [1, 1]} : vector<32x16xf32> to vector<8x16xf32>
    %102 = tpu.transpose %100, [1, 0] : vector<16x16xf32> -> vector<16x16xf32>
    %cst_40 = arith.constant dense<0.000000e+00> : vector<8x16xf32>
    %103 = tpu.matmul %101, %102, %cst_40 {dimension_numbers = #tpu.dot_dimension_numbers<[1], [0], [0], [1], [0, 0, 1, 1], [], []>} : vector<8x16xf32>, vector<16x16xf32>, vector<8x16xf32> -> vector<8x16xf32>
    %104 = tpu.concatenate %52, %69, %86, %103 in 0 : vector<8x16xf32>, vector<8x16xf32>, vector<8x16xf32>, vector<8x16xf32> -> vector<32x16xf32>
    %105 = tpu.transpose %104, [1, 0] : vector<32x16xf32> -> vector<16x32xf32>
    %c0_41 = arith.constant 0 : index
    %c640 = arith.constant 640 : index
    %106 = vector.load %arg5[%c0_41, %c640] : memref<32x1792xf32, #tpu.memory_space<vmem>>, vector<32x32xf32>
    %cst_42 = arith.constant dense<0.000000e+00> : vector<16x32xf32>
    %107 = tpu.matmul %105, %106, %cst_42 {dimension_numbers = #tpu.dot_dimension_numbers<[1], [0], [0], [1], [0, 0, 1, 1], [], []>} : vector<16x32xf32>, vector<32x32xf32>, vector<16x32xf32> -> vector<16x32xf32>
    %c5 = arith.constant 5 : index
    %c0_43 = arith.constant 0 : index
    %108 = vector.load %arg7[%c5, %c0_43] : memref<21x128xf32, #tpu.memory_space<vmem>>, vector<1x32xf32>
    %109 = vector.broadcast %108 : vector<1x32xf32> to vector<16x32xf32>
    %110 = arith.addf %107, %109 : vector<16x32xf32>
    %111 = arith.addf %0, %110 : vector<16x32xf32>
    %c15 = arith.constant 15 : index
    %c0_44 = arith.constant 0 : index
    %112 = vector.load %arg7[%c15, %c0_44] : memref<21x128xf32, #tpu.memory_space<vmem>>, vector<1x32xf32>
    %c18 = arith.constant 18 : index
    %c0_45 = arith.constant 0 : index
    %113 = vector.load %arg7[%c18, %c0_45] : memref<21x128xf32, #tpu.memory_space<vmem>>, vector<1x32xf32>
    %cst_46 = arith.constant dense<0.000000e+00> : vector<16xf32>
    %114 = vector.multi_reduction <add>, %111, %cst_46 [1] : vector<16x32xf32> to vector<16xf32>
    %115 = vector.shape_cast %114 : vector<16xf32> to vector<16x1xf32>
    %cst_47 = arith.constant 3.200000e+01 : f32
    %116 = vector.broadcast %cst_47 : f32 to vector<16x1xf32>
    %117 = arith.divf %115, %116 : vector<16x1xf32>
    %118 = vector.broadcast %117 : vector<16x1xf32> to vector<16x32xf32>
    %119 = arith.subf %111, %118 : vector<16x32xf32>
    %120 = arith.mulf %119, %119 : vector<16x32xf32>
    %cst_48 = arith.constant dense<0.000000e+00> : vector<16xf32>
    %121 = vector.multi_reduction <add>, %120, %cst_48 [1] : vector<16x32xf32> to vector<16xf32>
    %122 = vector.shape_cast %121 : vector<16xf32> to vector<16x1xf32>
    %cst_49 = arith.constant 3.200000e+01 : f32
    %123 = vector.broadcast %cst_49 : f32 to vector<16x1xf32>
    %124 = arith.divf %122, %123 : vector<16x1xf32>
    %125 = vector.broadcast %117 : vector<16x1xf32> to vector<16x32xf32>
    %126 = arith.subf %111, %125 : vector<16x32xf32>
    %cst_50 = arith.constant 9.99999974E-6 : f32
    %127 = vector.broadcast %cst_50 : f32 to vector<16x1xf32>
    %128 = arith.addf %124, %127 : vector<16x1xf32>
    %129 = math.rsqrt %128 : vector<16x1xf32>
    %130 = vector.broadcast %129 : vector<16x1xf32> to vector<16x32xf32>
    %131 = arith.mulf %126, %130 : vector<16x32xf32>
    %132 = vector.broadcast %112 : vector<1x32xf32> to vector<16x32xf32>
    %133 = arith.mulf %131, %132 : vector<16x32xf32>
    %134 = vector.broadcast %113 : vector<1x32xf32> to vector<16x32xf32>
    %135 = arith.addf %133, %134 : vector<16x32xf32>
    %c0_51 = arith.constant 0 : index
    %c768 = arith.constant 768 : index
    %136 = vector.load %arg5[%c0_51, %c768] : memref<32x1792xf32, #tpu.memory_space<vmem>>, vector<32x32xf32>
    %cst_52 = arith.constant dense<0.000000e+00> : vector<16x32xf32>
    %137 = tpu.matmul %135, %136, %cst_52 {dimension_numbers = #tpu.dot_dimension_numbers<[1], [0], [0], [1], [0, 0, 1, 1], [], []>} : vector<16x32xf32>, vector<32x32xf32>, vector<16x32xf32> -> vector<16x32xf32>
    %c6 = arith.constant 6 : index
    %c0_53 = arith.constant 0 : index
    %138 = vector.load %arg7[%c6, %c0_53] : memref<21x128xf32, #tpu.memory_space<vmem>>, vector<1x32xf32>
    %139 = vector.broadcast %138 : vector<1x32xf32> to vector<16x32xf32>
    %140 = arith.addf %137, %139 : vector<16x32xf32>
    %c0_54 = arith.constant 0 : index
    %c1024 = arith.constant 1024 : index
    %141 = vector.load %arg5[%c0_54, %c1024] : memref<32x1792xf32, #tpu.memory_space<vmem>>, vector<32x32xf32>
    %cst_55 = arith.constant dense<0.000000e+00> : vector<32x32xf32>
    %142 = tpu.matmul %3, %141, %cst_55 {dimension_numbers = #tpu.dot_dimension_numbers<[1], [0], [0], [1], [0, 0, 1, 1], [], []>} : vector<32x32xf32>, vector<32x32xf32>, vector<32x32xf32> -> vector<32x32xf32>
    %c8 = arith.constant 8 : index
    %c0_56 = arith.constant 0 : index
    %143 = vector.load %arg7[%c8, %c0_56] : memref<21x128xf32, #tpu.memory_space<vmem>>, vector<1x32xf32>
    %144 = vector.broadcast %143 : vector<1x32xf32> to vector<32x32xf32>
    %145 = arith.addf %142, %144 : vector<32x32xf32>
    %c0_57 = arith.constant 0 : index
    %c1280 = arith.constant 1280 : index
    %146 = vector.load %arg5[%c0_57, %c1280] : memref<32x1792xf32, #tpu.memory_space<vmem>>, vector<32x32xf32>
    %cst_58 = arith.constant dense<0.000000e+00> : vector<32x32xf32>
    %147 = tpu.matmul %3, %146, %cst_58 {dimension_numbers = #tpu.dot_dimension_numbers<[1], [0], [0], [1], [0, 0, 1, 1], [], []>} : vector<32x32xf32>, vector<32x32xf32>, vector<32x32xf32> -> vector<32x32xf32>
    %c10 = arith.constant 10 : index
    %c0_59 = arith.constant 0 : index
    %148 = vector.load %arg7[%c10, %c0_59] : memref<21x128xf32, #tpu.memory_space<vmem>>, vector<1x32xf32>
    %149 = vector.broadcast %148 : vector<1x32xf32> to vector<32x32xf32>
    %150 = arith.addf %147, %149 : vector<32x32xf32>
    %c0_60 = arith.constant 0 : index
    %c1152 = arith.constant 1152 : index
    %151 = vector.load %arg5[%c0_60, %c1152] : memref<32x1792xf32, #tpu.memory_space<vmem>>, vector<32x32xf32>
    %cst_61 = arith.constant dense<0.000000e+00> : vector<32x32xf32>
    %152 = tpu.matmul %4, %151, %cst_61 {dimension_numbers = #tpu.dot_dimension_numbers<[1], [0], [0], [1], [0, 0, 1, 1], [], []>} : vector<32x32xf32>, vector<32x32xf32>, vector<32x32xf32> -> vector<32x32xf32>
    %c9 = arith.constant 9 : index
    %c0_62 = arith.constant 0 : index
    %153 = vector.load %arg7[%c9, %c0_62] : memref<21x128xf32, #tpu.memory_space<vmem>>, vector<1x32xf32>
    %154 = vector.broadcast %153 : vector<1x32xf32> to vector<32x32xf32>
    %155 = arith.addf %152, %154 : vector<32x32xf32>
    %c0_63 = arith.constant 0 : index
    %c1408 = arith.constant 1408 : index
    %156 = vector.load %arg5[%c0_63, %c1408] : memref<32x1792xf32, #tpu.memory_space<vmem>>, vector<32x32xf32>
    %cst_64 = arith.constant dense<0.000000e+00> : vector<16x32xf32>
    %157 = tpu.matmul %2, %156, %cst_64 {dimension_numbers = #tpu.dot_dimension_numbers<[1], [0], [0], [1], [0, 0, 1, 1], [], []>} : vector<16x32xf32>, vector<32x32xf32>, vector<16x32xf32> -> vector<16x32xf32>
    %c11 = arith.constant 11 : index
    %c0_65 = arith.constant 0 : index
    %158 = vector.load %arg7[%c11, %c0_65] : memref<21x128xf32, #tpu.memory_space<vmem>>, vector<1x32xf32>
    %159 = vector.broadcast %158 : vector<1x32xf32> to vector<16x32xf32>
    %160 = arith.addf %157, %159 : vector<16x32xf32>
    %c0_66 = arith.constant 0 : index
    %c896 = arith.constant 896 : index
    %161 = vector.load %arg5[%c0_66, %c896] : memref<32x1792xf32, #tpu.memory_space<vmem>>, vector<32x32xf32>
    %cst_67 = arith.constant dense<0.000000e+00> : vector<16x32xf32>
    %162 = tpu.matmul %1, %161, %cst_67 {dimension_numbers = #tpu.dot_dimension_numbers<[1], [0], [0], [1], [0, 0, 1, 1], [], []>} : vector<16x32xf32>, vector<32x32xf32>, vector<16x32xf32> -> vector<16x32xf32>
    %c7 = arith.constant 7 : index
    %c0_68 = arith.constant 0 : index
    %163 = vector.load %arg7[%c7, %c0_68] : memref<21x128xf32, #tpu.memory_space<vmem>>, vector<1x32xf32>
    %164 = vector.broadcast %163 : vector<1x32xf32> to vector<16x32xf32>
    %165 = arith.addf %162, %164 : vector<16x32xf32>
    %166 = arith.addf %140, %165 : vector<16x32xf32>
    %167 = arith.addf %145, %155 : vector<32x32xf32>
    %168 = tpu.transpose %166, [1, 0] : vector<16x32xf32> -> vector<32x16xf32>
    %169 = tpu.transpose %160, [1, 0] : vector<16x32xf32> -> vector<32x16xf32>
    %170 = tpu.transpose %167, [1, 0] : vector<32x32xf32> -> vector<32x32xf32>
    %171 = tpu.transpose %155, [1, 0] : vector<32x32xf32> -> vector<32x32xf32>
    %172 = tpu.transpose %150, [1, 0] : vector<32x32xf32> -> vector<32x32xf32>
    %c0_69 = arith.constant 0 : index
    %c0_70 = arith.constant 0 : index
    %173 = vector.load %arg4[%c0_69, %c0_70] : memref<16x32xf32, #tpu.memory_space<vmem>>, vector<16x32xf32>
    %174 = vector.extract_strided_slice %168 {offsets = [0, 0], sizes = [8, 16], strides = [1, 1]} : vector<32x16xf32> to vector<8x16xf32>
    %175 = tpu.transpose %174, [1, 0] : vector<8x16xf32> -> vector<16x8xf32>
    %176 = vector.extract_strided_slice %170 {offsets = [0, 0], sizes = [8, 32], strides = [1, 1]} : vector<32x32xf32> to vector<8x32xf32>
    %cst_71 = arith.constant dense<0.000000e+00> : vector<16x32xf32>
    %177 = tpu.matmul %175, %176, %cst_71 {dimension_numbers = #tpu.dot_dimension_numbers<[1], [0], [0], [1], [0, 0, 1, 1], [], []>} : vector<16x8xf32>, vector<8x32xf32>, vector<16x32xf32> -> vector<16x32xf32>
    %178 = vector.extract_strided_slice %169 {offsets = [0, 0], sizes = [8, 16], strides = [1, 1]} : vector<32x16xf32> to vector<8x16xf32>
    %179 = tpu.transpose %178, [1, 0] : vector<8x16xf32> -> vector<16x8xf32>
    %180 = vector.extract_strided_slice %171 {offsets = [0, 0], sizes = [8, 32], strides = [1, 1]} : vector<32x32xf32> to vector<8x32xf32>
    %cst_72 = arith.constant dense<0.000000e+00> : vector<16x32xf32>
    %181 = tpu.matmul %179, %180, %cst_72 {dimension_numbers = #tpu.dot_dimension_numbers<[1], [0], [0], [1], [0, 0, 1, 1], [], []>} : vector<16x8xf32>, vector<8x32xf32>, vector<16x32xf32> -> vector<16x32xf32>
    %182 = arith.addf %177, %181 : vector<16x32xf32>
    %183 = arith.addf %182, %173 : vector<16x32xf32>
    %cst_73 = arith.constant dense<0xFF800000> : vector<16xf32>
    %184 = vector.multi_reduction <maximumf>, %183, %cst_73 [1] : vector<16x32xf32> to vector<16xf32>
    %185 = vector.shape_cast %184 : vector<16xf32> to vector<16x1xf32>
    %186 = vector.broadcast %185 : vector<16x1xf32> to vector<16x32xf32>
    %187 = arith.subf %183, %186 : vector<16x32xf32>
    %188 = math.exp %187 : vector<16x32xf32>
    %cst_74 = arith.constant dense<0.000000e+00> : vector<16xf32>
    %189 = vector.multi_reduction <add>, %188, %cst_74 [1] : vector<16x32xf32> to vector<16xf32>
    %190 = vector.shape_cast %189 : vector<16xf32> to vector<16x1xf32>
    %191 = vector.broadcast %190 : vector<16x1xf32> to vector<16x32xf32>
    %192 = arith.divf %188, %191 : vector<16x32xf32>
    %193 = vector.extract_strided_slice %172 {offsets = [0, 0], sizes = [8, 32], strides = [1, 1]} : vector<32x32xf32> to vector<8x32xf32>
    %194 = tpu.transpose %192, [1, 0] : vector<16x32xf32> -> vector<32x16xf32>
    %cst_75 = arith.constant dense<0.000000e+00> : vector<8x16xf32>
    %195 = tpu.matmul %193, %194, %cst_75 {dimension_numbers = #tpu.dot_dimension_numbers<[1], [0], [0], [1], [0, 0, 1, 1], [], []>} : vector<8x32xf32>, vector<32x16xf32>, vector<8x16xf32> -> vector<8x16xf32>
    %196 = vector.extract_strided_slice %168 {offsets = [8, 0], sizes = [8, 16], strides = [1, 1]} : vector<32x16xf32> to vector<8x16xf32>
    %197 = tpu.transpose %196, [1, 0] : vector<8x16xf32> -> vector<16x8xf32>
    %198 = vector.extract_strided_slice %170 {offsets = [8, 0], sizes = [8, 32], strides = [1, 1]} : vector<32x32xf32> to vector<8x32xf32>
    %cst_76 = arith.constant dense<0.000000e+00> : vector<16x32xf32>
    %199 = tpu.matmul %197, %198, %cst_76 {dimension_numbers = #tpu.dot_dimension_numbers<[1], [0], [0], [1], [0, 0, 1, 1], [], []>} : vector<16x8xf32>, vector<8x32xf32>, vector<16x32xf32> -> vector<16x32xf32>
    %200 = vector.extract_strided_slice %169 {offsets = [8, 0], sizes = [8, 16], strides = [1, 1]} : vector<32x16xf32> to vector<8x16xf32>
    %201 = tpu.transpose %200, [1, 0] : vector<8x16xf32> -> vector<16x8xf32>
    %202 = vector.extract_strided_slice %171 {offsets = [8, 0], sizes = [8, 32], strides = [1, 1]} : vector<32x32xf32> to vector<8x32xf32>
    %cst_77 = arith.constant dense<0.000000e+00> : vector<16x32xf32>
    %203 = tpu.matmul %201, %202, %cst_77 {dimension_numbers = #tpu.dot_dimension_numbers<[1], [0], [0], [1], [0, 0, 1, 1], [], []>} : vector<16x8xf32>, vector<8x32xf32>, vector<16x32xf32> -> vector<16x32xf32>
    %204 = arith.addf %199, %203 : vector<16x32xf32>
    %205 = arith.addf %204, %173 : vector<16x32xf32>
    %cst_78 = arith.constant dense<0xFF800000> : vector<16xf32>
    %206 = vector.multi_reduction <maximumf>, %205, %cst_78 [1] : vector<16x32xf32> to vector<16xf32>
    %207 = vector.shape_cast %206 : vector<16xf32> to vector<16x1xf32>
    %208 = vector.broadcast %207 : vector<16x1xf32> to vector<16x32xf32>
    %209 = arith.subf %205, %208 : vector<16x32xf32>
    %210 = math.exp %209 : vector<16x32xf32>
    %cst_79 = arith.constant dense<0.000000e+00> : vector<16xf32>
    %211 = vector.multi_reduction <add>, %210, %cst_79 [1] : vector<16x32xf32> to vector<16xf32>
    %212 = vector.shape_cast %211 : vector<16xf32> to vector<16x1xf32>
    %213 = vector.broadcast %212 : vector<16x1xf32> to vector<16x32xf32>
    %214 = arith.divf %210, %213 : vector<16x32xf32>
    %215 = vector.extract_strided_slice %172 {offsets = [8, 0], sizes = [8, 32], strides = [1, 1]} : vector<32x32xf32> to vector<8x32xf32>
    %216 = tpu.transpose %214, [1, 0] : vector<16x32xf32> -> vector<32x16xf32>
    %cst_80 = arith.constant dense<0.000000e+00> : vector<8x16xf32>
    %217 = tpu.matmul %215, %216, %cst_80 {dimension_numbers = #tpu.dot_dimension_numbers<[1], [0], [0], [1], [0, 0, 1, 1], [], []>} : vector<8x32xf32>, vector<32x16xf32>, vector<8x16xf32> -> vector<8x16xf32>
    %218 = vector.extract_strided_slice %168 {offsets = [16, 0], sizes = [8, 16], strides = [1, 1]} : vector<32x16xf32> to vector<8x16xf32>
    %219 = tpu.transpose %218, [1, 0] : vector<8x16xf32> -> vector<16x8xf32>
    %220 = vector.extract_strided_slice %170 {offsets = [16, 0], sizes = [8, 32], strides = [1, 1]} : vector<32x32xf32> to vector<8x32xf32>
    %cst_81 = arith.constant dense<0.000000e+00> : vector<16x32xf32>
    %221 = tpu.matmul %219, %220, %cst_81 {dimension_numbers = #tpu.dot_dimension_numbers<[1], [0], [0], [1], [0, 0, 1, 1], [], []>} : vector<16x8xf32>, vector<8x32xf32>, vector<16x32xf32> -> vector<16x32xf32>
    %222 = vector.extract_strided_slice %169 {offsets = [16, 0], sizes = [8, 16], strides = [1, 1]} : vector<32x16xf32> to vector<8x16xf32>
    %223 = tpu.transpose %222, [1, 0] : vector<8x16xf32> -> vector<16x8xf32>
    %224 = vector.extract_strided_slice %171 {offsets = [16, 0], sizes = [8, 32], strides = [1, 1]} : vector<32x32xf32> to vector<8x32xf32>
    %cst_82 = arith.constant dense<0.000000e+00> : vector<16x32xf32>
    %225 = tpu.matmul %223, %224, %cst_82 {dimension_numbers = #tpu.dot_dimension_numbers<[1], [0], [0], [1], [0, 0, 1, 1], [], []>} : vector<16x8xf32>, vector<8x32xf32>, vector<16x32xf32> -> vector<16x32xf32>
    %226 = arith.addf %221, %225 : vector<16x32xf32>
    %227 = arith.addf %226, %173 : vector<16x32xf32>
    %cst_83 = arith.constant dense<0xFF800000> : vector<16xf32>
    %228 = vector.multi_reduction <maximumf>, %227, %cst_83 [1] : vector<16x32xf32> to vector<16xf32>
    %229 = vector.shape_cast %228 : vector<16xf32> to vector<16x1xf32>
    %230 = vector.broadcast %229 : vector<16x1xf32> to vector<16x32xf32>
    %231 = arith.subf %227, %230 : vector<16x32xf32>
    %232 = math.exp %231 : vector<16x32xf32>
    %cst_84 = arith.constant dense<0.000000e+00> : vector<16xf32>
    %233 = vector.multi_reduction <add>, %232, %cst_84 [1] : vector<16x32xf32> to vector<16xf32>
    %234 = vector.shape_cast %233 : vector<16xf32> to vector<16x1xf32>
    %235 = vector.broadcast %234 : vector<16x1xf32> to vector<16x32xf32>
    %236 = arith.divf %232, %235 : vector<16x32xf32>
    %237 = vector.extract_strided_slice %172 {offsets = [16, 0], sizes = [8, 32], strides = [1, 1]} : vector<32x32xf32> to vector<8x32xf32>
    %238 = tpu.transpose %236, [1, 0] : vector<16x32xf32> -> vector<32x16xf32>
    %cst_85 = arith.constant dense<0.000000e+00> : vector<8x16xf32>
    %239 = tpu.matmul %237, %238, %cst_85 {dimension_numbers = #tpu.dot_dimension_numbers<[1], [0], [0], [1], [0, 0, 1, 1], [], []>} : vector<8x32xf32>, vector<32x16xf32>, vector<8x16xf32> -> vector<8x16xf32>
    %240 = vector.extract_strided_slice %168 {offsets = [24, 0], sizes = [8, 16], strides = [1, 1]} : vector<32x16xf32> to vector<8x16xf32>
    %241 = tpu.transpose %240, [1, 0] : vector<8x16xf32> -> vector<16x8xf32>
    %242 = vector.extract_strided_slice %170 {offsets = [24, 0], sizes = [8, 32], strides = [1, 1]} : vector<32x32xf32> to vector<8x32xf32>
    %cst_86 = arith.constant dense<0.000000e+00> : vector<16x32xf32>
    %243 = tpu.matmul %241, %242, %cst_86 {dimension_numbers = #tpu.dot_dimension_numbers<[1], [0], [0], [1], [0, 0, 1, 1], [], []>} : vector<16x8xf32>, vector<8x32xf32>, vector<16x32xf32> -> vector<16x32xf32>
    %244 = vector.extract_strided_slice %169 {offsets = [24, 0], sizes = [8, 16], strides = [1, 1]} : vector<32x16xf32> to vector<8x16xf32>
    %245 = tpu.transpose %244, [1, 0] : vector<8x16xf32> -> vector<16x8xf32>
    %246 = vector.extract_strided_slice %171 {offsets = [24, 0], sizes = [8, 32], strides = [1, 1]} : vector<32x32xf32> to vector<8x32xf32>
    %cst_87 = arith.constant dense<0.000000e+00> : vector<16x32xf32>
    %247 = tpu.matmul %245, %246, %cst_87 {dimension_numbers = #tpu.dot_dimension_numbers<[1], [0], [0], [1], [0, 0, 1, 1], [], []>} : vector<16x8xf32>, vector<8x32xf32>, vector<16x32xf32> -> vector<16x32xf32>
    %248 = arith.addf %243, %247 : vector<16x32xf32>
    %249 = arith.addf %248, %173 : vector<16x32xf32>
    %cst_88 = arith.constant dense<0xFF800000> : vector<16xf32>
    %250 = vector.multi_reduction <maximumf>, %249, %cst_88 [1] : vector<16x32xf32> to vector<16xf32>
    %251 = vector.shape_cast %250 : vector<16xf32> to vector<16x1xf32>
    %252 = vector.broadcast %251 : vector<16x1xf32> to vector<16x32xf32>
    %253 = arith.subf %249, %252 : vector<16x32xf32>
    %254 = math.exp %253 : vector<16x32xf32>
    %cst_89 = arith.constant dense<0.000000e+00> : vector<16xf32>
    %255 = vector.multi_reduction <add>, %254, %cst_89 [1] : vector<16x32xf32> to vector<16xf32>
    %256 = vector.shape_cast %255 : vector<16xf32> to vector<16x1xf32>
    %257 = vector.broadcast %256 : vector<16x1xf32> to vector<16x32xf32>
    %258 = arith.divf %254, %257 : vector<16x32xf32>
    %259 = vector.extract_strided_slice %172 {offsets = [24, 0], sizes = [8, 32], strides = [1, 1]} : vector<32x32xf32> to vector<8x32xf32>
    %260 = tpu.transpose %258, [1, 0] : vector<16x32xf32> -> vector<32x16xf32>
    %cst_90 = arith.constant dense<0.000000e+00> : vector<8x16xf32>
    %261 = tpu.matmul %259, %260, %cst_90 {dimension_numbers = #tpu.dot_dimension_numbers<[1], [0], [0], [1], [0, 0, 1, 1], [], []>} : vector<8x32xf32>, vector<32x16xf32>, vector<8x16xf32> -> vector<8x16xf32>
    %262 = tpu.concatenate %195, %217, %239, %261 in 0 : vector<8x16xf32>, vector<8x16xf32>, vector<8x16xf32>, vector<8x16xf32> -> vector<32x16xf32>
    %263 = tpu.transpose %262, [1, 0] : vector<32x16xf32> -> vector<16x32xf32>
    %c0_91 = arith.constant 0 : index
    %c1536 = arith.constant 1536 : index
    %264 = vector.load %arg5[%c0_91, %c1536] : memref<32x1792xf32, #tpu.memory_space<vmem>>, vector<32x32xf32>
    %cst_92 = arith.constant dense<0.000000e+00> : vector<16x32xf32>
    %265 = tpu.matmul %263, %264, %cst_92 {dimension_numbers = #tpu.dot_dimension_numbers<[1], [0], [0], [1], [0, 0, 1, 1], [], []>} : vector<16x32xf32>, vector<32x32xf32>, vector<16x32xf32> -> vector<16x32xf32>
    %c12 = arith.constant 12 : index
    %c0_93 = arith.constant 0 : index
    %266 = vector.load %arg7[%c12, %c0_93] : memref<21x128xf32, #tpu.memory_space<vmem>>, vector<1x32xf32>
    %267 = vector.broadcast %266 : vector<1x32xf32> to vector<16x32xf32>
    %268 = arith.addf %265, %267 : vector<16x32xf32>
    %269 = arith.addf %135, %268 : vector<16x32xf32>
    %c16_94 = arith.constant 16 : index
    %c0_95 = arith.constant 0 : index
    %270 = vector.load %arg7[%c16_94, %c0_95] : memref<21x128xf32, #tpu.memory_space<vmem>>, vector<1x32xf32>
    %c19 = arith.constant 19 : index
    %c0_96 = arith.constant 0 : index
    %271 = vector.load %arg7[%c19, %c0_96] : memref<21x128xf32, #tpu.memory_space<vmem>>, vector<1x32xf32>
    %cst_97 = arith.constant dense<0.000000e+00> : vector<16xf32>
    %272 = vector.multi_reduction <add>, %269, %cst_97 [1] : vector<16x32xf32> to vector<16xf32>
    %273 = vector.shape_cast %272 : vector<16xf32> to vector<16x1xf32>
    %cst_98 = arith.constant 3.200000e+01 : f32
    %274 = vector.broadcast %cst_98 : f32 to vector<16x1xf32>
    %275 = arith.divf %273, %274 : vector<16x1xf32>
    %276 = vector.broadcast %275 : vector<16x1xf32> to vector<16x32xf32>
    %277 = arith.subf %269, %276 : vector<16x32xf32>
    %278 = arith.mulf %277, %277 : vector<16x32xf32>
    %cst_99 = arith.constant dense<0.000000e+00> : vector<16xf32>
    %279 = vector.multi_reduction <add>, %278, %cst_99 [1] : vector<16x32xf32> to vector<16xf32>
    %280 = vector.shape_cast %279 : vector<16xf32> to vector<16x1xf32>
    %cst_100 = arith.constant 3.200000e+01 : f32
    %281 = vector.broadcast %cst_100 : f32 to vector<16x1xf32>
    %282 = arith.divf %280, %281 : vector<16x1xf32>
    %283 = vector.broadcast %275 : vector<16x1xf32> to vector<16x32xf32>
    %284 = arith.subf %269, %283 : vector<16x32xf32>
    %cst_101 = arith.constant 9.99999974E-6 : f32
    %285 = vector.broadcast %cst_101 : f32 to vector<16x1xf32>
    %286 = arith.addf %282, %285 : vector<16x1xf32>
    %287 = math.rsqrt %286 : vector<16x1xf32>
    %288 = vector.broadcast %287 : vector<16x1xf32> to vector<16x32xf32>
    %289 = arith.mulf %284, %288 : vector<16x32xf32>
    %290 = vector.broadcast %270 : vector<1x32xf32> to vector<16x32xf32>
    %291 = arith.mulf %289, %290 : vector<16x32xf32>
    %292 = vector.broadcast %271 : vector<1x32xf32> to vector<16x32xf32>
    %293 = arith.addf %291, %292 : vector<16x32xf32>
    %c0_102 = arith.constant 0 : index
    %c1664 = arith.constant 1664 : index
    %294 = vector.load %arg5[%c0_102, %c1664] : memref<32x1792xf32, #tpu.memory_space<vmem>>, vector<32x64xf32>
    %cst_103 = arith.constant dense<0.000000e+00> : vector<16x64xf32>
    %295 = tpu.matmul %293, %294, %cst_103 {dimension_numbers = #tpu.dot_dimension_numbers<[1], [0], [0], [1], [0, 0, 1, 1], [], []>} : vector<16x32xf32>, vector<32x64xf32>, vector<16x64xf32> -> vector<16x64xf32>
    %c13 = arith.constant 13 : index
    %c0_104 = arith.constant 0 : index
    %296 = vector.load %arg7[%c13, %c0_104] : memref<21x128xf32, #tpu.memory_space<vmem>>, vector<1x64xf32>
    %297 = vector.broadcast %296 : vector<1x64xf32> to vector<16x64xf32>
    %298 = arith.addf %295, %297 : vector<16x64xf32>
    %cst_105 = arith.constant 0.000000e+00 : f32
    %299 = vector.broadcast %cst_105 : f32 to vector<16x64xf32>
    %300 = arith.maximumf %298, %299 : vector<16x64xf32>
    %c0_106 = arith.constant 0 : index
    %c0_107 = arith.constant 0 : index
    %301 = vector.load %arg6[%c0_106, %c0_107] : memref<64x32xf32, #tpu.memory_space<vmem>>, vector<64x32xf32>
    %cst_108 = arith.constant dense<0.000000e+00> : vector<16x32xf32>
    %302 = tpu.matmul %300, %301, %cst_108 {dimension_numbers = #tpu.dot_dimension_numbers<[1], [0], [0], [1], [0, 0, 1, 1], [], []>} : vector<16x64xf32>, vector<64x32xf32>, vector<16x32xf32> -> vector<16x32xf32>
    %c14 = arith.constant 14 : index
    %c0_109 = arith.constant 0 : index
    %303 = vector.load %arg7[%c14, %c0_109] : memref<21x128xf32, #tpu.memory_space<vmem>>, vector<1x32xf32>
    %304 = vector.broadcast %303 : vector<1x32xf32> to vector<16x32xf32>
    %305 = arith.addf %302, %304 : vector<16x32xf32>
    %306 = arith.addf %293, %305 : vector<16x32xf32>
    %c17 = arith.constant 17 : index
    %c0_110 = arith.constant 0 : index
    %307 = vector.load %arg7[%c17, %c0_110] : memref<21x128xf32, #tpu.memory_space<vmem>>, vector<1x32xf32>
    %c20 = arith.constant 20 : index
    %c0_111 = arith.constant 0 : index
    %308 = vector.load %arg7[%c20, %c0_111] : memref<21x128xf32, #tpu.memory_space<vmem>>, vector<1x32xf32>
    %cst_112 = arith.constant dense<0.000000e+00> : vector<16xf32>
    %309 = vector.multi_reduction <add>, %306, %cst_112 [1] : vector<16x32xf32> to vector<16xf32>
    %310 = vector.shape_cast %309 : vector<16xf32> to vector<16x1xf32>
    %cst_113 = arith.constant 3.200000e+01 : f32
    %311 = vector.broadcast %cst_113 : f32 to vector<16x1xf32>
    %312 = arith.divf %310, %311 : vector<16x1xf32>
    %313 = vector.broadcast %312 : vector<16x1xf32> to vector<16x32xf32>
    %314 = arith.subf %306, %313 : vector<16x32xf32>
    %315 = arith.mulf %314, %314 : vector<16x32xf32>
    %cst_114 = arith.constant dense<0.000000e+00> : vector<16xf32>
    %316 = vector.multi_reduction <add>, %315, %cst_114 [1] : vector<16x32xf32> to vector<16xf32>
    %317 = vector.shape_cast %316 : vector<16xf32> to vector<16x1xf32>
    %cst_115 = arith.constant 3.200000e+01 : f32
    %318 = vector.broadcast %cst_115 : f32 to vector<16x1xf32>
    %319 = arith.divf %317, %318 : vector<16x1xf32>
    %320 = vector.broadcast %312 : vector<16x1xf32> to vector<16x32xf32>
    %321 = arith.subf %306, %320 : vector<16x32xf32>
    %cst_116 = arith.constant 9.99999974E-6 : f32
    %322 = vector.broadcast %cst_116 : f32 to vector<16x1xf32>
    %323 = arith.addf %319, %322 : vector<16x1xf32>
    %324 = math.rsqrt %323 : vector<16x1xf32>
    %325 = vector.broadcast %324 : vector<16x1xf32> to vector<16x32xf32>
    %326 = arith.mulf %321, %325 : vector<16x32xf32>
    %327 = vector.broadcast %307 : vector<1x32xf32> to vector<16x32xf32>
    %328 = arith.mulf %326, %327 : vector<16x32xf32>
    %329 = vector.broadcast %308 : vector<1x32xf32> to vector<16x32xf32>
    %330 = arith.addf %328, %329 : vector<16x32xf32>
    %c0_117 = arith.constant 0 : index
    %c0_118 = arith.constant 0 : index
    %331 = vector.load %arg8[%c0_117, %c0_118] : memref<16x32xf32, #tpu.memory_space<vmem>>, vector<16x32xf32>
    tpu.vector_store %arg8[%c0_117, %c0_118], %330 {strides = array<i32>} : memref<16x32xf32, #tpu.memory_space<vmem>>, vector<16x32xf32>,
    return
  }
  func.func @transform_0(%arg0: i32) -> (i32, i32) {
    %c0_i32 = arith.constant 0 : i32
    %c0_i32_0 = arith.constant 0 : i32
    %c0_i32_1 = arith.constant 0 : i32
    return %c0_i32, %c0_i32_0 : i32, i32
  }
  func.func @transform_1(%arg0: i32) -> (i32, i32) {
    %c0_i32 = arith.constant 0 : i32
    %c0_i32_0 = arith.constant 0 : i32
    %c0_i32_1 = arith.constant 0 : i32
    return %c0_i32, %c0_i32_0 : i32, i32
  }
  func.func @transform_2(%arg0: i32) -> (i32, i32) {
    %c0_i32 = arith.constant 0 : i32
    %c0_i32_0 = arith.constant 0 : i32
    %c0_i32_1 = arith.constant 0 : i32
    return %c0_i32, %c0_i32_0 : i32, i32
  }
  func.func @transform_3(%arg0: i32) -> (i32, i32) {
    %c0_i32 = arith.constant 0 : i32
    %c0_i32_0 = arith.constant 0 : i32
    %c0_i32_1 = arith.constant 0 : i32
    return %c0_i32, %c0_i32_0 : i32, i32
  }
  func.func @transform_4(%arg0: i32) -> (i32, i32) {
    %c0_i32 = arith.constant 0 : i32
    %c0_i32_0 = arith.constant 0 : i32
    %c0_i32_1 = arith.constant 0 : i32
    return %c0_i32, %c0_i32_0 : i32, i32
  }
  func.func @transform_5(%arg0: i32) -> (i32, i32) {
    %c0_i32 = arith.constant 0 : i32
    %c0_i32_0 = arith.constant 0 : i32
    %c0_i32_1 = arith.constant 0 : i32
    return %c0_i32, %c0_i32_0 : i32, i32
  }
  func.func @transform_6(%arg0: i32) -> (i32, i32) {
    %c0_i32 = arith.constant 0 : i32
    %c0_i32_0 = arith.constant 0 : i32
    %c0_i32_1 = arith.constant 0 : i32
    return %c0_i32, %c0_i32_0 : i32, i32
  }
  func.func @transform_7(%arg0: i32) -> (i32, i32) {
    %c0_i32 = arith.constant 0 : i32
    %c0_i32_0 = arith.constant 0 : i32
    %c0_i32_1 = arith.constant 0 : i32
    return %c0_i32, %c0_i32_0 : i32, i32
  }
}

</mosaic_0001>

<llo_original>
// kernel: tpu_custom_call.1
$region0: #{tpu_custom_call.1}
  #allocation0 [shape = 'u32[]', space=smem, size = 0x4, offset = 0x4, fixed_abs, tag = 'smem constant byte address 0x4 - core index']
  #allocation1 [shape = 'u32[72,128]{1,0:T(1,128)}', space=vmem, size = 0x9000, scoped, tag = 'internal scratch']
  %s0 = inlined_call_operand.vmem [shape: f32[48,32], index: 0, kind: input, shape index: {}]
  %s1 = inlined_call_operand.vmem [shape: f32[64,32], index: 1, kind: input, shape index: {}]
  %s2 = inlined_call_operand.vmem [shape: f32[16,16], index: 2, kind: input, shape index: {}]
  %s3 = inlined_call_operand.vmem [shape: f32[16,32], index: 3, kind: input, shape index: {}]
  %s4 = inlined_call_operand.hbm [shape: f32[32,1792], index: 4, kind: input, shape index: {}]
  %s5 = inlined_call_operand.vmem [shape: f32[64,32], index: 5, kind: input, shape index: {}]
  %s6 = inlined_call_operand.vmem [shape: f32[21,128], index: 6, kind: input, shape index: {}]
  %s7 = inlined_call_operand.hbm [shape: f32[16,32], index: 7, kind: output, shape index: {}]
  %s8 = sld [smem:[#allocation0]]
  $region42: #{tpu_custom_call.1} parent=0
    _
  %s10 = ssub.s32 1, %s8
  %s11 = scalar_select 0, %s10, %s8
  $region1: #{tpu_custom_call.1} parent=0
    #allocation2 [shape = 'u8[229376]{0}', space=vmem, size = 0x38000, scoped, tag = 'input window, operand 4, single buffered']
    #allocation3 [shape = 's32[1]{0}', space=sflag, size = 0x4, scoped, tag = 'scoped memory for tpu_custom_call.1']
    #allocation4 [shape = 's32[1]{0}', space=sflag, size = 0x4, scoped, tag = 'scoped memory for tpu_custom_call.1']
    #allocation5 [shape = 'u8[8192]{0}', space=vmem, size = 0x2000, scoped, tag = 'output window, operand 0, single buffered']
    %12 = vsyncpa [#allocation3], 0
    %13 = vsyncpa [#allocation4], 0
    // Predicated region
    $region2: #{tpu_custom_call.1} parent=1 // pred_check
      _
    $region3: #{tpu_custom_call.1} parent=1 // pred_check_branch
      %15 = sbr.rel (0) target = $region5
    $region4: #{tpu_custom_call.1} parent=1 // pred_region
      _
    $region5: #{tpu_custom_call.1} parent=1 // pred_fallthru
      _
    // Predicated region
    $region6: #{tpu_custom_call.1} parent=1 // pred_check
      _
    $region7: #{tpu_custom_call.1} parent=1 // pred_check_branch
      %17 = sbr.rel (0) target = $region9
    $region8: #{tpu_custom_call.1} parent=1 // pred_region
      _
    $region9: #{tpu_custom_call.1} parent=1 // pred_fallthru
      _
    // Predicated region
    $region10: #{tpu_custom_call.1} parent=1 // pred_check
      _
    $region11: #{tpu_custom_call.1} parent=1 // pred_check_branch
      %19 = sbr.rel (0) target = $region13
    $region12: #{tpu_custom_call.1} parent=1 // pred_region
      _
    $region13: #{tpu_custom_call.1} parent=1 // pred_fallthru
      _
    // Predicated region
    $region14: #{tpu_custom_call.1} parent=1 // pred_check
      _
    $region15: #{tpu_custom_call.1} parent=1 // pred_check_branch
      %21 = sbr.rel (0) target = $region17
    $region16: #{tpu_custom_call.1} parent=1 // pred_region
      _
    $region17: #{tpu_custom_call.1} parent=1 // pred_fallthru
      _
    // Predicated region
    $region18: #{tpu_custom_call.1} parent=1 // pred_check
      _
    $region19: #{tpu_custom_call.1} parent=1 // pred_check_branch
      %23 = sbr.rel (0) target = $region21
    $region20: #{tpu_custom_call.1} parent=1 // pred_region
      %25 = vsyncadd [#allocation3], 0
      %s26 = sshll.u32 %s4, 4
      %s27 = int_to_ptr.hbm [resolvable:$true] %s26
      %s28 = sshll.u32 [#allocation2], 4
      %s29 = int_to_ptr.vmem [resolvable:$true] %s28
      %34 = dma.hbm_to_vmem [thread:$0]  %s27, 7168, %s29, [#allocation3], 1792, 1792, 112
    $region21: #{tpu_custom_call.1} parent=1 // pred_fallthru
      _
    // Predicated region
    $region22: #{tpu_custom_call.1} parent=1 // pred_check
      _
    $region23: #{tpu_custom_call.1} parent=1 // pred_check_branch
      %36 = sbr.rel (0) target = $region25
    $region24: #{tpu_custom_call.1} parent=1 // pred_region
      _
    $region25: #{tpu_custom_call.1} parent=1 // pred_fallthru
      _
    // Predicated region
    $region26: #{tpu_custom_call.1} parent=1 // pred_check
      _
    $region27: #{tpu_custom_call.1} parent=1 // pred_check_branch
      %38 = sbr.rel (0) target = $region29
    $region28: #{tpu_custom_call.1} parent=1 // pred_region
      _
    $region29: #{tpu_custom_call.1} parent=1 // pred_fallthru
      _
    // Predicated region
    $region30: #{tpu_custom_call.1} parent=1 // pred_check
      _
    $region31: #{tpu_custom_call.1} parent=1 // pred_check_branch
      %40 = sbr.rel (0) target = $region33
    $region32: #{tpu_custom_call.1} parent=1 // pred_region
      %42 = dma.done [#allocation3], 7168
    $region33: #{tpu_custom_call.1} parent=1 // pred_fallthru
      _
    %v43 = vld [vmem:[%s0] sm:$0xff]
    %v44 = vld [vmem:[%s0 + $0x8] sm:$0xff]
    %v45 = vld [vmem:[%s0 + $0x10] sm:$0xff]
    %v46 = vld [vmem:[%s0 + $0x18] sm:$0xff]
    %v47 = vld [vmem:[%s0 + $0x20] sm:$0xff]
    %v48 = vld [vmem:[%s0 + $0x28] sm:$0xff]
    %v49 = vld [vmem:[%s1] sm:$0xff]
    %v50 = vld [vmem:[%s1 + $0x8] sm:$0xff]
    %v51 = vld [vmem:[%s1 + $0x10] sm:$0xff]
    %v52 = vld [vmem:[%s1 + $0x18] sm:$0xff]
    %v53 = vld [vmem:[%s1 + $0x20] sm:$0xff]
    %v54 = vld [vmem:[%s1 + $0x28] sm:$0xff]
    %v55 = vld [vmem:[%s1 + $0x30] sm:$0xff]
    %v56 = vld [vmem:[%s1 + $0x38] sm:$0xff]
    %v57 = vld [vmem:[#allocation2] sm:$0xff]
    %v58 = vld [vmem:[#allocation2 + $0x70] sm:$0xff]
    %v59 = vld [vmem:[#allocation2 + $0xe0] sm:$0xff]
    %v60 = vld [vmem:[#allocation2 + $0x150] sm:$0xff]
    %v61 = vld [vmem:[%s6] sm:$0x1]
    %v62 = vperm.slane %v61, 0
    %vm63 = vcmask 261120
    %v65 = vsel %vm63, %v43, 0
    %v68 = vsel %vm63, %v44, 0
    %70 = vmatpush.msra.mxu0 0.0
    %71 = vmatpush.msra.mxu0 0.0
    %72 = vmatpush.msra.mxu0 0.0
    %73 = vmatpush.msra.mxu0 0.0
    %74 = vmatpush.msra.mxu0 0.0
    %75 = vmatpush.msra.mxu0 0.0
    %76 = vmatpush.msra.mxu0 0.0
    %77 = vmatpush.msra.mxu0 0.0
    %78 = vmatpush.msra.mxu0 0.0
    %79 = vmatpush.msra.mxu0 0.0
    %80 = vmatpush.msra.mxu0 0.0
    %81 = vmatpush.msra.mxu0 0.0
    %82 = vmatpush.msra.mxu0 %v60
    %83 = vmatpush.msra.mxu0 %v59
    %84 = vmatpush.msra.mxu0 %v58
    %85 = vmatpush.msra.mxu0 %v57
    %86 = vmatmul.f32.gmra.mxu0 %v65
    %v87 = vpop.f32.mrf.mxu0
    %v88 = vadd.f32 %v62, %v87
    %89 = vmatmul.f32.gmra.mxu0 %v68
    %v90 = vpop.f32.mrf.mxu0
    %v91 = vadd.f32 %v62, %v90
    %92 = vdwg.mxu0
    %v93 = vld [vmem:[#allocation2 + $0x8] sm:$0xff]
    %v94 = vld [vmem:[#allocation2 + $0x78] sm:$0xff]
    %v95 = vld [vmem:[#allocation2 + $0xe8] sm:$0xff]
    %v96 = vld [vmem:[#allocation2 + $0x158] sm:$0xff]
    %v97 = vld [vmem:[%s6 + $0x1] sm:$0x1]
    %v98 = vperm.slane %v97, 0
    %v100 = vsel %vm63, %v45, 0
    %v103 = vsel %vm63, %v46, 0
    %105 = vmatpush.msra.mxu0 0.0
    %106 = vmatpush.msra.mxu0 0.0
    %107 = vmatpush.msra.mxu0 0.0
    %108 = vmatpush.msra.mxu0 0.0
    %109 = vmatpush.msra.mxu0 0.0
    %110 = vmatpush.msra.mxu0 0.0
    %111 = vmatpush.msra.mxu0 0.0
    %112 = vmatpush.msra.mxu0 0.0
    %113 = vmatpush.msra.mxu0 0.0
    %114 = vmatpush.msra.mxu0 0.0
    %115 = vmatpush.msra.mxu0 0.0
    %116 = vmatpush.msra.mxu0 0.0
    %117 = vmatpush.msra.mxu0 %v96
    %118 = vmatpush.msra.mxu0 %v95
    %119 = vmatpush.msra.mxu0 %v94
    %120 = vmatpush.msra.mxu0 %v93
    %121 = vmatmul.f32.gmra.mxu0 %v100
    %v122 = vpop.f32.mrf.mxu0
    %v123 = vadd.f32 %v98, %v122
    %124 = vmatmul.f32.gmra.mxu0 %v103
    %v125 = vpop.f32.mrf.mxu0
    %v126 = vadd.f32 %v98, %v125
    %127 = vdwg.mxu0
    %v128 = vadd.f32 %v88, %v123
    %v129 = vadd.f32 %v91, %v126
    %v130 = vld [vmem:[#allocation2 + $0x10] sm:$0xff]
    %v131 = vld [vmem:[#allocation2 + $0x80] sm:$0xff]
    %v132 = vld [vmem:[#allocation2 + $0xf0] sm:$0xff]
    %v133 = vld [vmem:[#allocation2 + $0x160] sm:$0xff]
    %v134 = vld [vmem:[%s6 + $0x2] sm:$0x1]
    %v135 = vperm.slane %v134, 0
    %136 = vmatpush.msra.mxu0 0.0
    %137 = vmatpush.msra.mxu0 0.0
    %138 = vmatpush.msra.mxu0 0.0
    %139 = vmatpush.msra.mxu0 0.0
    %140 = vmatpush.msra.mxu0 0.0
    %141 = vmatpush.msra.mxu0 0.0
    %142 = vmatpush.msra.mxu0 0.0
    %143 = vmatpush.msra.mxu0 0.0
    %144 = vmatpush.msra.mxu0 0.0
    %145 = vmatpush.msra.mxu0 0.0
    %146 = vmatpush.msra.mxu0 0.0
    %147 = vmatpush.msra.mxu0 0.0
    %148 = vmatpush.msra.mxu0 %v133
    %149 = vmatpush.msra.mxu0 %v132
    %150 = vmatpush.msra.mxu0 %v131
    %151 = vmatpush.msra.mxu0 %v130
    %152 = vmatmul.f32.gmra.mxu0 %v65
    %v153 = vpop.f32.mrf.mxu0
    %v154 = vadd.f32 %v135, %v153
    %155 = vmatmul.f32.gmra.mxu0 %v68
    %v156 = vpop.f32.mrf.mxu0
    %v157 = vadd.f32 %v135, %v156
    %158 = vdwg.mxu0
    %v159 = vld [vmem:[#allocation2 + $0x18] sm:$0xff]
    %v160 = vld [vmem:[#allocation2 + $0x88] sm:$0xff]
    %v161 = vld [vmem:[#allocation2 + $0xf8] sm:$0xff]
    %v162 = vld [vmem:[#allocation2 + $0x168] sm:$0xff]
    %v163 = vld [vmem:[%s6 + $0x3] sm:$0x1]
    %v164 = vperm.slane %v163, 0
    %165 = vmatpush.msra.mxu0 0.0
    %166 = vmatpush.msra.mxu0 0.0
    %167 = vmatpush.msra.mxu0 0.0
    %168 = vmatpush.msra.mxu0 0.0
    %169 = vmatpush.msra.mxu0 0.0
    %170 = vmatpush.msra.mxu0 0.0
    %171 = vmatpush.msra.mxu0 0.0
    %172 = vmatpush.msra.mxu0 0.0
    %173 = vmatpush.msra.mxu0 0.0
    %174 = vmatpush.msra.mxu0 0.0
    %175 = vmatpush.msra.mxu0 0.0
    %176 = vmatpush.msra.mxu0 0.0
    %177 = vmatpush.msra.mxu0 %v162
    %178 = vmatpush.msra.mxu0 %v161
    %179 = vmatpush.msra.mxu0 %v160
    %180 = vmatpush.msra.mxu0 %v159
    %181 = vmatmul.f32.gmra.mxu0 %v100
    %v182 = vpop.f32.mrf.mxu0
    %v183 = vadd.f32 %v164, %v182
    %184 = vmatmul.f32.gmra.mxu0 %v103
    %v185 = vpop.f32.mrf.mxu0
    %v186 = vadd.f32 %v164, %v185
    %187 = vdwg.mxu0
    %v188 = vadd.f32 %v154, %v183
    %v189 = vadd.f32 %v157, %v186
    %v190 = vld [vmem:[#allocation2 + $0x20] sm:$0xff]
    %v191 = vld [vmem:[#allocation2 + $0x90] sm:$0xff]
    %v192 = vld [vmem:[#allocation2 + $0x100] sm:$0xff]
    %v193 = vld [vmem:[#allocation2 + $0x170] sm:$0xff]
    %v194 = vld [vmem:[%s6 + $0x4] sm:$0x1]
    %v195 = vperm.slane %v194, 0
    %196 = vmatpush.msra.mxu0 0.0
    %197 = vmatpush.msra.mxu0 0.0
    %198 = vmatpush.msra.mxu0 0.0
    %199 = vmatpush.msra.mxu0 0.0
    %200 = vmatpush.msra.mxu0 0.0
    %201 = vmatpush.msra.mxu0 0.0
    %202 = vmatpush.msra.mxu0 0.0
    %203 = vmatpush.msra.mxu0 0.0
    %204 = vmatpush.msra.mxu0 0.0
    %205 = vmatpush.msra.mxu0 0.0
    %206 = vmatpush.msra.mxu0 0.0
    %207 = vmatpush.msra.mxu0 0.0
    %208 = vmatpush.msra.mxu0 %v193
    %209 = vmatpush.msra.mxu0 %v192
    %210 = vmatpush.msra.mxu0 %v191
    %211 = vmatpush.msra.mxu0 %v190
    %212 = vmatmul.f32.gmra.mxu0 %v65
    %v213 = vpop.f32.mrf.mxu0
    %v214 = vadd.f32 %v195, %v213
    %215 = vmatmul.f32.gmra.mxu0 %v68
    %v216 = vpop.f32.mrf.mxu0
    %v217 = vadd.f32 %v195, %v216
    %218 = vdwg.mxu0
    %219 = vxpose.xlu0.b32.start [1/16] %v128, 128
    %220 = vxpose.xlu0.b32.cont [2/16] %v129, 128
    %221 = vxpose.xlu0.b32.cont [3/16] 0.0, 128
    %222 = vxpose.xlu0.b32.cont [4/16] 0.0, 128
    %223 = vxpose.xlu0.b32.cont [5/16] 0.0, 128
    %224 = vxpose.xlu0.b32.cont [6/16] 0.0, 128
    %225 = vxpose.xlu0.b32.cont [7/16] 0.0, 128
    %226 = vxpose.xlu0.b32.cont [8/16] 0.0, 128
    %227 = vxpose.xlu0.b32.cont [9/16] 0.0, 128
    %228 = vxpose.xlu0.b32.cont [10/16] 0.0, 128
    %229 = vxpose.xlu0.b32.cont [11/16] 0.0, 128
    %230 = vxpose.xlu0.b32.cont [12/16] 0.0, 128
    %231 = vxpose.xlu0.b32.cont [13/16] 0.0, 128
    %232 = vxpose.xlu0.b32.cont [14/16] 0.0, 128
    %233 = vxpose.xlu0.b32.cont [15/16] 0.0, 128
    %234 = vxpose.xlu0.b32.end [16/16] 0.0, 128
    %v235 = vpop.trf.xlu0
    %v236 = vpop.trf.xlu0
    %v237 = vpop.trf.xlu0
    %v238 = vpop.trf.xlu0
    %v239 = vpop.trf.xlu0
    %v240 = vpop.trf.xlu0
    %v241 = vpop.trf.xlu0
    %v242 = vpop.trf.xlu0
    %v243 = vpop.trf.xlu0
    %v244 = vpop.trf.xlu0
    %v245 = vpop.trf.xlu0
    %v246 = vpop.trf.xlu0
    %v247 = vpop.trf.xlu0
    %v248 = vpop.trf.xlu0
    %v249 = vpop.trf.xlu0
    %v250 = vpop.trf.xlu0
    %251 = vxpose.xlu0.b32.start [1/16] %v214, 128
    %252 = vxpose.xlu0.b32.cont [2/16] %v217, 128
    %253 = vxpose.xlu0.b32.cont [3/16] 0.0, 128
    %254 = vxpose.xlu0.b32.cont [4/16] 0.0, 128
    %255 = vxpose.xlu0.b32.cont [5/16] 0.0, 128
    %256 = vxpose.xlu0.b32.cont [6/16] 0.0, 128
    %257 = vxpose.xlu0.b32.cont [7/16] 0.0, 128
    %258 = vxpose.xlu0.b32.cont [8/16] 0.0, 128
    %259 = vxpose.xlu0.b32.cont [9/16] 0.0, 128
    %260 = vxpose.xlu0.b32.cont [10/16] 0.0, 128
    %261 = vxpose.xlu0.b32.cont [11/16] 0.0, 128
    %262 = vxpose.xlu0.b32.cont [12/16] 0.0, 128
    %263 = vxpose.xlu0.b32.cont [13/16] 0.0, 128
    %264 = vxpose.xlu0.b32.cont [14/16] 0.0, 128
    %265 = vxpose.xlu0.b32.cont [15/16] 0.0, 128
    %266 = vxpose.xlu0.b32.end [16/16] 0.0, 128
    %v267 = vpop.trf.xlu0
    %v268 = vpop.trf.xlu0
    %v269 = vpop.trf.xlu0
    %v270 = vpop.trf.xlu0
    %v271 = vpop.trf.xlu0
    %v272 = vpop.trf.xlu0
    %v273 = vpop.trf.xlu0
    %v274 = vpop.trf.xlu0
    %v275 = vpop.trf.xlu0
    %v276 = vpop.trf.xlu0
    %v277 = vpop.trf.xlu0
    %v278 = vpop.trf.xlu0
    %v279 = vpop.trf.xlu0
    %v280 = vpop.trf.xlu0
    %v281 = vpop.trf.xlu0
    %v282 = vpop.trf.xlu0
    %v283 = vld [vmem:[%s2] sm:$0xff]
    %v284 = vld [vmem:[%s2 + $0x8] sm:$0xff]
    %285 = vxpose.xlu0.b32.start [1/16] %v235, 128
    %286 = vxpose.xlu0.b32.cont [2/16] 0.0, 128
    %287 = vxpose.xlu0.b32.cont [3/16] 0.0, 128
    %288 = vxpose.xlu0.b32.cont [4/16] 0.0, 128
    %289 = vxpose.xlu0.b32.cont [5/16] 0.0, 128
    %290 = vxpose.xlu0.b32.cont [6/16] 0.0, 128
    %291 = vxpose.xlu0.b32.cont [7/16] 0.0, 128
    %292 = vxpose.xlu0.b32.cont [8/16] 0.0, 128
    %293 = vxpose.xlu0.b32.cont [9/16] 0.0, 128
    %294 = vxpose.xlu0.b32.cont [10/16] 0.0, 128
    %295 = vxpose.xlu0.b32.cont [11/16] 0.0, 128
    %296 = vxpose.xlu0.b32.cont [12/16] 0.0, 128
    %297 = vxpose.xlu0.b32.cont [13/16] 0.0, 128
    %298 = vxpose.xlu0.b32.cont [14/16] 0.0, 128
    %299 = vxpose.xlu0.b32.cont [15/16] 0.0, 128
    %300 = vxpose.xlu0.b32.end [16/16] 0.0, 128
    %v301 = vpop.trf.xlu0
    %v302 = vpop.trf.xlu0
    %v303 = vpop.trf.xlu0
    %v304 = vpop.trf.xlu0
    %v305 = vpop.trf.xlu0
    %v306 = vpop.trf.xlu0
    %v307 = vpop.trf.xlu0
    %v308 = vpop.trf.xlu0
    %v309 = vpop.trf.xlu0
    %v310 = vpop.trf.xlu0
    %v311 = vpop.trf.xlu0
    %v312 = vpop.trf.xlu0
    %v313 = vpop.trf.xlu0
    %v314 = vpop.trf.xlu0
    %v315 = vpop.trf.xlu0
    %v316 = vpop.trf.xlu0
    %vm317 = vcmask 64512
    %v319 = vsel %vm317, %v301, 0
    %v322 = vsel %vm317, %v302, 0
    %v325 = vsel %vm317, %v188, 0
    %v328 = vsel %vm317, %v189, 0
    %330 = vmatpush.xpose.msra.mxu0 0.0
    %331 = vmatpush.xpose.msra.mxu0 0.0
    %332 = vmatpush.xpose.msra.mxu0 0.0
    %333 = vmatpush.xpose.msra.mxu0 0.0
    %334 = vmatpush.xpose.msra.mxu0 0.0
    %335 = vmatpush.xpose.msra.mxu0 0.0
    %336 = vmatpush.xpose.msra.mxu0 0.0
    %337 = vmatpush.xpose.msra.mxu0 0.0
    %338 = vmatpush.xpose.msra.mxu0 0.0
    %339 = vmatpush.xpose.msra.mxu0 0.0
    %340 = vmatpush.xpose.msra.mxu0 0.0
    %341 = vmatpush.xpose.msra.mxu0 0.0
    %342 = vmatpush.xpose.msra.mxu0 0.0
    %343 = vmatpush.xpose.msra.mxu0 0.0
    %344 = vmatpush.xpose.msra.mxu0 %v328
    %345 = vmatpush.xpose.msra.mxu0 %v325
    %346 = vmatmul.f32.gmra.mxu0 %v319
    %v347 = vpop.f32.mrf.mxu0
    %v348 = vadd.f32 %v283, %v347
    %349 = vmatmul.f32.gmra.mxu0 %v322
    %v350 = vpop.f32.mrf.mxu0
    %v351 = vadd.f32 %v284, %v350
    %352 = vdwg.mxu0
    %vm353 = vcmask 130048
    %v354 = vsel %vm353, %v348, -inf
    %355 = vmax.xlane.f32.xlu0 %v354
    %v356 = vpop.xlane.xlu0 %355
    %v357 = vsel %vm353, %v351, -inf
    %358 = vmax.xlane.f32.xlu0 %v357
    %v359 = vpop.xlane.xlu0 %358
    %v360 = vsub.f32 %v348, %v356
    %v361 = vsub.f32 %v351, %v359
    %v362 = vmul.f32 %v360, 1.442695
    %v363 = vpow.pop %v362
    %v364 = vmul.f32 %v361, 1.442695
    %v365 = vpow.pop %v364
    %v366 = vsel %vm353, %v363, 0.0
    %367 = vadd.xlane.f32.xlu0 %v366
    %v368 = vpop.xlane.xlu0 %367
    %v369 = vsel %vm353, %v365, 0.0
    %370 = vadd.xlane.f32.xlu0 %v369
    %v371 = vpop.xlane.xlu0 %370
    %v372 = vrcp.pop %v368
    %v373 = vmul.f32 %v368, %v372
    %v374 = vsub.f32 1.0, %v373
    %v375 = vmul.f32 %v372, %v374
    %v376 = vadd.f32 %v372, %v375
    %vm377 = vweird.f32 %v368
    %vm378 = vweird.f32 %v372
    %vm379 = vmor %vm377, %vm378
    %v380 = vsel %vm379, %v372, %v376
    %v381 = vand.u32 2147483647, %v368
    %vm382 = vcmp.eq.f32.partialorder %v381, 8.507059e+37
    %v383 = vand.u32 %v368, 2147483648
    %v384 = vor.u32 1.1754944e-38, %v383
    %v385 = vsel %vm382, %v384, %v380
    %v386 = vmul.f32 %v363, %v385
    %v387 = vrcp.pop %v371
    %v388 = vmul.f32 %v371, %v387
    %v389 = vsub.f32 1.0, %v388
    %v390 = vmul.f32 %v387, %v389
    %v391 = vadd.f32 %v387, %v390
    %vm392 = vweird.f32 %v371
    %vm393 = vweird.f32 %v387
    %vm394 = vmor %vm392, %vm393
    %v395 = vsel %vm394, %v387, %v391
    %v396 = vand.u32 2147483647, %v371
    %vm397 = vcmp.eq.f32.partialorder %v396, 8.507059e+37
    %v398 = vand.u32 %v371, 2147483648
    %v399 = vor.u32 1.1754944e-38, %v398
    %v400 = vsel %vm397, %v399, %v395
    %v401 = vmul.f32 %v365, %v400
    %v403 = vsel %vm353, %v267, 0
    %v406 = vsel %vm353, %v386, 0
    %v409 = vsel %vm353, %v401, 0
    %411 = vmatpush.xpose.msra.mxu0 0.0
    %412 = vmatpush.xpose.msra.mxu0 0.0
    %413 = vmatpush.xpose.msra.mxu0 0.0
    %414 = vmatpush.xpose.msra.mxu0 0.0
    %415 = vmatpush.xpose.msra.mxu0 0.0
    %416 = vmatpush.xpose.msra.mxu0 0.0
    %417 = vmatpush.xpose.msra.mxu0 0.0
    %418 = vmatpush.xpose.msra.mxu0 0.0
    %419 = vmatpush.xpose.msra.mxu0 0.0
    %420 = vmatpush.xpose.msra.mxu0 0.0
    %421 = vmatpush.xpose.msra.mxu0 0.0
    %422 = vmatpush.xpose.msra.mxu0 0.0
    %423 = vmatpush.xpose.msra.mxu0 0.0
    %424 = vmatpush.xpose.msra.mxu0 0.0
    %425 = vmatpush.xpose.msra.mxu0 %v409
    %426 = vmatpush.xpose.msra.mxu0 %v406
    %427 = vmatmul.f32.gmra.mxu0 %v403
    %v428 = vpop.f32.mrf.mxu0
    %v429 = vadd.f32 0.0, %v428
    %430 = vdwg.mxu0
    %431 = vxpose.xlu0.b32.start [1/16] %v236, 128
    %432 = vxpose.xlu0.b32.cont [2/16] 0.0, 128
    %433 = vxpose.xlu0.b32.cont [3/16] 0.0, 128
    %434 = vxpose.xlu0.b32.cont [4/16] 0.0, 128
    %435 = vxpose.xlu0.b32.cont [5/16] 0.0, 128
    %436 = vxpose.xlu0.b32.cont [6/16] 0.0, 128
    %437 = vxpose.xlu0.b32.cont [7/16] 0.0, 128
    %438 = vxpose.xlu0.b32.cont [8/16] 0.0, 128
    %439 = vxpose.xlu0.b32.cont [9/16] 0.0, 128
    %440 = vxpose.xlu0.b32.cont [10/16] 0.0, 128
    %441 = vxpose.xlu0.b32.cont [11/16] 0.0, 128
    %442 = vxpose.xlu0.b32.cont [12/16] 0.0, 128
    %443 = vxpose.xlu0.b32.cont [13/16] 0.0, 128
    %444 = vxpose.xlu0.b32.cont [14/16] 0.0, 128
    %445 = vxpose.xlu0.b32.cont [15/16] 0.0, 128
    %446 = vxpose.xlu0.b32.end [16/16] 0.0, 128
    %v447 = vpop.trf.xlu0
    %v448 = vpop.trf.xlu0
    %v449 = vpop.trf.xlu0
    %v450 = vpop.trf.xlu0
    %v451 = vpop.trf.xlu0
    %v452 = vpop.trf.xlu0
    %v453 = vpop.trf.xlu0
    %v454 = vpop.trf.xlu0
    %v455 = vpop.trf.xlu0
    %v456 = vpop.trf.xlu0
    %v457 = vpop.trf.xlu0
    %v458 = vpop.trf.xlu0
    %v459 = vpop.trf.xlu0
    %v460 = vpop.trf.xlu0
    %v461 = vpop.trf.xlu0
    %v462 = vpop.trf.xlu0
    %463 = vrot.lane.b32.xlu0 %v188, 120
    %v464 = vpop.permute.xlu0 %463
    %465 = vrot.lane.b32.xlu0 %v189, 120
    %v466 = vpop.permute.xlu0 %465
    %v468 = vsel %vm317, %v447, 0
    %v471 = vsel %vm317, %v448, 0
    %v473 = vsel %vm317, %v464, 0
    %v475 = vsel %vm317, %v466, 0
    %477 = vmatpush.xpose.msra.mxu0 0.0
    %478 = vmatpush.xpose.msra.mxu0 0.0
    %479 = vmatpush.xpose.msra.mxu0 0.0
    %480 = vmatpush.xpose.msra.mxu0 0.0
    %481 = vmatpush.xpose.msra.mxu0 0.0
    %482 = vmatpush.xpose.msra.mxu0 0.0
    %483 = vmatpush.xpose.msra.mxu0 0.0
    %484 = vmatpush.xpose.msra.mxu0 0.0
    %485 = vmatpush.xpose.msra.mxu0 0.0
    %486 = vmatpush.xpose.msra.mxu0 0.0
    %487 = vmatpush.xpose.msra.mxu0 0.0
    %488 = vmatpush.xpose.msra.mxu0 0.0
    %489 = vmatpush.xpose.msra.mxu0 0.0
    %490 = vmatpush.xpose.msra.mxu0 0.0
    %491 = vmatpush.xpose.msra.mxu0 %v475
    %492 = vmatpush.xpose.msra.mxu0 %v473
    %493 = vmatmul.f32.gmra.mxu0 %v468
    %v494 = vpop.f32.mrf.mxu0
    %v495 = vadd.f32 %v283, %v494
    %496 = vmatmul.f32.gmra.mxu0 %v471
    %v497 = vpop.f32.mrf.mxu0
    %v498 = vadd.f32 %v284, %v497
    %499 = vdwg.mxu0
    %v500 = vsel %vm353, %v495, -inf
    %501 = vmax.xlane.f32.xlu0 %v500
    %v502 = vpop.xlane.xlu0 %501
    %v503 = vsel %vm353, %v498, -inf
    %504 = vmax.xlane.f32.xlu0 %v503
    %v505 = vpop.xlane.xlu0 %504
    %v506 = vsub.f32 %v495, %v502
    %v507 = vsub.f32 %v498, %v505
    %v508 = vmul.f32 %v506, 1.442695
    %v509 = vpow.pop %v508
    %v510 = vmul.f32 %v507, 1.442695
    %v511 = vpow.pop %v510
    %v512 = vsel %vm353, %v509, 0.0
    %513 = vadd.xlane.f32.xlu0 %v512
    %v514 = vpop.xlane.xlu0 %513
    %v515 = vsel %vm353, %v511, 0.0
    %516 = vadd.xlane.f32.xlu0 %v515
    %v517 = vpop.xlane.xlu0 %516
    %v518 = vrcp.pop %v514
    %v519 = vmul.f32 %v514, %v518
    %v520 = vsub.f32 1.0, %v519
    %v521 = vmul.f32 %v518, %v520
    %v522 = vadd.f32 %v518, %v521
    %vm523 = vweird.f32 %v514
    %vm524 = vweird.f32 %v518
    %vm525 = vmor %vm523, %vm524
    %v526 = vsel %vm525, %v518, %v522
    %v527 = vand.u32 2147483647, %v514
    %vm528 = vcmp.eq.f32.partialorder %v527, 8.507059e+37
    %v529 = vand.u32 %v514, 2147483648
    %v530 = vor.u32 1.1754944e-38, %v529
    %v531 = vsel %vm528, %v530, %v526
    %v532 = vmul.f32 %v509, %v531
    %v533 = vrcp.pop %v517
    %v534 = vmul.f32 %v517, %v533
    %v535 = vsub.f32 1.0, %v534
    %v536 = vmul.f32 %v533, %v535
    %v537 = vadd.f32 %v533, %v536
    %vm538 = vweird.f32 %v517
    %vm539 = vweird.f32 %v533
    %vm540 = vmor %vm538, %vm539
    %v541 = vsel %vm540, %v533, %v537
    %v542 = vand.u32 2147483647, %v517
    %vm543 = vcmp.eq.f32.partialorder %v542, 8.507059e+37
    %v544 = vand.u32 %v517, 2147483648
    %v545 = vor.u32 1.1754944e-38, %v544
    %v546 = vsel %vm543, %v545, %v541
    %v547 = vmul.f32 %v511, %v546
    %v549 = vsel %vm353, %v268, 0
    %v552 = vsel %vm353, %v532, 0
    %v555 = vsel %vm353, %v547, 0
    %557 = vmatpush.xpose.msra.mxu0 0.0
    %558 = vmatpush.xpose.msra.mxu0 0.0
    %559 = vmatpush.xpose.msra.mxu0 0.0
    %560 = vmatpush.xpose.msra.mxu0 0.0
    %561 = vmatpush.xpose.msra.mxu0 0.0
    %562 = vmatpush.xpose.msra.mxu0 0.0
    %563 = vmatpush.xpose.msra.mxu0 0.0
    %564 = vmatpush.xpose.msra.mxu0 0.0
    %565 = vmatpush.xpose.msra.mxu0 0.0
    %566 = vmatpush.xpose.msra.mxu0 0.0
    %567 = vmatpush.xpose.msra.mxu0 0.0
    %568 = vmatpush.xpose.msra.mxu0 0.0
    %569 = vmatpush.xpose.msra.mxu0 0.0
    %570 = vmatpush.xpose.msra.mxu0 0.0
    %571 = vmatpush.xpose.msra.mxu0 %v555
    %572 = vmatpush.xpose.msra.mxu0 %v552
    %573 = vmatmul.f32.gmra.mxu0 %v549
    %v574 = vpop.f32.mrf.mxu0
    %v575 = vadd.f32 0.0, %v574
    %576 = vdwg.mxu0
    %577 = vxpose.xlu0.b32.start [1/16] %v237, 128
    %578 = vxpose.xlu0.b32.cont [2/16] 0.0, 128
    %579 = vxpose.xlu0.b32.cont [3/16] 0.0, 128
    %580 = vxpose.xlu0.b32.cont [4/16] 0.0, 128
    %581 = vxpose.xlu0.b32.cont [5/16] 0.0, 128
    %582 = vxpose.xlu0.b32.cont [6/16] 0.0, 128
    %583 = vxpose.xlu0.b32.cont [7/16] 0.0, 128
    %584 = vxpose.xlu0.b32.cont [8/16] 0.0, 128
    %585 = vxpose.xlu0.b32.cont [9/16] 0.0, 128
    %586 = vxpose.xlu0.b32.cont [10/16] 0.0, 128
    %587 = vxpose.xlu0.b32.cont [11/16] 0.0, 128
    %588 = vxpose.xlu0.b32.cont [12/16] 0.0, 128
    %589 = vxpose.xlu0.b32.cont [13/16] 0.0, 128
    %590 = vxpose.xlu0.b32.cont [14/16] 0.0, 128
    %591 = vxpose.xlu0.b32.cont [15/16] 0.0, 128
    %592 = vxpose.xlu0.b32.end [16/16] 0.0, 128
    %v593 = vpop.trf.xlu0
    %v594 = vpop.trf.xlu0
    %v595 = vpop.trf.xlu0
    %v596 = vpop.trf.xlu0
    %v597 = vpop.trf.xlu0
    %v598 = vpop.trf.xlu0
    %v599 = vpop.trf.xlu0
    %v600 = vpop.trf.xlu0
    %v601 = vpop.trf.xlu0
    %v602 = vpop.trf.xlu0
    %v603 = vpop.trf.xlu0
    %v604 = vpop.trf.xlu0
    %v605 = vpop.trf.xlu0
    %v606 = vpop.trf.xlu0
    %v607 = vpop.trf.xlu0
    %v608 = vpop.trf.xlu0
    %609 = vrot.lane.b32.xlu0 %v188, 112
    %v610 = vpop.permute.xlu0 %609
    %611 = vrot.lane.b32.xlu0 %v189, 112
    %v612 = vpop.permute.xlu0 %611
    %v614 = vsel %vm317, %v593, 0
    %v617 = vsel %vm317, %v594, 0
    %v619 = vsel %vm317, %v610, 0
    %v621 = vsel %vm317, %v612, 0
    %623 = vmatpush.xpose.msra.mxu0 0.0
    %624 = vmatpush.xpose.msra.mxu0 0.0
    %625 = vmatpush.xpose.msra.mxu0 0.0
    %626 = vmatpush.xpose.msra.mxu0 0.0
    %627 = vmatpush.xpose.msra.mxu0 0.0
    %628 = vmatpush.xpose.msra.mxu0 0.0
    %629 = vmatpush.xpose.msra.mxu0 0.0
    %630 = vmatpush.xpose.msra.mxu0 0.0
    %631 = vmatpush.xpose.msra.mxu0 0.0
    %632 = vmatpush.xpose.msra.mxu0 0.0
    %633 = vmatpush.xpose.msra.mxu0 0.0
    %634 = vmatpush.xpose.msra.mxu0 0.0
    %635 = vmatpush.xpose.msra.mxu0 0.0
    %636 = vmatpush.xpose.msra.mxu0 0.0
    %637 = vmatpush.xpose.msra.mxu0 %v621
    %638 = vmatpush.xpose.msra.mxu0 %v619
    %639 = vmatmul.f32.gmra.mxu0 %v614
    %v640 = vpop.f32.mrf.mxu0
    %v641 = vadd.f32 %v283, %v640
    %642 = vmatmul.f32.gmra.mxu0 %v617
    %v643 = vpop.f32.mrf.mxu0
    %v644 = vadd.f32 %v284, %v643
    %645 = vdwg.mxu0
    %v646 = vsel %vm353, %v641, -inf
    %647 = vmax.xlane.f32.xlu0 %v646
    %v648 = vpop.xlane.xlu0 %647
    %v649 = vsel %vm353, %v644, -inf
    %650 = vmax.xlane.f32.xlu0 %v649
    %v651 = vpop.xlane.xlu0 %650
    %v652 = vsub.f32 %v641, %v648
    %v653 = vsub.f32 %v644, %v651
    %v654 = vmul.f32 %v652, 1.442695
    %v655 = vpow.pop %v654
    %v656 = vmul.f32 %v653, 1.442695
    %v657 = vpow.pop %v656
    %v658 = vsel %vm353, %v655, 0.0
    %659 = vadd.xlane.f32.xlu0 %v658
    %v660 = vpop.xlane.xlu0 %659
    %v661 = vsel %vm353, %v657, 0.0
    %662 = vadd.xlane.f32.xlu0 %v661
    %v663 = vpop.xlane.xlu0 %662
    %v664 = vrcp.pop %v660
    %v665 = vmul.f32 %v660, %v664
    %v666 = vsub.f32 1.0, %v665
    %v667 = vmul.f32 %v664, %v666
    %v668 = vadd.f32 %v664, %v667
    %vm669 = vweird.f32 %v660
    %vm670 = vweird.f32 %v664
    %vm671 = vmor %vm669, %vm670
    %v672 = vsel %vm671, %v664, %v668
    %v673 = vand.u32 2147483647, %v660
    %vm674 = vcmp.eq.f32.partialorder %v673, 8.507059e+37
    %v675 = vand.u32 %v660, 2147483648
    %v676 = vor.u32 1.1754944e-38, %v675
    %v677 = vsel %vm674, %v676, %v672
    %v678 = vmul.f32 %v655, %v677
    %v679 = vrcp.pop %v663
    %v680 = vmul.f32 %v663, %v679
    %v681 = vsub.f32 1.0, %v680
    %v682 = vmul.f32 %v679, %v681
    %v683 = vadd.f32 %v679, %v682
    %vm684 = vweird.f32 %v663
    %vm685 = vweird.f32 %v679
    %vm686 = vmor %vm684, %vm685
    %v687 = vsel %vm686, %v679, %v683
    %v688 = vand.u32 2147483647, %v663
    %vm689 = vcmp.eq.f32.partialorder %v688, 8.507059e+37
    %v690 = vand.u32 %v663, 2147483648
    %v691 = vor.u32 1.1754944e-38, %v690
    %v692 = vsel %vm689, %v691, %v687
    %v693 = vmul.f32 %v657, %v692
    %v695 = vsel %vm353, %v269, 0
    %v698 = vsel %vm353, %v678, 0
    %v701 = vsel %vm353, %v693, 0
    %703 = vmatpush.xpose.msra.mxu0 0.0
    %704 = vmatpush.xpose.msra.mxu0 0.0
    %705 = vmatpush.xpose.msra.mxu0 0.0
    %706 = vmatpush.xpose.msra.mxu0 0.0
    %707 = vmatpush.xpose.msra.mxu0 0.0
    %708 = vmatpush.xpose.msra.mxu0 0.0
    %709 = vmatpush.xpose.msra.mxu0 0.0
    %710 = vmatpush.xpose.msra.mxu0 0.0
    %711 = vmatpush.xpose.msra.mxu0 0.0
    %712 = vmatpush.xpose.msra.mxu0 0.0
    %713 = vmatpush.xpose.msra.mxu0 0.0
    %714 = vmatpush.xpose.msra.mxu0 0.0
    %715 = vmatpush.xpose.msra.mxu0 0.0
    %716 = vmatpush.xpose.msra.mxu0 0.0
    %717 = vmatpush.xpose.msra.mxu0 %v701
    %718 = vmatpush.xpose.msra.mxu0 %v698
    %719 = vmatmul.f32.gmra.mxu0 %v695
    %v720 = vpop.f32.mrf.mxu0
    %v721 = vadd.f32 0.0, %v720
    %722 = vdwg.mxu0
    %723 = vxpose.xlu0.b32.start [1/16] %v238, 128
    %724 = vxpose.xlu0.b32.cont [2/16] 0.0, 128
    %725 = vxpose.xlu0.b32.cont [3/16] 0.0, 128
    %726 = vxpose.xlu0.b32.cont [4/16] 0.0, 128
    %727 = vxpose.xlu0.b32.cont [5/16] 0.0, 128
    %728 = vxpose.xlu0.b32.cont [6/16] 0.0, 128
    %729 = vxpose.xlu0.b32.cont [7/16] 0.0, 128
    %730 = vxpose.xlu0.b32.cont [8/16] 0.0, 128
    %731 = vxpose.xlu0.b32.cont [9/16] 0.0, 128
    %732 = vxpose.xlu0.b32.cont [10/16] 0.0, 128
    %733 = vxpose.xlu0.b32.cont [11/16] 0.0, 128
    %734 = vxpose.xlu0.b32.cont [12/16] 0.0, 128
    %735 = vxpose.xlu0.b32.cont [13/16] 0.0, 128
    %736 = vxpose.xlu0.b32.cont [14/16] 0.0, 128
    %737 = vxpose.xlu0.b32.cont [15/16] 0.0, 128
    %738 = vxpose.xlu0.b32.end [16/16] 0.0, 128
    %v739 = vpop.trf.xlu0
    %v740 = vpop.trf.xlu0
    %v741 = vpop.trf.xlu0
    %v742 = vpop.trf.xlu0
    %v743 = vpop.trf.xlu0
    %v744 = vpop.trf.xlu0
    %v745 = vpop.trf.xlu0
    %v746 = vpop.trf.xlu0
    %v747 = vpop.trf.xlu0
    %v748 = vpop.trf.xlu0
    %v749 = vpop.trf.xlu0
    %v750 = vpop.trf.xlu0
    %v751 = vpop.trf.xlu0
    %v752 = vpop.trf.xlu0
    %v753 = vpop.trf.xlu0
    %v754 = vpop.trf.xlu0
    %755 = vrot.lane.b32.xlu0 %v188, 104
    %v756 = vpop.permute.xlu0 %755
    %757 = vrot.lane.b32.xlu0 %v189, 104
    %v758 = vpop.permute.xlu0 %757
    %v760 = vsel %vm317, %v739, 0
    %v763 = vsel %vm317, %v740, 0
    %v765 = vsel %vm317, %v756, 0
    %v767 = vsel %vm317, %v758, 0
    %769 = vmatpush.xpose.msra.mxu0 0.0
    %770 = vmatpush.xpose.msra.mxu0 0.0
    %771 = vmatpush.xpose.msra.mxu0 0.0
    %772 = vmatpush.xpose.msra.mxu0 0.0
    %773 = vmatpush.xpose.msra.mxu0 0.0
    %774 = vmatpush.xpose.msra.mxu0 0.0
    %775 = vmatpush.xpose.msra.mxu0 0.0
    %776 = vmatpush.xpose.msra.mxu0 0.0
    %777 = vmatpush.xpose.msra.mxu0 0.0
    %778 = vmatpush.xpose.msra.mxu0 0.0
    %779 = vmatpush.xpose.msra.mxu0 0.0
    %780 = vmatpush.xpose.msra.mxu0 0.0
    %781 = vmatpush.xpose.msra.mxu0 0.0
    %782 = vmatpush.xpose.msra.mxu0 0.0
    %783 = vmatpush.xpose.msra.mxu0 %v767
    %784 = vmatpush.xpose.msra.mxu0 %v765
    %785 = vmatmul.f32.gmra.mxu0 %v760
    %v786 = vpop.f32.mrf.mxu0
    %v787 = vadd.f32 %v283, %v786
    %788 = vmatmul.f32.gmra.mxu0 %v763
    %v789 = vpop.f32.mrf.mxu0
    %v790 = vadd.f32 %v284, %v789
    %791 = vdwg.mxu0
    %v792 = vsel %vm353, %v787, -inf
    %793 = vmax.xlane.f32.xlu0 %v792
    %v794 = vpop.xlane.xlu0 %793
    %v795 = vsel %vm353, %v790, -inf
    %796 = vmax.xlane.f32.xlu0 %v795
    %v797 = vpop.xlane.xlu0 %796
    %v798 = vsub.f32 %v787, %v794
    %v799 = vsub.f32 %v790, %v797
    %v800 = vmul.f32 %v798, 1.442695
    %v801 = vpow.pop %v800
    %v802 = vmul.f32 %v799, 1.442695
    %v803 = vpow.pop %v802
    %v804 = vsel %vm353, %v801, 0.0
    %805 = vadd.xlane.f32.xlu0 %v804
    %v806 = vpop.xlane.xlu0 %805
    %v807 = vsel %vm353, %v803, 0.0
    %808 = vadd.xlane.f32.xlu0 %v807
    %v809 = vpop.xlane.xlu0 %808
    %v810 = vrcp.pop %v806
    %v811 = vmul.f32 %v806, %v810
    %v812 = vsub.f32 1.0, %v811
    %v813 = vmul.f32 %v810, %v812
    %v814 = vadd.f32 %v810, %v813
    %vm815 = vweird.f32 %v806
    %vm816 = vweird.f32 %v810
    %vm817 = vmor %vm815, %vm816
    %v818 = vsel %vm817, %v810, %v814
    %v819 = vand.u32 2147483647, %v806
    %vm820 = vcmp.eq.f32.partialorder %v819, 8.507059e+37
    %v821 = vand.u32 %v806, 2147483648
    %v822 = vor.u32 1.1754944e-38, %v821
    %v823 = vsel %vm820, %v822, %v818
    %v824 = vmul.f32 %v801, %v823
    %v825 = vrcp.pop %v809
    %v826 = vmul.f32 %v809, %v825
    %v827 = vsub.f32 1.0, %v826
    %v828 = vmul.f32 %v825, %v827
    %v829 = vadd.f32 %v825, %v828
    %vm830 = vweird.f32 %v809
    %vm831 = vweird.f32 %v825
    %vm832 = vmor %vm830, %vm831
    %v833 = vsel %vm832, %v825, %v829
    %v834 = vand.u32 2147483647, %v809
    %vm835 = vcmp.eq.f32.partialorder %v834, 8.507059e+37
    %v836 = vand.u32 %v809, 2147483648
    %v837 = vor.u32 1.1754944e-38, %v836
    %v838 = vsel %vm835, %v837, %v833
    %v839 = vmul.f32 %v803, %v838
    %v841 = vsel %vm353, %v270, 0
    %v844 = vsel %vm353, %v824, 0
    %v847 = vsel %vm353, %v839, 0
    %849 = vmatpush.xpose.msra.mxu0 0.0
    %850 = vmatpush.xpose.msra.mxu0 0.0
    %851 = vmatpush.xpose.msra.mxu0 0.0
    %852 = vmatpush.xpose.msra.mxu0 0.0
    %853 = vmatpush.xpose.msra.mxu0 0.0
    %854 = vmatpush.xpose.msra.mxu0 0.0
    %855 = vmatpush.xpose.msra.mxu0 0.0
    %856 = vmatpush.xpose.msra.mxu0 0.0
    %857 = vmatpush.xpose.msra.mxu0 0.0
    %858 = vmatpush.xpose.msra.mxu0 0.0
    %859 = vmatpush.xpose.msra.mxu0 0.0
    %860 = vmatpush.xpose.msra.mxu0 0.0
    %861 = vmatpush.xpose.msra.mxu0 0.0
    %862 = vmatpush.xpose.msra.mxu0 0.0
    %863 = vmatpush.xpose.msra.mxu0 %v847
    %864 = vmatpush.xpose.msra.mxu0 %v844
    %865 = vmatmul.f32.gmra.mxu0 %v841
    %v866 = vpop.f32.mrf.mxu0
    %v867 = vadd.f32 0.0, %v866
    %868 = vdwg.mxu0
    %869 = vxpose.xlu0.b32.start [1/16] %v429, 128
    %870 = vxpose.xlu0.b32.cont [2/16] %v575, 128
    %871 = vxpose.xlu0.b32.cont [3/16] %v721, 128
    %872 = vxpose.xlu0.b32.cont [4/16] %v867, 128
    %873 = vxpose.xlu0.b32.cont [5/16] 0.0, 128
    %874 = vxpose.xlu0.b32.cont [6/16] 0.0, 128
    %875 = vxpose.xlu0.b32.cont [7/16] 0.0, 128
    %876 = vxpose.xlu0.b32.cont [8/16] 0.0, 128
    %877 = vxpose.xlu0.b32.cont [9/16] 0.0, 128
    %878 = vxpose.xlu0.b32.cont [10/16] 0.0, 128
    %879 = vxpose.xlu0.b32.cont [11/16] 0.0, 128
    %880 = vxpose.xlu0.b32.cont [12/16] 0.0, 128
    %881 = vxpose.xlu0.b32.cont [13/16] 0.0, 128
    %882 = vxpose.xlu0.b32.cont [14/16] 0.0, 128
    %883 = vxpose.xlu0.b32.cont [15/16] 0.0, 128
    %884 = vxpose.xlu0.b32.end [16/16] 0.0, 128
    %v885 = vpop.trf.xlu0
    %v886 = vpop.trf.xlu0
    %v887 = vpop.trf.xlu0
    %v888 = vpop.trf.xlu0
    %v889 = vpop.trf.xlu0
    %v890 = vpop.trf.xlu0
    %v891 = vpop.trf.xlu0
    %v892 = vpop.trf.xlu0
    %v893 = vpop.trf.xlu0
    %v894 = vpop.trf.xlu0
    %v895 = vpop.trf.xlu0
    %v896 = vpop.trf.xlu0
    %v897 = vpop.trf.xlu0
    %v898 = vpop.trf.xlu0
    %v899 = vpop.trf.xlu0
    %v900 = vpop.trf.xlu0
    %v901 = vld [vmem:[#allocation2 + $0x28] sm:$0xff]
    %v902 = vld [vmem:[#allocation2 + $0x98] sm:$0xff]
    %v903 = vld [vmem:[#allocation2 + $0x108] sm:$0xff]
    %v904 = vld [vmem:[#allocation2 + $0x178] sm:$0xff]
    %v905 = vld [vmem:[%s6 + $0x5] sm:$0x1]
    %v906 = vperm.slane %v905, 0
    %v908 = vsel %vm63, %v885, 0
    %v911 = vsel %vm63, %v886, 0
    %913 = vmatpush.msra.mxu0 0.0
    %914 = vmatpush.msra.mxu0 0.0
    %915 = vmatpush.msra.mxu0 0.0
    %916 = vmatpush.msra.mxu0 0.0
    %917 = vmatpush.msra.mxu0 0.0
    %918 = vmatpush.msra.mxu0 0.0
    %919 = vmatpush.msra.mxu0 0.0
    %920 = vmatpush.msra.mxu0 0.0
    %921 = vmatpush.msra.mxu0 0.0
    %922 = vmatpush.msra.mxu0 0.0
    %923 = vmatpush.msra.mxu0 0.0
    %924 = vmatpush.msra.mxu0 0.0
    %925 = vmatpush.msra.mxu0 %v904
    %926 = vmatpush.msra.mxu0 %v903
    %927 = vmatpush.msra.mxu0 %v902
    %928 = vmatpush.msra.mxu0 %v901
    %929 = vmatmul.f32.gmra.mxu0 %v908
    %v930 = vpop.f32.mrf.mxu0
    %v931 = vadd.f32 %v906, %v930
    %932 = vmatmul.f32.gmra.mxu0 %v911
    %v933 = vpop.f32.mrf.mxu0
    %v934 = vadd.f32 %v906, %v933
    %935 = vdwg.mxu0
    %v936 = vadd.f32 %v43, %v931
    %v937 = vadd.f32 %v44, %v934
    %v938 = vld [vmem:[%s6 + $0xf] sm:$0x1]
    %v939 = vld [vmem:[%s6 + $0x12] sm:$0x1]
    %v940 = vsel %vm63, %v936, 0.0
    %941 = vadd.xlane.f32.xlu0 %v940
    %v942 = vpop.xlane.xlu0 %941
    %v943 = vsel %vm63, %v937, 0.0
    %944 = vadd.xlane.f32.xlu0 %v943
    %v945 = vpop.xlane.xlu0 %944
    %v946 = vrcp.pop 32.0
    %v947 = vmul.f32 32.0, %v946
    %v948 = vsub.f32 1.0, %v947
    %v949 = vmul.f32 %v946, %v948
    %v950 = vadd.f32 %v946, %v949
    %vm951 = vweird.f32 %v946
    %v952 = vsel %vm951, %v946, %v950
    %v953 = vmul.f32 %v942, %v952
    %v954 = vmul.f32 %v945, %v952
    %v955 = vsub.f32 %v936, %v953
    %v956 = vsub.f32 %v937, %v954
    %v957 = vmul.f32 %v955, %v955
    %v958 = vmul.f32 %v956, %v956
    %v959 = vsel %vm63, %v957, 0.0
    %960 = vadd.xlane.f32.xlu0 %v959
    %v961 = vpop.xlane.xlu0 %960
    %v962 = vsel %vm63, %v958, 0.0
    %963 = vadd.xlane.f32.xlu0 %v962
    %v964 = vpop.xlane.xlu0 %963
    %v965 = vmul.f32 %v961, %v952
    %v966 = vmul.f32 %v964, %v952
    %v967 = vadd.f32 %v965, 1e-05
    %v968 = vadd.f32 %v966, 1e-05
    %v969 = vrsqrt.pop %v967
    %v970 = vmul.f32 %v969, %v967
    %v971 = vmul.f32 %v970, %v969
    %v972 = vmul.f32 0.5, %v971
    %v973 = vsub.f32 1.5, %v972
    %v974 = vmul.f32 %v969, %v973
    %vm975 = vweird.f32 %v967
    %vm976 = vweird.f32 %v969
    %vm977 = vmor %vm975, %vm976
    %v978 = vsel %vm977, %v969, %v974
    %v979 = vrsqrt.pop %v968
    %v980 = vmul.f32 %v979, %v968
    %v981 = vmul.f32 %v980, %v979
    %v982 = vmul.f32 0.5, %v981
    %v983 = vsub.f32 1.5, %v982
    %v984 = vmul.f32 %v979, %v983
    %vm985 = vweird.f32 %v968
    %vm986 = vweird.f32 %v979
    %vm987 = vmor %vm985, %vm986
    %v988 = vsel %vm987, %v979, %v984
    %v989 = vmul.f32 %v955, %v978
    %v990 = vmul.f32 %v956, %v988
    %v991 = vperm.slane %v938, 0
    %v992 = vmul.f32 %v989, %v991
    %v993 = vmul.f32 %v990, %v991
    %v994 = vperm.slane %v939, 0
    %v995 = vadd.f32 %v992, %v994
    %v996 = vadd.f32 %v993, %v994
    %v997 = vld [vmem:[#allocation2 + $0x30] sm:$0xff]
    %v998 = vld [vmem:[#allocation2 + $0xa0] sm:$0xff]
    %v999 = vld [vmem:[#allocation2 + $0x110] sm:$0xff]
    %v1000 = vld [vmem:[#allocation2 + $0x180] sm:$0xff]
    %v1001 = vld [vmem:[%s6 + $0x6] sm:$0x1]
    %v1002 = vperm.slane %v1001, 0
    %v1004 = vsel %vm63, %v995, 0
    %v1007 = vsel %vm63, %v996, 0
    %1009 = vmatpush.msra.mxu0 0.0
    %1010 = vmatpush.msra.mxu0 0.0
    %1011 = vmatpush.msra.mxu0 0.0
    %1012 = vmatpush.msra.mxu0 0.0
    %1013 = vmatpush.msra.mxu0 0.0
    %1014 = vmatpush.msra.mxu0 0.0
    %1015 = vmatpush.msra.mxu0 0.0
    %1016 = vmatpush.msra.mxu0 0.0
    %1017 = vmatpush.msra.mxu0 0.0
    %1018 = vmatpush.msra.mxu0 0.0
    %1019 = vmatpush.msra.mxu0 0.0
    %1020 = vmatpush.msra.mxu0 0.0
    %1021 = vmatpush.msra.mxu0 %v1000
    %1022 = vmatpush.msra.mxu0 %v999
    %1023 = vmatpush.msra.mxu0 %v998
    %1024 = vmatpush.msra.mxu0 %v997
    %1025 = vmatmul.f32.gmra.mxu0 %v1004
    %v1026 = vpop.f32.mrf.mxu0
    %v1027 = vadd.f32 %v1002, %v1026
    %1028 = vmatmul.f32.gmra.mxu0 %v1007
    %v1029 = vpop.f32.mrf.mxu0
    %v1030 = vadd.f32 %v1002, %v1029
    %1031 = vdwg.mxu0
    %v1032 = vld [vmem:[#allocation2 + $0x40] sm:$0xff]
    %v1033 = vld [vmem:[#allocation2 + $0xb0] sm:$0xff]
    %v1034 = vld [vmem:[#allocation2 + $0x120] sm:$0xff]
    %v1035 = vld [vmem:[#allocation2 + $0x190] sm:$0xff]
    %v1036 = vld [vmem:[%s6 + $0x8] sm:$0x1]
    %v1037 = vperm.slane %v1036, 0
    %v1039 = vsel %vm63, %v49, 0
    %v1042 = vsel %vm63, %v50, 0
    %v1045 = vsel %vm63, %v51, 0
    %v1048 = vsel %vm63, %v52, 0
    %1050 = vmatpush.msra.mxu0 0.0
    %1051 = vmatpush.msra.mxu0 0.0
    %1052 = vmatpush.msra.mxu0 0.0
    %1053 = vmatpush.msra.mxu0 0.0
    %1054 = vmatpush.msra.mxu0 0.0
    %1055 = vmatpush.msra.mxu0 0.0
    %1056 = vmatpush.msra.mxu0 0.0
    %1057 = vmatpush.msra.mxu0 0.0
    %1058 = vmatpush.msra.mxu0 0.0
    %1059 = vmatpush.msra.mxu0 0.0
    %1060 = vmatpush.msra.mxu0 0.0
    %1061 = vmatpush.msra.mxu0 0.0
    %1062 = vmatpush.msra.mxu0 %v1035
    %1063 = vmatpush.msra.mxu0 %v1034
    %1064 = vmatpush.msra.mxu0 %v1033
    %1065 = vmatpush.msra.mxu0 %v1032
    %1066 = vmatmul.f32.gmra.mxu0 %v1039
    %v1067 = vpop.f32.mrf.mxu0
    %v1068 = vadd.f32 %v1037, %v1067
    %1069 = vmatmul.f32.gmra.mxu0 %v1042
    %v1070 = vpop.f32.mrf.mxu0
    %v1071 = vadd.f32 %v1037, %v1070
    %1072 = vmatmul.f32.gmra.mxu0 %v1045
    %v1073 = vpop.f32.mrf.mxu0
    %v1074 = vadd.f32 %v1037, %v1073
    %1075 = vmatmul.f32.gmra.mxu0 %v1048
    %v1076 = vpop.f32.mrf.mxu0
    %v1077 = vadd.f32 %v1037, %v1076
    %1078 = vdwg.mxu0
    %v1079 = vld [vmem:[#allocation2 + $0x50] sm:$0xff]
    %v1080 = vld [vmem:[#allocation2 + $0xc0] sm:$0xff]
    %v1081 = vld [vmem:[#allocation2 + $0x130] sm:$0xff]
    %v1082 = vld [vmem:[#allocation2 + $0x1a0] sm:$0xff]
    %v1083 = vld [vmem:[%s6 + $0xa] sm:$0x1]
    %v1084 = vperm.slane %v1083, 0
    %1085 = vmatpush.msra.mxu0 0.0
    %1086 = vmatpush.msra.mxu0 0.0
    %1087 = vmatpush.msra.mxu0 0.0
    %1088 = vmatpush.msra.mxu0 0.0
    %1089 = vmatpush.msra.mxu0 0.0
    %1090 = vmatpush.msra.mxu0 0.0
    %1091 = vmatpush.msra.mxu0 0.0
    %1092 = vmatpush.msra.mxu0 0.0
    %1093 = vmatpush.msra.mxu0 0.0
    %1094 = vmatpush.msra.mxu0 0.0
    %1095 = vmatpush.msra.mxu0 0.0
    %1096 = vmatpush.msra.mxu0 0.0
    %1097 = vmatpush.msra.mxu0 %v1082
    %1098 = vmatpush.msra.mxu0 %v1081
    %1099 = vmatpush.msra.mxu0 %v1080
    %1100 = vmatpush.msra.mxu0 %v1079
    %1101 = vmatmul.f32.gmra.mxu0 %v1039
    %v1102 = vpop.f32.mrf.mxu0
    %v1103 = vadd.f32 %v1084, %v1102
    %1104 = vmatmul.f32.gmra.mxu0 %v1042
    %v1105 = vpop.f32.mrf.mxu0
    %v1106 = vadd.f32 %v1084, %v1105
    %1107 = vmatmul.f32.gmra.mxu0 %v1045
    %v1108 = vpop.f32.mrf.mxu0
    %v1109 = vadd.f32 %v1084, %v1108
    %1110 = vmatmul.f32.gmra.mxu0 %v1048
    %v1111 = vpop.f32.mrf.mxu0
    %v1112 = vadd.f32 %v1084, %v1111
    %1113 = vdwg.mxu0
    %v1114 = vld [vmem:[#allocation2 + $0x48] sm:$0xff]
    %v1115 = vld [vmem:[#allocation2 + $0xb8] sm:$0xff]
    %v1116 = vld [vmem:[#allocation2 + $0x128] sm:$0xff]
    %v1117 = vld [vmem:[#allocation2 + $0x198] sm:$0xff]
    %v1118 = vld [vmem:[%s6 + $0x9] sm:$0x1]
    %v1119 = vperm.slane %v1118, 0
    %v1121 = vsel %vm63, %v53, 0
    %v1124 = vsel %vm63, %v54, 0
    %v1127 = vsel %vm63, %v55, 0
    %v1130 = vsel %vm63, %v56, 0
    %1132 = vmatpush.msra.mxu0 0.0
    %1133 = vmatpush.msra.mxu0 0.0
    %1134 = vmatpush.msra.mxu0 0.0
    %1135 = vmatpush.msra.mxu0 0.0
    %1136 = vmatpush.msra.mxu0 0.0
    %1137 = vmatpush.msra.mxu0 0.0
    %1138 = vmatpush.msra.mxu0 0.0
    %1139 = vmatpush.msra.mxu0 0.0
    %1140 = vmatpush.msra.mxu0 0.0
    %1141 = vmatpush.msra.mxu0 0.0
    %1142 = vmatpush.msra.mxu0 0.0
    %1143 = vmatpush.msra.mxu0 0.0
    %1144 = vmatpush.msra.mxu0 %v1117
    %1145 = vmatpush.msra.mxu0 %v1116
    %1146 = vmatpush.msra.mxu0 %v1115
    %1147 = vmatpush.msra.mxu0 %v1114
    %1148 = vmatmul.f32.gmra.mxu0 %v1121
    %v1149 = vpop.f32.mrf.mxu0
    %v1150 = vadd.f32 %v1119, %v1149
    %1151 = vmatmul.f32.gmra.mxu0 %v1124
    %v1152 = vpop.f32.mrf.mxu0
    %v1153 = vadd.f32 %v1119, %v1152
    %1154 = vmatmul.f32.gmra.mxu0 %v1127
    %v1155 = vpop.f32.mrf.mxu0
    %v1156 = vadd.f32 %v1119, %v1155
    %1157 = vmatmul.f32.gmra.mxu0 %v1130
    %v1158 = vpop.f32.mrf.mxu0
    %v1159 = vadd.f32 %v1119, %v1158
    %1160 = vdwg.mxu0
    %v1161 = vld [vmem:[#allocation2 + $0x58] sm:$0xff]
    %v1162 = vld [vmem:[#allocation2 + $0xc8] sm:$0xff]
    %v1163 = vld [vmem:[#allocation2 + $0x138] sm:$0xff]
    %v1164 = vld [vmem:[#allocation2 + $0x1a8] sm:$0xff]
    %v1165 = vld [vmem:[%s6 + $0xb] sm:$0x1]
    %v1166 = vperm.slane %v1165, 0
    %v1168 = vsel %vm63, %v47, 0
    %v1171 = vsel %vm63, %v48, 0
    %1173 = vmatpush.msra.mxu0 0.0
    %1174 = vmatpush.msra.mxu0 0.0
    %1175 = vmatpush.msra.mxu0 0.0
    %1176 = vmatpush.msra.mxu0 0.0
    %1177 = vmatpush.msra.mxu0 0.0
    %1178 = vmatpush.msra.mxu0 0.0
    %1179 = vmatpush.msra.mxu0 0.0
    %1180 = vmatpush.msra.mxu0 0.0
    %1181 = vmatpush.msra.mxu0 0.0
    %1182 = vmatpush.msra.mxu0 0.0
    %1183 = vmatpush.msra.mxu0 0.0
    %1184 = vmatpush.msra.mxu0 0.0
    %1185 = vmatpush.msra.mxu0 %v1164
    %1186 = vmatpush.msra.mxu0 %v1163
    %1187 = vmatpush.msra.mxu0 %v1162
    %1188 = vmatpush.msra.mxu0 %v1161
    %1189 = vmatmul.f32.gmra.mxu0 %v1168
    %v1190 = vpop.f32.mrf.mxu0
    %v1191 = vadd.f32 %v1166, %v1190
    %1192 = vmatmul.f32.gmra.mxu0 %v1171
    %v1193 = vpop.f32.mrf.mxu0
    %v1194 = vadd.f32 %v1166, %v1193
    %1195 = vdwg.mxu0
    %v1196 = vld [vmem:[#allocation2 + $0x38] sm:$0xff]
    %v1197 = vld [vmem:[#allocation2 + $0xa8] sm:$0xff]
    %v1198 = vld [vmem:[#allocation2 + $0x118] sm:$0xff]
    %v1199 = vld [vmem:[#allocation2 + $0x188] sm:$0xff]
    %v1200 = vld [vmem:[%s6 + $0x7] sm:$0x1]
    %v1201 = vperm.slane %v1200, 0
    %1202 = vmatpush.msra.mxu0 0.0
    %1203 = vmatpush.msra.mxu0 0.0
    %1204 = vmatpush.msra.mxu0 0.0
    %1205 = vmatpush.msra.mxu0 0.0
    %1206 = vmatpush.msra.mxu0 0.0
    %1207 = vmatpush.msra.mxu0 0.0
    %1208 = vmatpush.msra.mxu0 0.0
    %1209 = vmatpush.msra.mxu0 0.0
    %1210 = vmatpush.msra.mxu0 0.0
    %1211 = vmatpush.msra.mxu0 0.0
    %1212 = vmatpush.msra.mxu0 0.0
    %1213 = vmatpush.msra.mxu0 0.0
    %1214 = vmatpush.msra.mxu0 %v1199
    %1215 = vmatpush.msra.mxu0 %v1198
    %1216 = vmatpush.msra.mxu0 %v1197
    %1217 = vmatpush.msra.mxu0 %v1196
    %1218 = vmatmul.f32.gmra.mxu0 %v100
    %v1219 = vpop.f32.mrf.mxu0
    %v1220 = vadd.f32 %v1201, %v1219
    %1221 = vmatmul.f32.gmra.mxu0 %v103
    %v1222 = vpop.f32.mrf.mxu0
    %v1223 = vadd.f32 %v1201, %v1222
    %1224 = vdwg.mxu0
    %v1225 = vadd.f32 %v1027, %v1220
    %v1226 = vadd.f32 %v1030, %v1223
    %v1227 = vadd.f32 %v1068, %v1150
    %v1228 = vadd.f32 %v1071, %v1153
    %v1229 = vadd.f32 %v1074, %v1156
    %v1230 = vadd.f32 %v1077, %v1159
    %1231 = vxpose.xlu0.b32.start [1/16] %v1225, 128
    %1232 = vxpose.xlu0.b32.cont [2/16] %v1226, 128
    %1233 = vxpose.xlu0.b32.cont [3/16] 0.0, 128
    %1234 = vxpose.xlu0.b32.cont [4/16] 0.0, 128
    %1235 = vxpose.xlu0.b32.cont [5/16] 0.0, 128
    %1236 = vxpose.xlu0.b32.cont [6/16] 0.0, 128
    %1237 = vxpose.xlu0.b32.cont [7/16] 0.0, 128
    %1238 = vxpose.xlu0.b32.cont [8/16] 0.0, 128
    %1239 = vxpose.xlu0.b32.cont [9/16] 0.0, 128
    %1240 = vxpose.xlu0.b32.cont [10/16] 0.0, 128
    %1241 = vxpose.xlu0.b32.cont [11/16] 0.0, 128
    %1242 = vxpose.xlu0.b32.cont [12/16] 0.0, 128
    %1243 = vxpose.xlu0.b32.cont [13/16] 0.0, 128
    %1244 = vxpose.xlu0.b32.cont [14/16] 0.0, 128
    %1245 = vxpose.xlu0.b32.cont [15/16] 0.0, 128
    %1246 = vxpose.xlu0.b32.end [16/16] 0.0, 128
    %v1247 = vpop.trf.xlu0
    %v1248 = vpop.trf.xlu0
    %v1249 = vpop.trf.xlu0
    %v1250 = vpop.trf.xlu0
    %v1251 = vpop.trf.xlu0
    %v1252 = vpop.trf.xlu0
    %v1253 = vpop.trf.xlu0
    %v1254 = vpop.trf.xlu0
    %v1255 = vpop.trf.xlu0
    %v1256 = vpop.trf.xlu0
    %v1257 = vpop.trf.xlu0
    %v1258 = vpop.trf.xlu0
    %v1259 = vpop.trf.xlu0
    %v1260 = vpop.trf.xlu0
    %v1261 = vpop.trf.xlu0
    %v1262 = vpop.trf.xlu0
    %1263 = vxpose.xlu0.b32.start [1/16] %v1191, 128
    %1264 = vxpose.xlu0.b32.cont [2/16] %v1194, 128
    %1265 = vxpose.xlu0.b32.cont [3/16] 0.0, 128
    %1266 = vxpose.xlu0.b32.cont [4/16] 0.0, 128
    %1267 = vxpose.xlu0.b32.cont [5/16] 0.0, 128
    %1268 = vxpose.xlu0.b32.cont [6/16] 0.0, 128
    %1269 = vxpose.xlu0.b32.cont [7/16] 0.0, 128
    %1270 = vxpose.xlu0.b32.cont [8/16] 0.0, 128
    %1271 = vxpose.xlu0.b32.cont [9/16] 0.0, 128
    %1272 = vxpose.xlu0.b32.cont [10/16] 0.0, 128
    %1273 = vxpose.xlu0.b32.cont [11/16] 0.0, 128
    %1274 = vxpose.xlu0.b32.cont [12/16] 0.0, 128
    %1275 = vxpose.xlu0.b32.cont [13/16] 0.0, 128
    %1276 = vxpose.xlu0.b32.cont [14/16] 0.0, 128
    %1277 = vxpose.xlu0.b32.cont [15/16] 0.0, 128
    %1278 = vxpose.xlu0.b32.end [16/16] 0.0, 128
    %v1279 = vpop.trf.xlu0
    %v1280 = vpop.trf.xlu0
    %v1281 = vpop.trf.xlu0
    %v1282 = vpop.trf.xlu0
    %v1283 = vpop.trf.xlu0
    %v1284 = vpop.trf.xlu0
    %v1285 = vpop.trf.xlu0
    %v1286 = vpop.trf.xlu0
    %v1287 = vpop.trf.xlu0
    %v1288 = vpop.trf.xlu0
    %v1289 = vpop.trf.xlu0
    %v1290 = vpop.trf.xlu0
    %v1291 = vpop.trf.xlu0
    %v1292 = vpop.trf.xlu0
    %v1293 = vpop.trf.xlu0
    %v1294 = vpop.trf.xlu0
    %1295 = vxpose.xlu0.b32.start [1/16] %v1103, 128
    %1296 = vxpose.xlu0.b32.cont [2/16] %v1106, 128
    %1297 = vxpose.xlu0.b32.cont [3/16] %v1109, 128
    %1298 = vxpose.xlu0.b32.cont [4/16] %v1112, 128
    %1299 = vxpose.xlu0.b32.cont [5/16] 0.0, 128
    %1300 = vxpose.xlu0.b32.cont [6/16] 0.0, 128
    %1301 = vxpose.xlu0.b32.cont [7/16] 0.0, 128
    %1302 = vxpose.xlu0.b32.cont [8/16] 0.0, 128
    %1303 = vxpose.xlu0.b32.cont [9/16] 0.0, 128
    %1304 = vxpose.xlu0.b32.cont [10/16] 0.0, 128
    %1305 = vxpose.xlu0.b32.cont [11/16] 0.0, 128
    %1306 = vxpose.xlu0.b32.cont [12/16] 0.0, 128
    %1307 = vxpose.xlu0.b32.cont [13/16] 0.0, 128
    %1308 = vxpose.xlu0.b32.cont [14/16] 0.0, 128
    %1309 = vxpose.xlu0.b32.cont [15/16] 0.0, 128
    %1310 = vxpose.xlu0.b32.end [16/16] 0.0, 128
    %v1311 = vpop.trf.xlu0
    %v1312 = vpop.trf.xlu0
    %v1313 = vpop.trf.xlu0
    %v1314 = vpop.trf.xlu0
    %v1315 = vpop.trf.xlu0
    %v1316 = vpop.trf.xlu0
    %v1317 = vpop.trf.xlu0
    %v1318 = vpop.trf.xlu0
    %v1319 = vpop.trf.xlu0
    %v1320 = vpop.trf.xlu0
    %v1321 = vpop.trf.xlu0
    %v1322 = vpop.trf.xlu0
    %v1323 = vpop.trf.xlu0
    %v1324 = vpop.trf.xlu0
    %v1325 = vpop.trf.xlu0
    %v1326 = vpop.trf.xlu0
    %v1327 = vld [vmem:[%s3] sm:$0xff]
    %v1328 = vld [vmem:[%s3 + $0x8] sm:$0xff]
    %1329 = vxpose.xlu0.b32.start [1/16] %v1247, 128
    %1330 = vxpose.xlu0.b32.cont [2/16] 0.0, 128
    %1331 = vxpose.xlu0.b32.cont [3/16] 0.0, 128
    %1332 = vxpose.xlu0.b32.cont [4/16] 0.0, 128
    %1333 = vxpose.xlu0.b32.cont [5/16] 0.0, 128
    %1334 = vxpose.xlu0.b32.cont [6/16] 0.0, 128
    %1335 = vxpose.xlu0.b32.cont [7/16] 0.0, 128
    %1336 = vxpose.xlu0.b32.cont [8/16] 0.0, 128
    %1337 = vxpose.xlu0.b32.cont [9/16] 0.0, 128
    %1338 = vxpose.xlu0.b32.cont [10/16] 0.0, 128
    %1339 = vxpose.xlu0.b32.cont [11/16] 0.0, 128
    %1340 = vxpose.xlu0.b32.cont [12/16] 0.0, 128
    %1341 = vxpose.xlu0.b32.cont [13/16] 0.0, 128
    %1342 = vxpose.xlu0.b32.cont [14/16] 0.0, 128
    %1343 = vxpose.xlu0.b32.cont [15/16] 0.0, 128
    %1344 = vxpose.xlu0.b32.end [16/16] 0.0, 128
    %v1345 = vpop.trf.xlu0
    %v1346 = vpop.trf.xlu0
    %v1347 = vpop.trf.xlu0
    %v1348 = vpop.trf.xlu0
    %v1349 = vpop.trf.xlu0
    %v1350 = vpop.trf.xlu0
    %v1351 = vpop.trf.xlu0
    %v1352 = vpop.trf.xlu0
    %v1353 = vpop.trf.xlu0
    %v1354 = vpop.trf.xlu0
    %v1355 = vpop.trf.xlu0
    %v1356 = vpop.trf.xlu0
    %v1357 = vpop.trf.xlu0
    %v1358 = vpop.trf.xlu0
    %v1359 = vpop.trf.xlu0
    %v1360 = vpop.trf.xlu0
    %1361 = vxpose.xlu0.b32.start [1/16] %v1279, 128
    %1362 = vxpose.xlu0.b32.cont [2/16] 0.0, 128
    %1363 = vxpose.xlu0.b32.cont [3/16] 0.0, 128
    %1364 = vxpose.xlu0.b32.cont [4/16] 0.0, 128
    %1365 = vxpose.xlu0.b32.cont [5/16] 0.0, 128
    %1366 = vxpose.xlu0.b32.cont [6/16] 0.0, 128
    %1367 = vxpose.xlu0.b32.cont [7/16] 0.0, 128
    %1368 = vxpose.xlu0.b32.cont [8/16] 0.0, 128
    %1369 = vxpose.xlu0.b32.cont [9/16] 0.0, 128
    %1370 = vxpose.xlu0.b32.cont [10/16] 0.0, 128
    %1371 = vxpose.xlu0.b32.cont [11/16] 0.0, 128
    %1372 = vxpose.xlu0.b32.cont [12/16] 0.0, 128
    %1373 = vxpose.xlu0.b32.cont [13/16] 0.0, 128
    %1374 = vxpose.xlu0.b32.cont [14/16] 0.0, 128
    %1375 = vxpose.xlu0.b32.cont [15/16] 0.0, 128
    %1376 = vxpose.xlu0.b32.end [16/16] 0.0, 128
    %v1377 = vpop.trf.xlu0
    %v1378 = vpop.trf.xlu0
    %v1379 = vpop.trf.xlu0
    %v1380 = vpop.trf.xlu0
    %v1381 = vpop.trf.xlu0
    %v1382 = vpop.trf.xlu0
    %v1383 = vpop.trf.xlu0
    %v1384 = vpop.trf.xlu0
    %v1385 = vpop.trf.xlu0
    %v1386 = vpop.trf.xlu0
    %v1387 = vpop.trf.xlu0
    %v1388 = vpop.trf.xlu0
    %v1389 = vpop.trf.xlu0
    %v1390 = vpop.trf.xlu0
    %v1391 = vpop.trf.xlu0
    %v1392 = vpop.trf.xlu0
    %v1394 = vsel %vm317, %v1377, 0
    %v1397 = vsel %vm317, %v1378, 0
    %v1400 = vsel %vm317, %v1150, 0
    %v1403 = vsel %vm317, %v1153, 0
    %v1406 = vsel %vm317, %v1156, 0
    %v1409 = vsel %vm317, %v1159, 0
    %1411 = vmatpush.xpose.msra.mxu0 0.0
    %1412 = vmatpush.xpose.msra.mxu0 0.0
    %1413 = vmatpush.xpose.msra.mxu0 0.0
    %1414 = vmatpush.xpose.msra.mxu0 0.0
    %1415 = vmatpush.xpose.msra.mxu0 0.0
    %1416 = vmatpush.xpose.msra.mxu0 0.0
    %1417 = vmatpush.xpose.msra.mxu0 0.0
    %1418 = vmatpush.xpose.msra.mxu0 0.0
    %1419 = vmatpush.xpose.msra.mxu0 0.0
    %1420 = vmatpush.xpose.msra.mxu0 0.0
    %1421 = vmatpush.xpose.msra.mxu0 0.0
    %1422 = vmatpush.xpose.msra.mxu0 0.0
    %1423 = vmatpush.xpose.msra.mxu0 %v1409
    %1424 = vmatpush.xpose.msra.mxu0 %v1406
    %1425 = vmatpush.xpose.msra.mxu0 %v1403
    %1426 = vmatpush.xpose.msra.mxu0 %v1400
    %1427 = vmatmul.f32.gmra.mxu0 %v1394
    %v1428 = vpop.f32.mrf.mxu0
    %v1429 = vadd.f32 0.0, %v1428
    %1430 = vmatmul.f32.gmra.mxu0 %v1397
    %v1431 = vpop.f32.mrf.mxu0
    %v1432 = vadd.f32 0.0, %v1431
    %1433 = vdwg.mxu0
    %v1435 = vsel %vm317, %v1345, 0
    %v1438 = vsel %vm317, %v1346, 0
    %v1441 = vsel %vm317, %v1227, 0
    %v1444 = vsel %vm317, %v1228, 0
    %v1447 = vsel %vm317, %v1229, 0
    %v1450 = vsel %vm317, %v1230, 0
    %1452 = vmatpush.xpose.msra.mxu0 0.0
    %1453 = vmatpush.xpose.msra.mxu0 0.0
    %1454 = vmatpush.xpose.msra.mxu0 0.0
    %1455 = vmatpush.xpose.msra.mxu0 0.0
    %1456 = vmatpush.xpose.msra.mxu0 0.0
    %1457 = vmatpush.xpose.msra.mxu0 0.0
    %1458 = vmatpush.xpose.msra.mxu0 0.0
    %1459 = vmatpush.xpose.msra.mxu0 0.0
    %1460 = vmatpush.xpose.msra.mxu0 0.0
    %1461 = vmatpush.xpose.msra.mxu0 0.0
    %1462 = vmatpush.xpose.msra.mxu0 0.0
    %1463 = vmatpush.xpose.msra.mxu0 0.0
    %1464 = vmatpush.xpose.msra.mxu0 %v1450
    %1465 = vmatpush.xpose.msra.mxu0 %v1447
    %1466 = vmatpush.xpose.msra.mxu0 %v1444
    %1467 = vmatpush.xpose.msra.mxu0 %v1441
    %1468 = vmatmul.f32.gmra.mxu0 %v1435
    %v1469 = vpop.f32.mrf.mxu0
    %v1470 = vadd.f32 %v1429, %v1469
    %1471 = vmatmul.f32.gmra.mxu0 %v1438
    %v1472 = vpop.f32.mrf.mxu0
    %v1473 = vadd.f32 %v1432, %v1472
    %1474 = vdwg.mxu0
    %v1475 = vadd.f32 %v1470, %v1327
    %v1476 = vadd.f32 %v1473, %v1328
    %v1477 = vsel %vm63, %v1475, -inf
    %1478 = vmax.xlane.f32.xlu0 %v1477
    %v1479 = vpop.xlane.xlu0 %1478
    %v1480 = vsel %vm63, %v1476, -inf
    %1481 = vmax.xlane.f32.xlu0 %v1480
    %v1482 = vpop.xlane.xlu0 %1481
    %v1483 = vsub.f32 %v1475, %v1479
    %v1484 = vsub.f32 %v1476, %v1482
    %v1485 = vmul.f32 %v1483, 1.442695
    %v1486 = vpow.pop %v1485
    %v1487 = vmul.f32 %v1484, 1.442695
    %v1488 = vpow.pop %v1487
    %v1489 = vsel %vm63, %v1486, 0.0
    %1490 = vadd.xlane.f32.xlu0 %v1489
    %v1491 = vpop.xlane.xlu0 %1490
    %v1492 = vsel %vm63, %v1488, 0.0
    %1493 = vadd.xlane.f32.xlu0 %v1492
    %v1494 = vpop.xlane.xlu0 %1493
    %v1495 = vrcp.pop %v1491
    %v1496 = vmul.f32 %v1491, %v1495
    %v1497 = vsub.f32 1.0, %v1496
    %v1498 = vmul.f32 %v1495, %v1497
    %v1499 = vadd.f32 %v1495, %v1498
    %vm1500 = vweird.f32 %v1491
    %vm1501 = vweird.f32 %v1495
    %vm1502 = vmor %vm1500, %vm1501
    %v1503 = vsel %vm1502, %v1495, %v1499
    %v1504 = vand.u32 2147483647, %v1491
    %vm1505 = vcmp.eq.f32.partialorder %v1504, 8.507059e+37
    %v1506 = vand.u32 %v1491, 2147483648
    %v1507 = vor.u32 1.1754944e-38, %v1506
    %v1508 = vsel %vm1505, %v1507, %v1503
    %v1509 = vmul.f32 %v1486, %v1508
    %v1510 = vrcp.pop %v1494
    %v1511 = vmul.f32 %v1494, %v1510
    %v1512 = vsub.f32 1.0, %v1511
    %v1513 = vmul.f32 %v1510, %v1512
    %v1514 = vadd.f32 %v1510, %v1513
    %vm1515 = vweird.f32 %v1494
    %vm1516 = vweird.f32 %v1510
    %vm1517 = vmor %vm1515, %vm1516
    %v1518 = vsel %vm1517, %v1510, %v1514
    %v1519 = vand.u32 2147483647, %v1494
    %vm1520 = vcmp.eq.f32.partialorder %v1519, 8.507059e+37
    %v1521 = vand.u32 %v1494, 2147483648
    %v1522 = vor.u32 1.1754944e-38, %v1521
    %v1523 = vsel %vm1520, %v1522, %v1518
    %v1524 = vmul.f32 %v1488, %v1523
    %v1526 = vsel %vm63, %v1311, 0
    %v1529 = vsel %vm63, %v1509, 0
    %v1532 = vsel %vm63, %v1524, 0
    %1534 = vmatpush.xpose.msra.mxu0 0.0
    %1535 = vmatpush.xpose.msra.mxu0 0.0
    %1536 = vmatpush.xpose.msra.mxu0 0.0
    %1537 = vmatpush.xpose.msra.mxu0 0.0
    %1538 = vmatpush.xpose.msra.mxu0 0.0
    %1539 = vmatpush.xpose.msra.mxu0 0.0
    %1540 = vmatpush.xpose.msra.mxu0 0.0
    %1541 = vmatpush.xpose.msra.mxu0 0.0
    %1542 = vmatpush.xpose.msra.mxu0 0.0
    %1543 = vmatpush.xpose.msra.mxu0 0.0
    %1544 = vmatpush.xpose.msra.mxu0 0.0
    %1545 = vmatpush.xpose.msra.mxu0 0.0
    %1546 = vmatpush.xpose.msra.mxu0 0.0
    %1547 = vmatpush.xpose.msra.mxu0 0.0
    %1548 = vmatpush.xpose.msra.mxu0 %v1532
    %1549 = vmatpush.xpose.msra.mxu0 %v1529
    %1550 = vmatmul.f32.gmra.mxu0 %v1526
    %v1551 = vpop.f32.mrf.mxu0
    %v1552 = vadd.f32 0.0, %v1551
    %1553 = vdwg.mxu0
    %1554 = vxpose.xlu0.b32.start [1/16] %v1248, 128
    %1555 = vxpose.xlu0.b32.cont [2/16] 0.0, 128
    %1556 = vxpose.xlu0.b32.cont [3/16] 0.0, 128
    %1557 = vxpose.xlu0.b32.cont [4/16] 0.0, 128
    %1558 = vxpose.xlu0.b32.cont [5/16] 0.0, 128
    %1559 = vxpose.xlu0.b32.cont [6/16] 0.0, 128
    %1560 = vxpose.xlu0.b32.cont [7/16] 0.0, 128
    %1561 = vxpose.xlu0.b32.cont [8/16] 0.0, 128
    %1562 = vxpose.xlu0.b32.cont [9/16] 0.0, 128
    %1563 = vxpose.xlu0.b32.cont [10/16] 0.0, 128
    %1564 = vxpose.xlu0.b32.cont [11/16] 0.0, 128
    %1565 = vxpose.xlu0.b32.cont [12/16] 0.0, 128
    %1566 = vxpose.xlu0.b32.cont [13/16] 0.0, 128
    %1567 = vxpose.xlu0.b32.cont [14/16] 0.0, 128
    %1568 = vxpose.xlu0.b32.cont [15/16] 0.0, 128
    %1569 = vxpose.xlu0.b32.end [16/16] 0.0, 128
    %v1570 = vpop.trf.xlu0
    %v1571 = vpop.trf.xlu0
    %v1572 = vpop.trf.xlu0
    %v1573 = vpop.trf.xlu0
    %v1574 = vpop.trf.xlu0
    %v1575 = vpop.trf.xlu0
    %v1576 = vpop.trf.xlu0
    %v1577 = vpop.trf.xlu0
    %v1578 = vpop.trf.xlu0
    %v1579 = vpop.trf.xlu0
    %v1580 = vpop.trf.xlu0
    %v1581 = vpop.trf.xlu0
    %v1582 = vpop.trf.xlu0
    %v1583 = vpop.trf.xlu0
    %v1584 = vpop.trf.xlu0
    %v1585 = vpop.trf.xlu0
    %1586 = vxpose.xlu0.b32.start [1/16] %v1280, 128
    %1587 = vxpose.xlu0.b32.cont [2/16] 0.0, 128
    %1588 = vxpose.xlu0.b32.cont [3/16] 0.0, 128
    %1589 = vxpose.xlu0.b32.cont [4/16] 0.0, 128
    %1590 = vxpose.xlu0.b32.cont [5/16] 0.0, 128
    %1591 = vxpose.xlu0.b32.cont [6/16] 0.0, 128
    %1592 = vxpose.xlu0.b32.cont [7/16] 0.0, 128
    %1593 = vxpose.xlu0.b32.cont [8/16] 0.0, 128
    %1594 = vxpose.xlu0.b32.cont [9/16] 0.0, 128
    %1595 = vxpose.xlu0.b32.cont [10/16] 0.0, 128
    %1596 = vxpose.xlu0.b32.cont [11/16] 0.0, 128
    %1597 = vxpose.xlu0.b32.cont [12/16] 0.0, 128
    %1598 = vxpose.xlu0.b32.cont [13/16] 0.0, 128
    %1599 = vxpose.xlu0.b32.cont [14/16] 0.0, 128
    %1600 = vxpose.xlu0.b32.cont [15/16] 0.0, 128
    %1601 = vxpose.xlu0.b32.end [16/16] 0.0, 128
    %v1602 = vpop.trf.xlu0
    %v1603 = vpop.trf.xlu0
    %v1604 = vpop.trf.xlu0
    %v1605 = vpop.trf.xlu0
    %v1606 = vpop.trf.xlu0
    %v1607 = vpop.trf.xlu0
    %v1608 = vpop.trf.xlu0
    %v1609 = vpop.trf.xlu0
    %v1610 = vpop.trf.xlu0
    %v1611 = vpop.trf.xlu0
    %v1612 = vpop.trf.xlu0
    %v1613 = vpop.trf.xlu0
    %v1614 = vpop.trf.xlu0
    %v1615 = vpop.trf.xlu0
    %v1616 = vpop.trf.xlu0
    %v1617 = vpop.trf.xlu0
    %1618 = vrot.lane.b32.xlu0 %v1150, 120
    %v1619 = vpop.permute.xlu0 %1618
    %1620 = vrot.lane.b32.xlu0 %v1153, 120
    %v1621 = vpop.permute.xlu0 %1620
    %1622 = vrot.lane.b32.xlu0 %v1156, 120
    %v1623 = vpop.permute.xlu0 %1622
    %1624 = vrot.lane.b32.xlu0 %v1159, 120
    %v1625 = vpop.permute.xlu0 %1624
    %v1627 = vsel %vm317, %v1602, 0
    %v1630 = vsel %vm317, %v1603, 0
    %v1632 = vsel %vm317, %v1619, 0
    %v1634 = vsel %vm317, %v1621, 0
    %v1636 = vsel %vm317, %v1623, 0
    %v1638 = vsel %vm317, %v1625, 0
    %1640 = vmatpush.xpose.msra.mxu0 0.0
    %1641 = vmatpush.xpose.msra.mxu0 0.0
    %1642 = vmatpush.xpose.msra.mxu0 0.0
    %1643 = vmatpush.xpose.msra.mxu0 0.0
    %1644 = vmatpush.xpose.msra.mxu0 0.0
    %1645 = vmatpush.xpose.msra.mxu0 0.0
    %1646 = vmatpush.xpose.msra.mxu0 0.0
    %1647 = vmatpush.xpose.msra.mxu0 0.0
    %1648 = vmatpush.xpose.msra.mxu0 0.0
    %1649 = vmatpush.xpose.msra.mxu0 0.0
    %1650 = vmatpush.xpose.msra.mxu0 0.0
    %1651 = vmatpush.xpose.msra.mxu0 0.0
    %1652 = vmatpush.xpose.msra.mxu0 %v1638
    %1653 = vmatpush.xpose.msra.mxu0 %v1636
    %1654 = vmatpush.xpose.msra.mxu0 %v1634
    %1655 = vmatpush.xpose.msra.mxu0 %v1632
    %1656 = vmatmul.f32.gmra.mxu0 %v1627
    %v1657 = vpop.f32.mrf.mxu0
    %v1658 = vadd.f32 0.0, %v1657
    %1659 = vmatmul.f32.gmra.mxu0 %v1630
    %v1660 = vpop.f32.mrf.mxu0
    %v1661 = vadd.f32 0.0, %v1660
    %1662 = vdwg.mxu0
    %1663 = vrot.lane.b32.xlu0 %v1227, 120
    %v1664 = vpop.permute.xlu0 %1663
    %1665 = vrot.lane.b32.xlu0 %v1228, 120
    %v1666 = vpop.permute.xlu0 %1665
    %1667 = vrot.lane.b32.xlu0 %v1229, 120
    %v1668 = vpop.permute.xlu0 %1667
    %1669 = vrot.lane.b32.xlu0 %v1230, 120
    %v1670 = vpop.permute.xlu0 %1669
    %v1672 = vsel %vm317, %v1570, 0
    %v1675 = vsel %vm317, %v1571, 0
    %v1677 = vsel %vm317, %v1664, 0
    %v1679 = vsel %vm317, %v1666, 0
    %v1681 = vsel %vm317, %v1668, 0
    %v1683 = vsel %vm317, %v1670, 0
    %1685 = vmatpush.xpose.msra.mxu0 0.0
    %1686 = vmatpush.xpose.msra.mxu0 0.0
    %1687 = vmatpush.xpose.msra.mxu0 0.0
    %1688 = vmatpush.xpose.msra.mxu0 0.0
    %1689 = vmatpush.xpose.msra.mxu0 0.0
    %1690 = vmatpush.xpose.msra.mxu0 0.0
    %1691 = vmatpush.xpose.msra.mxu0 0.0
    %1692 = vmatpush.xpose.msra.mxu0 0.0
    %1693 = vmatpush.xpose.msra.mxu0 0.0
    %1694 = vmatpush.xpose.msra.mxu0 0.0
    %1695 = vmatpush.xpose.msra.mxu0 0.0
    %1696 = vmatpush.xpose.msra.mxu0 0.0
    %1697 = vmatpush.xpose.msra.mxu0 %v1683
    %1698 = vmatpush.xpose.msra.mxu0 %v1681
    %1699 = vmatpush.xpose.msra.mxu0 %v1679
    %1700 = vmatpush.xpose.msra.mxu0 %v1677
    %1701 = vmatmul.f32.gmra.mxu0 %v1672
    %v1702 = vpop.f32.mrf.mxu0
    %v1703 = vadd.f32 %v1658, %v1702
    %1704 = vmatmul.f32.gmra.mxu0 %v1675
    %v1705 = vpop.f32.mrf.mxu0
    %v1706 = vadd.f32 %v1661, %v1705
    %1707 = vdwg.mxu0
    %v1708 = vadd.f32 %v1703, %v1327
    %v1709 = vadd.f32 %v1706, %v1328
    %v1710 = vsel %vm63, %v1708, -inf
    %1711 = vmax.xlane.f32.xlu0 %v1710
    %v1712 = vpop.xlane.xlu0 %1711
    %v1713 = vsel %vm63, %v1709, -inf
    %1714 = vmax.xlane.f32.xlu0 %v1713
    %v1715 = vpop.xlane.xlu0 %1714
    %v1716 = vsub.f32 %v1708, %v1712
    %v1717 = vsub.f32 %v1709, %v1715
    %v1718 = vmul.f32 %v1716, 1.442695
    %v1719 = vpow.pop %v1718
    %v1720 = vmul.f32 %v1717, 1.442695
    %v1721 = vpow.pop %v1720
    %v1722 = vsel %vm63, %v1719, 0.0
    %1723 = vadd.xlane.f32.xlu0 %v1722
    %v1724 = vpop.xlane.xlu0 %1723
    %v1725 = vsel %vm63, %v1721, 0.0
    %1726 = vadd.xlane.f32.xlu0 %v1725
    %v1727 = vpop.xlane.xlu0 %1726
    %v1728 = vrcp.pop %v1724
    %v1729 = vmul.f32 %v1724, %v1728
    %v1730 = vsub.f32 1.0, %v1729
    %v1731 = vmul.f32 %v1728, %v1730
    %v1732 = vadd.f32 %v1728, %v1731
    %vm1733 = vweird.f32 %v1724
    %vm1734 = vweird.f32 %v1728
    %vm1735 = vmor %vm1733, %vm1734
    %v1736 = vsel %vm1735, %v1728, %v1732
    %v1737 = vand.u32 2147483647, %v1724
    %vm1738 = vcmp.eq.f32.partialorder %v1737, 8.507059e+37
    %v1739 = vand.u32 %v1724, 2147483648
    %v1740 = vor.u32 1.1754944e-38, %v1739
    %v1741 = vsel %vm1738, %v1740, %v1736
    %v1742 = vmul.f32 %v1719, %v1741
    %v1743 = vrcp.pop %v1727
    %v1744 = vmul.f32 %v1727, %v1743
    %v1745 = vsub.f32 1.0, %v1744
    %v1746 = vmul.f32 %v1743, %v1745
    %v1747 = vadd.f32 %v1743, %v1746
    %vm1748 = vweird.f32 %v1727
    %vm1749 = vweird.f32 %v1743
    %vm1750 = vmor %vm1748, %vm1749
    %v1751 = vsel %vm1750, %v1743, %v1747
    %v1752 = vand.u32 2147483647, %v1727
    %vm1753 = vcmp.eq.f32.partialorder %v1752, 8.507059e+37
    %v1754 = vand.u32 %v1727, 2147483648
    %v1755 = vor.u32 1.1754944e-38, %v1754
    %v1756 = vsel %vm1753, %v1755, %v1751
    %v1757 = vmul.f32 %v1721, %v1756
    %v1759 = vsel %vm63, %v1312, 0
    %v1762 = vsel %vm63, %v1742, 0
    %v1765 = vsel %vm63, %v1757, 0
    %1767 = vmatpush.xpose.msra.mxu0 0.0
    %1768 = vmatpush.xpose.msra.mxu0 0.0
    %1769 = vmatpush.xpose.msra.mxu0 0.0
    %1770 = vmatpush.xpose.msra.mxu0 0.0
    %1771 = vmatpush.xpose.msra.mxu0 0.0
    %1772 = vmatpush.xpose.msra.mxu0 0.0
    %1773 = vmatpush.xpose.msra.mxu0 0.0
    %1774 = vmatpush.xpose.msra.mxu0 0.0
    %1775 = vmatpush.xpose.msra.mxu0 0.0
    %1776 = vmatpush.xpose.msra.mxu0 0.0
    %1777 = vmatpush.xpose.msra.mxu0 0.0
    %1778 = vmatpush.xpose.msra.mxu0 0.0
    %1779 = vmatpush.xpose.msra.mxu0 0.0
    %1780 = vmatpush.xpose.msra.mxu0 0.0
    %1781 = vmatpush.xpose.msra.mxu0 %v1765
    %1782 = vmatpush.xpose.msra.mxu0 %v1762
    %1783 = vmatmul.f32.gmra.mxu0 %v1759
    %v1784 = vpop.f32.mrf.mxu0
    %v1785 = vadd.f32 0.0, %v1784
    %1786 = vdwg.mxu0
    %1787 = vxpose.xlu0.b32.start [1/16] %v1249, 128
    %1788 = vxpose.xlu0.b32.cont [2/16] 0.0, 128
    %1789 = vxpose.xlu0.b32.cont [3/16] 0.0, 128
    %1790 = vxpose.xlu0.b32.cont [4/16] 0.0, 128
    %1791 = vxpose.xlu0.b32.cont [5/16] 0.0, 128
    %1792 = vxpose.xlu0.b32.cont [6/16] 0.0, 128
    %1793 = vxpose.xlu0.b32.cont [7/16] 0.0, 128
    %1794 = vxpose.xlu0.b32.cont [8/16] 0.0, 128
    %1795 = vxpose.xlu0.b32.cont [9/16] 0.0, 128
    %1796 = vxpose.xlu0.b32.cont [10/16] 0.0, 128
    %1797 = vxpose.xlu0.b32.cont [11/16] 0.0, 128
    %1798 = vxpose.xlu0.b32.cont [12/16] 0.0, 128
    %1799 = vxpose.xlu0.b32.cont [13/16] 0.0, 128
    %1800 = vxpose.xlu0.b32.cont [14/16] 0.0, 128
    %1801 = vxpose.xlu0.b32.cont [15/16] 0.0, 128
    %1802 = vxpose.xlu0.b32.end [16/16] 0.0, 128
    %v1803 = vpop.trf.xlu0
    %v1804 = vpop.trf.xlu0
    %v1805 = vpop.trf.xlu0
    %v1806 = vpop.trf.xlu0
    %v1807 = vpop.trf.xlu0
    %v1808 = vpop.trf.xlu0
    %v1809 = vpop.trf.xlu0
    %v1810 = vpop.trf.xlu0
    %v1811 = vpop.trf.xlu0
    %v1812 = vpop.trf.xlu0
    %v1813 = vpop.trf.xlu0
    %v1814 = vpop.trf.xlu0
    %v1815 = vpop.trf.xlu0
    %v1816 = vpop.trf.xlu0
    %v1817 = vpop.trf.xlu0
    %v1818 = vpop.trf.xlu0
    %1819 = vxpose.xlu0.b32.start [1/16] %v1281, 128
    %1820 = vxpose.xlu0.b32.cont [2/16] 0.0, 128
    %1821 = vxpose.xlu0.b32.cont [3/16] 0.0, 128
    %1822 = vxpose.xlu0.b32.cont [4/16] 0.0, 128
    %1823 = vxpose.xlu0.b32.cont [5/16] 0.0, 128
    %1824 = vxpose.xlu0.b32.cont [6/16] 0.0, 128
    %1825 = vxpose.xlu0.b32.cont [7/16] 0.0, 128
    %1826 = vxpose.xlu0.b32.cont [8/16] 0.0, 128
    %1827 = vxpose.xlu0.b32.cont [9/16] 0.0, 128
    %1828 = vxpose.xlu0.b32.cont [10/16] 0.0, 128
    %1829 = vxpose.xlu0.b32.cont [11/16] 0.0, 128
    %1830 = vxpose.xlu0.b32.cont [12/16] 0.0, 128
    %1831 = vxpose.xlu0.b32.cont [13/16] 0.0, 128
    %1832 = vxpose.xlu0.b32.cont [14/16] 0.0, 128
    %1833 = vxpose.xlu0.b32.cont [15/16] 0.0, 128
    %1834 = vxpose.xlu0.b32.end [16/16] 0.0, 128
    %v1835 = vpop.trf.xlu0
    %v1836 = vpop.trf.xlu0
    %v1837 = vpop.trf.xlu0
    %v1838 = vpop.trf.xlu0
    %v1839 = vpop.trf.xlu0
    %v1840 = vpop.trf.xlu0
    %v1841 = vpop.trf.xlu0
    %v1842 = vpop.trf.xlu0
    %v1843 = vpop.trf.xlu0
    %v1844 = vpop.trf.xlu0
    %v1845 = vpop.trf.xlu0
    %v1846 = vpop.trf.xlu0
    %v1847 = vpop.trf.xlu0
    %v1848 = vpop.trf.xlu0
    %v1849 = vpop.trf.xlu0
    %v1850 = vpop.trf.xlu0
    %1851 = vrot.lane.b32.xlu0 %v1150, 112
    %v1852 = vpop.permute.xlu0 %1851
    %1853 = vrot.lane.b32.xlu0 %v1153, 112
    %v1854 = vpop.permute.xlu0 %1853
    %1855 = vrot.lane.b32.xlu0 %v1156, 112
    %v1856 = vpop.permute.xlu0 %1855
    %1857 = vrot.lane.b32.xlu0 %v1159, 112
    %v1858 = vpop.permute.xlu0 %1857
    %v1860 = vsel %vm317, %v1835, 0
    %v1863 = vsel %vm317, %v1836, 0
    %v1865 = vsel %vm317, %v1852, 0
    %v1867 = vsel %vm317, %v1854, 0
    %v1869 = vsel %vm317, %v1856, 0
    %v1871 = vsel %vm317, %v1858, 0
    %1873 = vmatpush.xpose.msra.mxu0 0.0
    %1874 = vmatpush.xpose.msra.mxu0 0.0
    %1875 = vmatpush.xpose.msra.mxu0 0.0
    %1876 = vmatpush.xpose.msra.mxu0 0.0
    %1877 = vmatpush.xpose.msra.mxu0 0.0
    %1878 = vmatpush.xpose.msra.mxu0 0.0
    %1879 = vmatpush.xpose.msra.mxu0 0.0
    %1880 = vmatpush.xpose.msra.mxu0 0.0
    %1881 = vmatpush.xpose.msra.mxu0 0.0
    %1882 = vmatpush.xpose.msra.mxu0 0.0
    %1883 = vmatpush.xpose.msra.mxu0 0.0
    %1884 = vmatpush.xpose.msra.mxu0 0.0
    %1885 = vmatpush.xpose.msra.mxu0 %v1871
    %1886 = vmatpush.xpose.msra.mxu0 %v1869
    %1887 = vmatpush.xpose.msra.mxu0 %v1867
    %1888 = vmatpush.xpose.msra.mxu0 %v1865
    %1889 = vmatmul.f32.gmra.mxu0 %v1860
    %v1890 = vpop.f32.mrf.mxu0
    %v1891 = vadd.f32 0.0, %v1890
    %1892 = vmatmul.f32.gmra.mxu0 %v1863
    %v1893 = vpop.f32.mrf.mxu0
    %v1894 = vadd.f32 0.0, %v1893
    %1895 = vdwg.mxu0
    %1896 = vrot.lane.b32.xlu0 %v1227, 112
    %v1897 = vpop.permute.xlu0 %1896
    %1898 = vrot.lane.b32.xlu0 %v1228, 112
    %v1899 = vpop.permute.xlu0 %1898
    %1900 = vrot.lane.b32.xlu0 %v1229, 112
    %v1901 = vpop.permute.xlu0 %1900
    %1902 = vrot.lane.b32.xlu0 %v1230, 112
    %v1903 = vpop.permute.xlu0 %1902
    %v1905 = vsel %vm317, %v1803, 0
    %v1908 = vsel %vm317, %v1804, 0
    %v1910 = vsel %vm317, %v1897, 0
    %v1912 = vsel %vm317, %v1899, 0
    %v1914 = vsel %vm317, %v1901, 0
    %v1916 = vsel %vm317, %v1903, 0
    %1918 = vmatpush.xpose.msra.mxu0 0.0
    %1919 = vmatpush.xpose.msra.mxu0 0.0
    %1920 = vmatpush.xpose.msra.mxu0 0.0
    %1921 = vmatpush.xpose.msra.mxu0 0.0
    %1922 = vmatpush.xpose.msra.mxu0 0.0
    %1923 = vmatpush.xpose.msra.mxu0 0.0
    %1924 = vmatpush.xpose.msra.mxu0 0.0
    %1925 = vmatpush.xpose.msra.mxu0 0.0
    %1926 = vmatpush.xpose.msra.mxu0 0.0
    %1927 = vmatpush.xpose.msra.mxu0 0.0
    %1928 = vmatpush.xpose.msra.mxu0 0.0
    %1929 = vmatpush.xpose.msra.mxu0 0.0
    %1930 = vmatpush.xpose.msra.mxu0 %v1916
    %1931 = vmatpush.xpose.msra.mxu0 %v1914
    %1932 = vmatpush.xpose.msra.mxu0 %v1912
    %1933 = vmatpush.xpose.msra.mxu0 %v1910
    %1934 = vmatmul.f32.gmra.mxu0 %v1905
    %v1935 = vpop.f32.mrf.mxu0
    %v1936 = vadd.f32 %v1891, %v1935
    %1937 = vmatmul.f32.gmra.mxu0 %v1908
    %v1938 = vpop.f32.mrf.mxu0
    %v1939 = vadd.f32 %v1894, %v1938
    %1940 = vdwg.mxu0
    %v1941 = vadd.f32 %v1936, %v1327
    %v1942 = vadd.f32 %v1939, %v1328
    %v1943 = vsel %vm63, %v1941, -inf
    %1944 = vmax.xlane.f32.xlu0 %v1943
    %v1945 = vpop.xlane.xlu0 %1944
    %v1946 = vsel %vm63, %v1942, -inf
    %1947 = vmax.xlane.f32.xlu0 %v1946
    %v1948 = vpop.xlane.xlu0 %1947
    %v1949 = vsub.f32 %v1941, %v1945
    %v1950 = vsub.f32 %v1942, %v1948
    %v1951 = vmul.f32 %v1949, 1.442695
    %v1952 = vpow.pop %v1951
    %v1953 = vmul.f32 %v1950, 1.442695
    %v1954 = vpow.pop %v1953
    %v1955 = vsel %vm63, %v1952, 0.0
    %1956 = vadd.xlane.f32.xlu0 %v1955
    %v1957 = vpop.xlane.xlu0 %1956
    %v1958 = vsel %vm63, %v1954, 0.0
    %1959 = vadd.xlane.f32.xlu0 %v1958
    %v1960 = vpop.xlane.xlu0 %1959
    %v1961 = vrcp.pop %v1957
    %v1962 = vmul.f32 %v1957, %v1961
    %v1963 = vsub.f32 1.0, %v1962
    %v1964 = vmul.f32 %v1961, %v1963
    %v1965 = vadd.f32 %v1961, %v1964
    %vm1966 = vweird.f32 %v1957
    %vm1967 = vweird.f32 %v1961
    %vm1968 = vmor %vm1966, %vm1967
    %v1969 = vsel %vm1968, %v1961, %v1965
    %v1970 = vand.u32 2147483647, %v1957
    %vm1971 = vcmp.eq.f32.partialorder %v1970, 8.507059e+37
    %v1972 = vand.u32 %v1957, 2147483648
    %v1973 = vor.u32 1.1754944e-38, %v1972
    %v1974 = vsel %vm1971, %v1973, %v1969
    %v1975 = vmul.f32 %v1952, %v1974
    %v1976 = vrcp.pop %v1960
    %v1977 = vmul.f32 %v1960, %v1976
    %v1978 = vsub.f32 1.0, %v1977
    %v1979 = vmul.f32 %v1976, %v1978
    %v1980 = vadd.f32 %v1976, %v1979
    %vm1981 = vweird.f32 %v1960
    %vm1982 = vweird.f32 %v1976
    %vm1983 = vmor %vm1981, %vm1982
    %v1984 = vsel %vm1983, %v1976, %v1980
    %v1985 = vand.u32 2147483647, %v1960
    %vm1986 = vcmp.eq.f32.partialorder %v1985, 8.507059e+37
    %v1987 = vand.u32 %v1960, 2147483648
    %v1988 = vor.u32 1.1754944e-38, %v1987
    %v1989 = vsel %vm1986, %v1988, %v1984
    %v1990 = vmul.f32 %v1954, %v1989
    %v1992 = vsel %vm63, %v1313, 0
    %v1995 = vsel %vm63, %v1975, 0
    %v1998 = vsel %vm63, %v1990, 0
    %2000 = vmatpush.xpose.msra.mxu0 0.0
    %2001 = vmatpush.xpose.msra.mxu0 0.0
    %2002 = vmatpush.xpose.msra.mxu0 0.0
    %2003 = vmatpush.xpose.msra.mxu0 0.0
    %2004 = vmatpush.xpose.msra.mxu0 0.0
    %2005 = vmatpush.xpose.msra.mxu0 0.0
    %2006 = vmatpush.xpose.msra.mxu0 0.0
    %2007 = vmatpush.xpose.msra.mxu0 0.0
    %2008 = vmatpush.xpose.msra.mxu0 0.0
    %2009 = vmatpush.xpose.msra.mxu0 0.0
    %2010 = vmatpush.xpose.msra.mxu0 0.0
    %2011 = vmatpush.xpose.msra.mxu0 0.0
    %2012 = vmatpush.xpose.msra.mxu0 0.0
    %2013 = vmatpush.xpose.msra.mxu0 0.0
    %2014 = vmatpush.xpose.msra.mxu0 %v1998
    %2015 = vmatpush.xpose.msra.mxu0 %v1995
    %2016 = vmatmul.f32.gmra.mxu0 %v1992
    %v2017 = vpop.f32.mrf.mxu0
    %v2018 = vadd.f32 0.0, %v2017
    %2019 = vdwg.mxu0
    %2020 = vxpose.xlu0.b32.start [1/16] %v1250, 128
    %2021 = vxpose.xlu0.b32.cont [2/16] 0.0, 128
    %2022 = vxpose.xlu0.b32.cont [3/16] 0.0, 128
    %2023 = vxpose.xlu0.b32.cont [4/16] 0.0, 128
    %2024 = vxpose.xlu0.b32.cont [5/16] 0.0, 128
    %2025 = vxpose.xlu0.b32.cont [6/16] 0.0, 128
    %2026 = vxpose.xlu0.b32.cont [7/16] 0.0, 128
    %2027 = vxpose.xlu0.b32.cont [8/16] 0.0, 128
    %2028 = vxpose.xlu0.b32.cont [9/16] 0.0, 128
    %2029 = vxpose.xlu0.b32.cont [10/16] 0.0, 128
    %2030 = vxpose.xlu0.b32.cont [11/16] 0.0, 128
    %2031 = vxpose.xlu0.b32.cont [12/16] 0.0, 128
    %2032 = vxpose.xlu0.b32.cont [13/16] 0.0, 128
    %2033 = vxpose.xlu0.b32.cont [14/16] 0.0, 128
    %2034 = vxpose.xlu0.b32.cont [15/16] 0.0, 128
    %2035 = vxpose.xlu0.b32.end [16/16] 0.0, 128
    %v2036 = vpop.trf.xlu0
    %v2037 = vpop.trf.xlu0
    %v2038 = vpop.trf.xlu0
    %v2039 = vpop.trf.xlu0
    %v2040 = vpop.trf.xlu0
    %v2041 = vpop.trf.xlu0
    %v2042 = vpop.trf.xlu0
    %v2043 = vpop.trf.xlu0
    %v2044 = vpop.trf.xlu0
    %v2045 = vpop.trf.xlu0
    %v2046 = vpop.trf.xlu0
    %v2047 = vpop.trf.xlu0
    %v2048 = vpop.trf.xlu0
    %v2049 = vpop.trf.xlu0
    %v2050 = vpop.trf.xlu0
    %v2051 = vpop.trf.xlu0
    %2052 = vxpose.xlu0.b32.start [1/16] %v1282, 128
    %2053 = vxpose.xlu0.b32.cont [2/16] 0.0, 128
    %2054 = vxpose.xlu0.b32.cont [3/16] 0.0, 128
    %2055 = vxpose.xlu0.b32.cont [4/16] 0.0, 128
    %2056 = vxpose.xlu0.b32.cont [5/16] 0.0, 128
    %2057 = vxpose.xlu0.b32.cont [6/16] 0.0, 128
    %2058 = vxpose.xlu0.b32.cont [7/16] 0.0, 128
    %2059 = vxpose.xlu0.b32.cont [8/16] 0.0, 128
    %2060 = vxpose.xlu0.b32.cont [9/16] 0.0, 128
    %2061 = vxpose.xlu0.b32.cont [10/16] 0.0, 128
    %2062 = vxpose.xlu0.b32.cont [11/16] 0.0, 128
    %2063 = vxpose.xlu0.b32.cont [12/16] 0.0, 128
    %2064 = vxpose.xlu0.b32.cont [13/16] 0.0, 128
    %2065 = vxpose.xlu0.b32.cont [14/16] 0.0, 128
    %2066 = vxpose.xlu0.b32.cont [15/16] 0.0, 128
    %2067 = vxpose.xlu0.b32.end [16/16] 0.0, 128
    %v2068 = vpop.trf.xlu0
    %v2069 = vpop.trf.xlu0
    %v2070 = vpop.trf.xlu0
    %v2071 = vpop.trf.xlu0
    %v2072 = vpop.trf.xlu0
    %v2073 = vpop.trf.xlu0
    %v2074 = vpop.trf.xlu0
    %v2075 = vpop.trf.xlu0
    %v2076 = vpop.trf.xlu0
    %v2077 = vpop.trf.xlu0
    %v2078 = vpop.trf.xlu0
    %v2079 = vpop.trf.xlu0
    %v2080 = vpop.trf.xlu0
    %v2081 = vpop.trf.xlu0
    %v2082 = vpop.trf.xlu0
    %v2083 = vpop.trf.xlu0
    %2084 = vrot.lane.b32.xlu0 %v1150, 104
    %v2085 = vpop.permute.xlu0 %2084
    %2086 = vrot.lane.b32.xlu0 %v1153, 104
    %v2087 = vpop.permute.xlu0 %2086
    %2088 = vrot.lane.b32.xlu0 %v1156, 104
    %v2089 = vpop.permute.xlu0 %2088
    %2090 = vrot.lane.b32.xlu0 %v1159, 104
    %v2091 = vpop.permute.xlu0 %2090
    %v2093 = vsel %vm317, %v2068, 0
    %v2096 = vsel %vm317, %v2069, 0
    %v2098 = vsel %vm317, %v2085, 0
    %v2100 = vsel %vm317, %v2087, 0
    %v2102 = vsel %vm317, %v2089, 0
    %v2104 = vsel %vm317, %v2091, 0
    %2106 = vmatpush.xpose.msra.mxu0 0.0
    %2107 = vmatpush.xpose.msra.mxu0 0.0
    %2108 = vmatpush.xpose.msra.mxu0 0.0
    %2109 = vmatpush.xpose.msra.mxu0 0.0
    %2110 = vmatpush.xpose.msra.mxu0 0.0
    %2111 = vmatpush.xpose.msra.mxu0 0.0
    %2112 = vmatpush.xpose.msra.mxu0 0.0
    %2113 = vmatpush.xpose.msra.mxu0 0.0
    %2114 = vmatpush.xpose.msra.mxu0 0.0
    %2115 = vmatpush.xpose.msra.mxu0 0.0
    %2116 = vmatpush.xpose.msra.mxu0 0.0
    %2117 = vmatpush.xpose.msra.mxu0 0.0
    %2118 = vmatpush.xpose.msra.mxu0 %v2104
    %2119 = vmatpush.xpose.msra.mxu0 %v2102
    %2120 = vmatpush.xpose.msra.mxu0 %v2100
    %2121 = vmatpush.xpose.msra.mxu0 %v2098
    %2122 = vmatmul.f32.gmra.mxu0 %v2093
    %v2123 = vpop.f32.mrf.mxu0
    %v2124 = vadd.f32 0.0, %v2123
    %2125 = vmatmul.f32.gmra.mxu0 %v2096
    %v2126 = vpop.f32.mrf.mxu0
    %v2127 = vadd.f32 0.0, %v2126
    %2128 = vdwg.mxu0
    %2129 = vrot.lane.b32.xlu0 %v1227, 104
    %v2130 = vpop.permute.xlu0 %2129
    %2131 = vrot.lane.b32.xlu0 %v1228, 104
    %v2132 = vpop.permute.xlu0 %2131
    %2133 = vrot.lane.b32.xlu0 %v1229, 104
    %v2134 = vpop.permute.xlu0 %2133
    %2135 = vrot.lane.b32.xlu0 %v1230, 104
    %v2136 = vpop.permute.xlu0 %2135
    %v2138 = vsel %vm317, %v2036, 0
    %v2141 = vsel %vm317, %v2037, 0
    %v2143 = vsel %vm317, %v2130, 0
    %v2145 = vsel %vm317, %v2132, 0
    %v2147 = vsel %vm317, %v2134, 0
    %v2149 = vsel %vm317, %v2136, 0
    %2151 = vmatpush.xpose.msra.mxu0 0.0
    %2152 = vmatpush.xpose.msra.mxu0 0.0
    %2153 = vmatpush.xpose.msra.mxu0 0.0
    %2154 = vmatpush.xpose.msra.mxu0 0.0
    %2155 = vmatpush.xpose.msra.mxu0 0.0
    %2156 = vmatpush.xpose.msra.mxu0 0.0
    %2157 = vmatpush.xpose.msra.mxu0 0.0
    %2158 = vmatpush.xpose.msra.mxu0 0.0
    %2159 = vmatpush.xpose.msra.mxu0 0.0
    %2160 = vmatpush.xpose.msra.mxu0 0.0
    %2161 = vmatpush.xpose.msra.mxu0 0.0
    %2162 = vmatpush.xpose.msra.mxu0 0.0
    %2163 = vmatpush.xpose.msra.mxu0 %v2149
    %2164 = vmatpush.xpose.msra.mxu0 %v2147
    %2165 = vmatpush.xpose.msra.mxu0 %v2145
    %2166 = vmatpush.xpose.msra.mxu0 %v2143
    %2167 = vmatmul.f32.gmra.mxu0 %v2138
    %v2168 = vpop.f32.mrf.mxu0
    %v2169 = vadd.f32 %v2124, %v2168
    %2170 = vmatmul.f32.gmra.mxu0 %v2141
    %v2171 = vpop.f32.mrf.mxu0
    %v2172 = vadd.f32 %v2127, %v2171
    %2173 = vdwg.mxu0
    %v2174 = vadd.f32 %v2169, %v1327
    %v2175 = vadd.f32 %v2172, %v1328
    %v2176 = vsel %vm63, %v2174, -inf
    %2177 = vmax.xlane.f32.xlu0 %v2176
    %v2178 = vpop.xlane.xlu0 %2177
    %v2179 = vsel %vm63, %v2175, -inf
    %2180 = vmax.xlane.f32.xlu0 %v2179
    %v2181 = vpop.xlane.xlu0 %2180
    %v2182 = vsub.f32 %v2174, %v2178
    %v2183 = vsub.f32 %v2175, %v2181
    %v2184 = vmul.f32 %v2182, 1.442695
    %v2185 = vpow.pop %v2184
    %v2186 = vmul.f32 %v2183, 1.442695
    %v2187 = vpow.pop %v2186
    %v2188 = vsel %vm63, %v2185, 0.0
    %2189 = vadd.xlane.f32.xlu0 %v2188
    %v2190 = vpop.xlane.xlu0 %2189
    %v2191 = vsel %vm63, %v2187, 0.0
    %2192 = vadd.xlane.f32.xlu0 %v2191
    %v2193 = vpop.xlane.xlu0 %2192
    %v2194 = vrcp.pop %v2190
    %v2195 = vmul.f32 %v2190, %v2194
    %v2196 = vsub.f32 1.0, %v2195
    %v2197 = vmul.f32 %v2194, %v2196
    %v2198 = vadd.f32 %v2194, %v2197
    %vm2199 = vweird.f32 %v2190
    %vm2200 = vweird.f32 %v2194
    %vm2201 = vmor %vm2199, %vm2200
    %v2202 = vsel %vm2201, %v2194, %v2198
    %v2203 = vand.u32 2147483647, %v2190
    %vm2204 = vcmp.eq.f32.partialorder %v2203, 8.507059e+37
    %v2205 = vand.u32 %v2190, 2147483648
    %v2206 = vor.u32 1.1754944e-38, %v2205
    %v2207 = vsel %vm2204, %v2206, %v2202
    %v2208 = vmul.f32 %v2185, %v2207
    %v2209 = vrcp.pop %v2193
    %v2210 = vmul.f32 %v2193, %v2209
    %v2211 = vsub.f32 1.0, %v2210
    %v2212 = vmul.f32 %v2209, %v2211
    %v2213 = vadd.f32 %v2209, %v2212
    %vm2214 = vweird.f32 %v2193
    %vm2215 = vweird.f32 %v2209
    %vm2216 = vmor %vm2214, %vm2215
    %v2217 = vsel %vm2216, %v2209, %v2213
    %v2218 = vand.u32 2147483647, %v2193
    %vm2219 = vcmp.eq.f32.partialorder %v2218, 8.507059e+37
    %v2220 = vand.u32 %v2193, 2147483648
    %v2221 = vor.u32 1.1754944e-38, %v2220
    %v2222 = vsel %vm2219, %v2221, %v2217
    %v2223 = vmul.f32 %v2187, %v2222
    %v2225 = vsel %vm63, %v1314, 0
    %v2228 = vsel %vm63, %v2208, 0
    %v2231 = vsel %vm63, %v2223, 0
    %2233 = vmatpush.xpose.msra.mxu0 0.0
    %2234 = vmatpush.xpose.msra.mxu0 0.0
    %2235 = vmatpush.xpose.msra.mxu0 0.0
    %2236 = vmatpush.xpose.msra.mxu0 0.0
    %2237 = vmatpush.xpose.msra.mxu0 0.0
    %2238 = vmatpush.xpose.msra.mxu0 0.0
    %2239 = vmatpush.xpose.msra.mxu0 0.0
    %2240 = vmatpush.xpose.msra.mxu0 0.0
    %2241 = vmatpush.xpose.msra.mxu0 0.0
    %2242 = vmatpush.xpose.msra.mxu0 0.0
    %2243 = vmatpush.xpose.msra.mxu0 0.0
    %2244 = vmatpush.xpose.msra.mxu0 0.0
    %2245 = vmatpush.xpose.msra.mxu0 0.0
    %2246 = vmatpush.xpose.msra.mxu0 0.0
    %2247 = vmatpush.xpose.msra.mxu0 %v2231
    %2248 = vmatpush.xpose.msra.mxu0 %v2228
    %2249 = vmatmul.f32.gmra.mxu0 %v2225
    %v2250 = vpop.f32.mrf.mxu0
    %v2251 = vadd.f32 0.0, %v2250
    %2252 = vdwg.mxu0
    %2253 = vxpose.xlu0.b32.start [1/16] %v1552, 128
    %2254 = vxpose.xlu0.b32.cont [2/16] %v1785, 128
    %2255 = vxpose.xlu0.b32.cont [3/16] %v2018, 128
    %2256 = vxpose.xlu0.b32.cont [4/16] %v2251, 128
    %2257 = vxpose.xlu0.b32.cont [5/16] 0.0, 128
    %2258 = vxpose.xlu0.b32.cont [6/16] 0.0, 128
    %2259 = vxpose.xlu0.b32.cont [7/16] 0.0, 128
    %2260 = vxpose.xlu0.b32.cont [8/16] 0.0, 128
    %2261 = vxpose.xlu0.b32.cont [9/16] 0.0, 128
    %2262 = vxpose.xlu0.b32.cont [10/16] 0.0, 128
    %2263 = vxpose.xlu0.b32.cont [11/16] 0.0, 128
    %2264 = vxpose.xlu0.b32.cont [12/16] 0.0, 128
    %2265 = vxpose.xlu0.b32.cont [13/16] 0.0, 128
    %2266 = vxpose.xlu0.b32.cont [14/16] 0.0, 128
    %2267 = vxpose.xlu0.b32.cont [15/16] 0.0, 128
    %2268 = vxpose.xlu0.b32.end [16/16] 0.0, 128
    %v2269 = vpop.trf.xlu0
    %v2270 = vpop.trf.xlu0
    %v2271 = vpop.trf.xlu0
    %v2272 = vpop.trf.xlu0
    %v2273 = vpop.trf.xlu0
    %v2274 = vpop.trf.xlu0
    %v2275 = vpop.trf.xlu0
    %v2276 = vpop.trf.xlu0
    %v2277 = vpop.trf.xlu0
    %v2278 = vpop.trf.xlu0
    %v2279 = vpop.trf.xlu0
    %v2280 = vpop.trf.xlu0
    %v2281 = vpop.trf.xlu0
    %v2282 = vpop.trf.xlu0
    %v2283 = vpop.trf.xlu0
    %v2284 = vpop.trf.xlu0
    %v2285 = vld [vmem:[#allocation2 + $0x60] sm:$0xff]
    %v2286 = vld [vmem:[#allocation2 + $0xd0] sm:$0xff]
    %v2287 = vld [vmem:[#allocation2 + $0x140] sm:$0xff]
    %v2288 = vld [vmem:[#allocation2 + $0x1b0] sm:$0xff]
    %v2289 = vld [vmem:[%s6 + $0xc] sm:$0x1]
    %v2290 = vperm.slane %v2289, 0
    %v2292 = vsel %vm63, %v2269, 0
    %v2295 = vsel %vm63, %v2270, 0
    %2297 = vmatpush.msra.mxu0 0.0
    %2298 = vmatpush.msra.mxu0 0.0
    %2299 = vmatpush.msra.mxu0 0.0
    %2300 = vmatpush.msra.mxu0 0.0
    %2301 = vmatpush.msra.mxu0 0.0
    %2302 = vmatpush.msra.mxu0 0.0
    %2303 = vmatpush.msra.mxu0 0.0
    %2304 = vmatpush.msra.mxu0 0.0
    %2305 = vmatpush.msra.mxu0 0.0
    %2306 = vmatpush.msra.mxu0 0.0
    %2307 = vmatpush.msra.mxu0 0.0
    %2308 = vmatpush.msra.mxu0 0.0
    %2309 = vmatpush.msra.mxu0 %v2288
    %2310 = vmatpush.msra.mxu0 %v2287
    %2311 = vmatpush.msra.mxu0 %v2286
    %2312 = vmatpush.msra.mxu0 %v2285
    %2313 = vmatmul.f32.gmra.mxu0 %v2292
    %v2314 = vpop.f32.mrf.mxu0
    %v2315 = vadd.f32 %v2290, %v2314
    %2316 = vmatmul.f32.gmra.mxu0 %v2295
    %v2317 = vpop.f32.mrf.mxu0
    %v2318 = vadd.f32 %v2290, %v2317
    %2319 = vdwg.mxu0
    %v2320 = vadd.f32 %v995, %v2315
    %v2321 = vadd.f32 %v996, %v2318
    %v2322 = vld [vmem:[%s6 + $0x10] sm:$0x1]
    %v2323 = vld [vmem:[%s6 + $0x13] sm:$0x1]
    %v2324 = vsel %vm63, %v2320, 0.0
    %2325 = vadd.xlane.f32.xlu0 %v2324
    %v2326 = vpop.xlane.xlu0 %2325
    %v2327 = vsel %vm63, %v2321, 0.0
    %2328 = vadd.xlane.f32.xlu0 %v2327
    %v2329 = vpop.xlane.xlu0 %2328
    %v2330 = vmul.f32 %v2326, %v952
    %v2331 = vmul.f32 %v2329, %v952
    %v2332 = vsub.f32 %v2320, %v2330
    %v2333 = vsub.f32 %v2321, %v2331
    %v2334 = vmul.f32 %v2332, %v2332
    %v2335 = vmul.f32 %v2333, %v2333
    %v2336 = vsel %vm63, %v2334, 0.0
    %2337 = vadd.xlane.f32.xlu0 %v2336
    %v2338 = vpop.xlane.xlu0 %2337
    %v2339 = vsel %vm63, %v2335, 0.0
    %2340 = vadd.xlane.f32.xlu0 %v2339
    %v2341 = vpop.xlane.xlu0 %2340
    %v2342 = vmul.f32 %v2338, %v952
    %v2343 = vmul.f32 %v2341, %v952
    %v2344 = vadd.f32 %v2342, 1e-05
    %v2345 = vadd.f32 %v2343, 1e-05
    %v2346 = vrsqrt.pop %v2344
    %v2347 = vmul.f32 %v2346, %v2344
    %v2348 = vmul.f32 %v2347, %v2346
    %v2349 = vmul.f32 0.5, %v2348
    %v2350 = vsub.f32 1.5, %v2349
    %v2351 = vmul.f32 %v2346, %v2350
    %vm2352 = vweird.f32 %v2344
    %vm2353 = vweird.f32 %v2346
    %vm2354 = vmor %vm2352, %vm2353
    %v2355 = vsel %vm2354, %v2346, %v2351
    %v2356 = vrsqrt.pop %v2345
    %v2357 = vmul.f32 %v2356, %v2345
    %v2358 = vmul.f32 %v2357, %v2356
    %v2359 = vmul.f32 0.5, %v2358
    %v2360 = vsub.f32 1.5, %v2359
    %v2361 = vmul.f32 %v2356, %v2360
    %vm2362 = vweird.f32 %v2345
    %vm2363 = vweird.f32 %v2356
    %vm2364 = vmor %vm2362, %vm2363
    %v2365 = vsel %vm2364, %v2356, %v2361
    %v2366 = vmul.f32 %v2332, %v2355
    %v2367 = vmul.f32 %v2333, %v2365
    %v2368 = vperm.slane %v2322, 0
    %v2369 = vmul.f32 %v2366, %v2368
    %v2370 = vmul.f32 %v2367, %v2368
    %v2371 = vperm.slane %v2323, 0
    %v2372 = vadd.f32 %v2369, %v2371
    %v2373 = vadd.f32 %v2370, %v2371
    %v2374 = vld [vmem:[#allocation2 + $0x68] sm:$0xff]
    %v2375 = vld [vmem:[#allocation2 + $0xd8] sm:$0xff]
    %v2376 = vld [vmem:[#allocation2 + $0x148] sm:$0xff]
    %v2377 = vld [vmem:[#allocation2 + $0x1b8] sm:$0xff]
    %v2378 = vld [vmem:[%s6 + $0xd] sm:$0x1]
    %v2379 = vperm.slane %v2378, 0
    %v2381 = vsel %vm63, %v2372, 0
    %v2384 = vsel %vm63, %v2373, 0
    %2386 = vmatpush.msra.mxu0 0.0
    %2387 = vmatpush.msra.mxu0 0.0
    %2388 = vmatpush.msra.mxu0 0.0
    %2389 = vmatpush.msra.mxu0 0.0
    %2390 = vmatpush.msra.mxu0 0.0
    %2391 = vmatpush.msra.mxu0 0.0
    %2392 = vmatpush.msra.mxu0 0.0
    %2393 = vmatpush.msra.mxu0 0.0
    %2394 = vmatpush.msra.mxu0 0.0
    %2395 = vmatpush.msra.mxu0 0.0
    %2396 = vmatpush.msra.mxu0 0.0
    %2397 = vmatpush.msra.mxu0 0.0
    %2398 = vmatpush.msra.mxu0 %v2377
    %2399 = vmatpush.msra.mxu0 %v2376
    %2400 = vmatpush.msra.mxu0 %v2375
    %2401 = vmatpush.msra.mxu0 %v2374
    %2402 = vmatmul.f32.gmra.mxu0 %v2381
    %v2403 = vpop.f32.mrf.mxu0
    %v2404 = vadd.f32 %v2379, %v2403
    %2405 = vmatmul.f32.gmra.mxu0 %v2384
    %v2406 = vpop.f32.mrf.mxu0
    %v2407 = vadd.f32 %v2379, %v2406
    %2408 = vdwg.mxu0
    %v2409 = vmax.f32 %v2404, 0.0
    %v2410 = vmax.f32 %v2407, 0.0
    %v2411 = vld [vmem:[%s5] sm:$0xff]
    %v2412 = vld [vmem:[%s5 + $0x8] sm:$0xff]
    %v2413 = vld [vmem:[%s5 + $0x10] sm:$0xff]
    %v2414 = vld [vmem:[%s5 + $0x18] sm:$0xff]
    %v2415 = vld [vmem:[%s5 + $0x20] sm:$0xff]
    %v2416 = vld [vmem:[%s5 + $0x28] sm:$0xff]
    %v2417 = vld [vmem:[%s5 + $0x30] sm:$0xff]
    %v2418 = vld [vmem:[%s5 + $0x38] sm:$0xff]
    %v2419 = vld [vmem:[%s6 + $0xe] sm:$0x1]
    %v2420 = vperm.slane %v2419, 0
    %vm2421 = vcmask 523264
    %v2423 = vsel %vm2421, %v2409, 0
    %v2426 = vsel %vm2421, %v2410, 0
    %2428 = vmatpush.msra.mxu0 0.0
    %2429 = vmatpush.msra.mxu0 0.0
    %2430 = vmatpush.msra.mxu0 0.0
    %2431 = vmatpush.msra.mxu0 0.0
    %2432 = vmatpush.msra.mxu0 0.0
    %2433 = vmatpush.msra.mxu0 0.0
    %2434 = vmatpush.msra.mxu0 0.0
    %2435 = vmatpush.msra.mxu0 0.0
    %2436 = vmatpush.msra.mxu0 %v2418
    %2437 = vmatpush.msra.mxu0 %v2417
    %2438 = vmatpush.msra.mxu0 %v2416
    %2439 = vmatpush.msra.mxu0 %v2415
    %2440 = vmatpush.msra.mxu0 %v2414
    %2441 = vmatpush.msra.mxu0 %v2413
    %2442 = vmatpush.msra.mxu0 %v2412
    %2443 = vmatpush.msra.mxu0 %v2411
    %2444 = vmatmul.f32.gmra.mxu0 %v2423
    %v2445 = vpop.f32.mrf.mxu0
    %v2446 = vadd.f32 %v2420, %v2445
    %2447 = vmatmul.f32.gmra.mxu0 %v2426
    %v2448 = vpop.f32.mrf.mxu0
    %v2449 = vadd.f32 %v2420, %v2448
    %2450 = vdwg.mxu0
    %v2451 = vadd.f32 %v2372, %v2446
    %v2452 = vadd.f32 %v2373, %v2449
    %v2453 = vld [vmem:[%s6 + $0x11] sm:$0x1]
    %v2454 = vld [vmem:[%s6 + $0x14] sm:$0x1]
    %v2455 = vsel %vm63, %v2451, 0.0
    %2456 = vadd.xlane.f32.xlu0 %v2455
    %v2457 = vpop.xlane.xlu0 %2456
    %v2458 = vsel %vm63, %v2452, 0.0
    %2459 = vadd.xlane.f32.xlu0 %v2458
    %v2460 = vpop.xlane.xlu0 %2459
    %v2461 = vmul.f32 %v2457, %v952
    %v2462 = vmul.f32 %v2460, %v952
    %v2463 = vsub.f32 %v2451, %v2461
    %v2464 = vsub.f32 %v2452, %v2462
    %v2465 = vmul.f32 %v2463, %v2463
    %v2466 = vmul.f32 %v2464, %v2464
    %v2467 = vsel %vm63, %v2465, 0.0
    %2468 = vadd.xlane.f32.xlu0 %v2467
    %v2469 = vpop.xlane.xlu0 %2468
    %v2470 = vsel %vm63, %v2466, 0.0
    %2471 = vadd.xlane.f32.xlu0 %v2470
    %v2472 = vpop.xlane.xlu0 %2471
    %v2473 = vmul.f32 %v2469, %v952
    %v2474 = vmul.f32 %v2472, %v952
    %v2475 = vadd.f32 %v2473, 1e-05
    %v2476 = vadd.f32 %v2474, 1e-05
    %v2477 = vrsqrt.pop %v2475
    %v2478 = vmul.f32 %v2477, %v2475
    %v2479 = vmul.f32 %v2478, %v2477
    %v2480 = vmul.f32 0.5, %v2479
    %v2481 = vsub.f32 1.5, %v2480
    %v2482 = vmul.f32 %v2477, %v2481
    %vm2483 = vweird.f32 %v2475
    %vm2484 = vweird.f32 %v2477
    %vm2485 = vmor %vm2483, %vm2484
    %v2486 = vsel %vm2485, %v2477, %v2482
    %v2487 = vrsqrt.pop %v2476
    %v2488 = vmul.f32 %v2487, %v2476
    %v2489 = vmul.f32 %v2488, %v2487
    %v2490 = vmul.f32 0.5, %v2489
    %v2491 = vsub.f32 1.5, %v2490
    %v2492 = vmul.f32 %v2487, %v2491
    %vm2493 = vweird.f32 %v2476
    %vm2494 = vweird.f32 %v2487
    %vm2495 = vmor %vm2493, %vm2494
    %v2496 = vsel %vm2495, %v2487, %v2492
    %v2497 = vmul.f32 %v2463, %v2486
    %v2498 = vmul.f32 %v2464, %v2496
    %v2499 = vperm.slane %v2453, 0
    %v2500 = vmul.f32 %v2497, %v2499
    %v2501 = vmul.f32 %v2498, %v2499
    %v2502 = vperm.slane %v2454, 0
    %v2503 = vadd.f32 %v2500, %v2502
    %v2504 = vadd.f32 %v2501, %v2502
    %2505 = vst.msk [vmem:[#allocation5] sm:$0xff] %vm63, %v2503
    %2506 = vst.msk [vmem:[#allocation5 + $0x8] sm:$0xff] %vm63, %v2504
    // Predicated region
    $region34: #{tpu_custom_call.1} parent=1 // pred_check
      _
    $region35: #{tpu_custom_call.1} parent=1 // pred_check_branch
      %2508 = sbr.rel (0) target = $region37
    $region36: #{tpu_custom_call.1} parent=1 // pred_region
      %2510 = vsyncadd [#allocation4], 0
      %s2511 = sshll.u32 [#allocation5], 4
      %s2512 = int_to_ptr.vmem [resolvable:$true] %s2511
      %s2513 = sshll.u32 %s7, 4
      %s2514 = int_to_ptr.hbm [resolvable:$true] %s2513
      %2519 = dma.vmem_to_hbm [thread:$0]  %s2512, 256, %s2514, [#allocation4], 128, 128, 8
    $region37: #{tpu_custom_call.1} parent=1 // pred_fallthru
      _
    // Predicated region
    $region38: #{tpu_custom_call.1} parent=1 // pred_check
      _
    $region39: #{tpu_custom_call.1} parent=1 // pred_check_branch
      %2521 = sbr.rel (0) target = $region41
    $region40: #{tpu_custom_call.1} parent=1 // pred_region
      %2523 = dma.done [#allocation4], 256
    $region41: #{tpu_custom_call.1} parent=1 // pred_fallthru
      _
    %2524 = vsyncpa [#allocation3], 1
    %2525 = vsyncpa [#allocation4], 1

</llo_original>
